<compile_context>
chip_gen: v5e
topology: v5e:2x2
jax: 0.10.0
libtpu: 0.0.40
codegen_flags: <defaults>
</compile_context>

<pallas_src>
import functools

import numpy as np
import jax
import jax.numpy as jnp
from jax import lax
from jax.experimental import pallas as pl
from jax.experimental.pallas import tpu as pltpu


# ----------------------------------------------------------------------------
# Pallas kernel: the full decode loop in one invocation.
# ----------------------------------------------------------------------------
def _decoder_kernel(
    # inputs
    last_pos_ref, last_pos_rel_ref, h0_ref, c0_ref, pair_mask_ref,
    w_emb_ref, b_emb_ref,
    w_ih_ref, w_hh_ref, b_lstm_ref,
    w_h2p_ref, b_h2p_ref,
    w_pool2_ref, b_pool_ref,
    w_m1a_ref, w_m1b_ref, b_m1_ref, w_m2_ref, b_m2_ref,
    # outputs
    rel_out_ref, abs_out_ref, h_final_ref,
    *, T, B, H, G, NS):
  GG = G * G
  E = w_emb_ref.shape[1]
  M = w_m2_ref.shape[0]
  f32 = jnp.float32

  # ---- loop-invariant loads; hoist bias broadcasts (JAX won't CSE them) ----
  w_emb = w_emb_ref[...]
  w_ih = w_ih_ref[...]
  w_hh = w_hh_ref[...]
  w_h2p = w_h2p_ref[...]
  w_pool2 = w_pool2_ref[...]          # (GG*H, H)
  w_m1a = w_m1a_ref[...]
  w_m1b = w_m1b_ref[...]
  w_m2 = w_m2_ref[...]
  b_emb = jnp.broadcast_to(b_emb_ref[...], (B, E))
  b_lstm = jnp.broadcast_to(b_lstm_ref[...], (B, 4 * H))
  b_h2p = jnp.broadcast_to(b_h2p_ref[...], (B, 2))
  b_pool = jnp.broadcast_to(b_pool_ref[...], (B, H))
  b_m1 = jnp.broadcast_to(b_m1_ref[...], (B, M))
  b_m2 = jnp.broadcast_to(b_m2_ref[...], (B, H))
  pair_ok = pair_mask_ref[...] > 0.5   # same sequence & i != j (padded rows 0)

  ones_b = jnp.ones((B, 1), f32)
  dn = (((1,), (1,)), ((), ()))
  half = NS / 2.0

  h_prev = h0_ref[...]
  c_prev = c0_ref[...]
  last_pos = last_pos_ref[...]
  last_pos_rel = last_pos_rel_ref[...]

  # Static unroll over timesteps (seq_len is small & static).  Outputs stay
  # VMEM-resident; HBM writeback happens once when the kernel finishes.
  for t in range(T):
    # --- spatial_embedding (Linear + Dropout(p=0)) followed by ReLU6 ---
    emb = jnp.dot(last_pos_rel, w_emb, preferred_element_type=f32) + b_emb
    emb = jnp.clip(emb, 0.0, 6.0)

    # --- LSTM cell (PyTorch gate order: i, f, g, o) ---
    gates = (jnp.dot(emb, w_ih, preferred_element_type=f32)
             + jnp.dot(h_prev, w_hh, preferred_element_type=f32)
             + b_lstm)
    i_g = jax.nn.sigmoid(gates[:, 0 * H:1 * H])
    f_g = jax.nn.sigmoid(gates[:, 1 * H:2 * H])
    g_g = jnp.tanh(gates[:, 2 * H:3 * H])
    o_g = jax.nn.sigmoid(gates[:, 3 * H:4 * H])
    c_new = f_g * c_prev + i_g * g_g
    h_lstm = o_g * jnp.tanh(c_new)

    # --- hidden2pos ---
    rel = jnp.dot(h_lstm, w_h2p, preferred_element_type=f32) + b_h2p
    pos = rel + last_pos                      # curr_pos

    # --- SocialPooling on (h_lstm, pos) ---
    # [i, j] = value of pedestrian j (cols) relative to pedestrian i (rows).
    # Only the transposed broadcast needs a (tiny) matmul; the row broadcast
    # is a free VPU lane-broadcast of the (B, 1) column.
    px = pos[:, 0:1]
    py = pos[:, 1:2]
    px_j = lax.dot_general(ones_b, px, dn, preferred_element_type=f32)  # x_j
    py_j = lax.dot_general(ones_b, py, dn, preferred_element_type=f32)  # y_j
    dx = px_j - px                             # pos_j.x - pos_i.x
    dy = py_j - py
    oob = ((dx >= half) | (dx <= -half)) | ((dy >= half) | (dy <= -half))
    # Cell indices are small integers; they are exact in f32 (safe == compares).
    cell_x = jnp.floor((dx + half) / NS * G)
    cell_x = jnp.where(cell_x == G, cell_x - 1.0, cell_x)
    cell_y = jnp.floor((half - dy) / NS * G)
    cell_y = jnp.where(cell_y == G, cell_y - 1.0, cell_y)
    cell = cell_x + cell_y * G                 # float (B, B)
    valid = jnp.logical_and(pair_ok, jnp.logical_not(oob))

    # Fused scatter_add + mlp_pool:
    #   pooled_flat[i, c*H:(c+1)*H] = sum_j [cell==c & valid] * h_lstm[j]
    #   pool_h = relu(pooled_flat @ W_pool2d + b)   (single K = GG*H matmul)
    parts = []
    for cidx in range(GG):                     # static unroll: no scalar loop,
      m_c = jnp.where(jnp.logical_and(cell == float(cidx), valid), 1.0, 0.0)
      parts.append(jnp.dot(m_c, h_lstm, preferred_element_type=f32))  # (B, H)
    pooled_flat = jnp.concatenate(parts, axis=1)                      # (B, GG*H)
    pool_h = jnp.maximum(
        jnp.dot(pooled_flat, w_pool2, preferred_element_type=f32) + b_pool, 0.0)

    # --- mlp over cat([decoder_h, pool_h]): Linear+ReLU, Linear+ReLU ---
    z1 = jnp.maximum(
        jnp.dot(h_lstm, w_m1a, preferred_element_type=f32)
        + jnp.dot(pool_h, w_m1b, preferred_element_type=f32)
        + b_m1, 0.0)
    h_new = jnp.maximum(
        jnp.dot(z1, w_m2, preferred_element_type=f32) + b_m2, 0.0)

    # --- write this timestep's outputs into the resident output blocks ---
    rel_out_ref[t] = rel
    abs_out_ref[t] = pos

    # --- carry state ---
    h_prev, c_prev = h_new, c_new
    last_pos, last_pos_rel = pos, rel

  # Final hidden state written exactly once.
  h_final_ref[...] = h_prev


# ----------------------------------------------------------------------------
# Wrapper
# ----------------------------------------------------------------------------
def decoder_forward_pallas(params, last_pos, last_pos_rel, h0, c0, pair_mask,
                           *, seq_len, grid_size, neighborhood_size):
  B, H = h0.shape
  G = grid_size
  GG = G * G
  B_pad = -(-B // 8) * 8                      # pad batch to the sublane tile

  def pad_rows(x):
    if B_pad == B:
      return x
    return jnp.pad(x, ((0, B_pad - B),) + ((0, 0),) * (x.ndim - 1))

  lp = pad_rows(last_pos)
  lpr = pad_rows(last_pos_rel)
  h0p = pad_rows(h0)
  c0p = pad_rows(c0)
  pm = pair_mask
  if B_pad != B:
    pm = jnp.pad(pair_mask, ((0, B_pad - B), (0, B_pad - B)))  # padded pairs invalid

  # mlp_pool weight flattened once on host: (GG, H, H) -> (GG*H, H).
  w_pool2 = params['w_pool3'].reshape(GG * H, H)

  inputs = (
      lp, lpr, h0p, c0p, pm,
      params['w_emb'], params['b_emb'],
      params['w_ih'], params['w_hh'], params['b_lstm'],
      params['w_h2p'], params['b_h2p'],
      w_pool2, params['b_pool'],
      params['w_m1a'], params['w_m1b'], params['b_m1'],
      params['w_m2'], params['b_m2'],
  )
  in_specs = [pl.BlockSpec(x.shape, lambda i, nd=x.ndim: (0,) * nd)
              for x in inputs]

  out_shape = (
      jax.ShapeDtypeStruct((seq_len, B_pad, 2), jnp.float32),   # out_dxdy_all
      jax.ShapeDtypeStruct((seq_len, B_pad, 2), jnp.float32),   # out_xy_all
      jax.ShapeDtypeStruct((B_pad, H), jnp.float32),            # final hidden
  )
  # Full-array (resident) output blocks: written back to HBM once.
  out_specs = (
      pl.BlockSpec((seq_len, B_pad, 2), lambda i: (0, 0, 0)),
      pl.BlockSpec((seq_len, B_pad, 2), lambda i: (0, 0, 0)),
      pl.BlockSpec((B_pad, H), lambda i: (0, 0)),
  )

  kernel = functools.partial(_decoder_kernel, T=seq_len, B=B_pad, H=H, G=G,
                             NS=float(neighborhood_size))
  grid_spec = pltpu.PrefetchScalarGridSpec(
      num_scalar_prefetch=0,
      grid=(1,),
      in_specs=in_specs,
      out_specs=out_specs,
  )
  rel_all, abs_all, h_final = pl.pallas_call(
      kernel,
      grid_spec=grid_spec,
      out_shape=out_shape,
      compiler_params=pltpu.CompilerParams(dimension_semantics=("arbitrary",)),
  )(*inputs)

  # Slice off padded pedestrians.
  return rel_all[:, :B, :], abs_all[:, :B, :], h_final[:B, :]


# ----------------------------------------------------------------------------
# Pure-JAX reference (mirrors the PyTorch forward semantics)
# ----------------------------------------------------------------------------
def decoder_forward_ref(params, last_pos, last_pos_rel, h, c, pair_mask,
                        *, seq_len, grid_size, neighborhood_size):
  B, H = h.shape
  G = grid_size
  GG = G * G
  NS = float(neighborhood_size)
  W_pool2d = params['w_pool3'].reshape(GG * H, H)
  W_m1 = jnp.concatenate([params['w_m1a'], params['w_m1b']], axis=0)
  rels, poss = [], []
  for _ in range(seq_len):
    emb = jnp.clip(last_pos_rel @ params['w_emb'] + params['b_emb'], 0.0, 6.0)
    gates = emb @ params['w_ih'] + h @ params['w_hh'] + params['b_lstm']
    i_g = jax.nn.sigmoid(gates[:, 0 * H:1 * H])
    f_g = jax.nn.sigmoid(gates[:, 1 * H:2 * H])
    g_g = jnp.tanh(gates[:, 2 * H:3 * H])
    o_g = jax.nn.sigmoid(gates[:, 3 * H:4 * H])
    c = f_g * c + i_g * g_g
    h_lstm = o_g * jnp.tanh(c)
    rel = h_lstm @ params['w_h2p'] + params['b_h2p']
    pos = rel + last_pos
    dx = pos[None, :, 0] - pos[:, None, 0]
    dy = pos[None, :, 1] - pos[:, None, 1]
    half = NS / 2.0
    oob = (dx >= half) | (dx <= -half) | (dy >= half) | (dy <= -half)
    cx = jnp.floor((dx + half) / NS * G)
    cx = jnp.where(cx == G, cx - 1, cx)
    cy = jnp.floor((half - dy) / NS * G)
    cy = jnp.where(cy == G, cy - 1, cy)
    cell = (cx + cy * G).astype(jnp.int32)
    valid = (pair_mask > 0.5) & (~oob)
    onehot = (cell[:, :, None] == jnp.arange(GG)[None, None, :]) & valid[:, :, None]
    pool3 = jnp.einsum('ijc,jh->ich', onehot.astype(jnp.float32), h_lstm)
    pool_h = jnp.maximum(pool3.reshape(B, GG * H) @ W_pool2d + params['b_pool'], 0.0)
    z1 = jnp.maximum(
        jnp.concatenate([h_lstm, pool_h], axis=1) @ W_m1 + params['b_m1'], 0.0)
    h = jnp.maximum(z1 @ params['w_m2'] + params['b_m2'], 0.0)
    rels.append(rel)
    poss.append(pos)
    last_pos, last_pos_rel = pos, rel
  return jnp.stack(rels, 0), jnp.stack(poss, 0), h


# ----------------------------------------------------------------------------
# Main
# ----------------------------------------------------------------------------
if __name__ == "__main__":
  # Small shapes consistent with the Decoder module (scaled-down defaults).
  SEQ_LEN = 4      # seq_len
  INPUT_DIM = 2    # input_dim
  H = 32           # decoder_h_dim
  E = 16           # embedding_dim
  M = 32           # mlp_dim
  G = 4            # grid_size
  NS = 2.0         # neighborhood_size
  B = 4            # batch = total pedestrians in the batch

  seq_start_end = np.array([[0, 2], [2, 4]])
  seq_id = np.zeros((B,), np.int32)
  for s, (st, en) in enumerate(seq_start_end):
    seq_id[st:en] = s
  # pair_mask[i, j] = 1 if i and j are in the same sequence and i != j
  pair_mask = ((seq_id[:, None] == seq_id[None, :]) &
               (np.arange(B)[:, None] != np.arange(B)[None, :])).astype(np.float32)
  pair_mask = jnp.asarray(pair_mask)

  key = jax.random.PRNGKey(0)
  ks = jax.random.split(key, 20)
  params = {
      'w_emb':  jax.random.normal(ks[0], (INPUT_DIM, E), jnp.float32) * 0.5,
      'b_emb':  jax.random.normal(ks[1], (1, E), jnp.float32) * 0.1,
      'w_ih':   jax.random.normal(ks[2], (E, 4 * H), jnp.float32) * 0.2,
      'w_hh':   jax.random.normal(ks[3], (H, 4 * H), jnp.float32) * 0.2,
      'b_lstm': jax.random.normal(ks[4], (1, 4 * H), jnp.float32) * 0.1,
      'w_h2p':  jax.random.normal(ks[5], (H, INPUT_DIM), jnp.float32) * 0.2,
      'b_h2p':  jax.random.normal(ks[6], (1, INPUT_DIM), jnp.float32) * 0.05,
      # mlp_pool weight, stored as (grid_size**2, H, H)  ==  (GG*H, H) reshaped
      'w_pool3': jax.random.normal(ks[7], (G * G, H, H), jnp.float32) * 0.05,
      'b_pool': jax.random.normal(ks[8], (1, H), jnp.float32) * 0.05,
      # mlp weight 1 (2H, M) split into the h-half and pool-half
      'w_m1a':  jax.random.normal(ks[9], (H, M), jnp.float32) * 0.1,
      'w_m1b':  jax.random.normal(ks[10], (H, M), jnp.float32) * 0.1,
      'b_m1':   jax.random.normal(ks[11], (1, M), jnp.float32) * 0.05,
      'w_m2':   jax.random.normal(ks[12], (M, H), jnp.float32) * 0.1,
      'b_m2':   jax.random.normal(ks[13], (1, H), jnp.float32) * 0.05,
  }

  last_pos = jax.random.normal(ks[14], (B, 2), jnp.float32) * 0.5
  last_pos_rel = jax.random.normal(ks[15], (B, 2), jnp.float32) * 0.1
  h0 = jax.random.normal(ks[16], (B, H), jnp.float32) * 0.3
  c0 = jax.random.normal(ks[17], (B, H), jnp.float32) * 0.3
  pred_check = np.array([[1.0], [1.0], [0.0], [1.0]], np.float32)

  rel_all, abs_all, h_final = decoder_forward_pallas(
      params, last_pos, last_pos_rel, h0, c0, pair_mask,
      seq_len=SEQ_LEN, grid_size=G, neighborhood_size=NS)
  jax.block_until_ready((rel_all, abs_all, h_final))

  # correctness check against a pure-JAX reference
  rel_ref, abs_ref, h_ref = decoder_forward_ref(
      params, last_pos, last_pos_rel, h0, c0, pair_mask,
      seq_len=SEQ_LEN, grid_size=G, neighborhood_size=NS)
  np.testing.assert_allclose(np.asarray(rel_all), np.asarray(rel_ref),
                             rtol=1e-2, atol=1e-2)
  np.testing.assert_allclose(np.asarray(abs_all), np.asarray(abs_ref),
                             rtol=1e-2, atol=1e-2)
  np.testing.assert_allclose(np.asarray(h_final), np.asarray(h_ref),
                             rtol=1e-2, atol=1e-2)

  # Assemble torch-style output dict (host-side glue, data-dependent selection).
  if pred_check.shape[0] <= 1:
    out_xy = abs_all[:, 0:1, :]
    out_dxdy = rel_all[:, 0:1, :]
  else:
    sel = pred_check.squeeze() > 0
    out_xy = abs_all[:, sel, :]
    out_dxdy = rel_all[:, sel, :]
  output = {
      'out_xy': out_xy,
      'out_dxdy': out_dxdy,
      'h': h_final[None, :, :],           # (num_layers=1, batch, h_dim)
      'out_xy_all': abs_all,
      'out_dxdy_all': rel_all,
  }
  jax.block_until_ready(output['out_xy'])
  print("KERNEL_OK")
</pallas_src>

<mosaic_0001>
module attributes {stable_mosaic.version = 11 : i64} {
  func.func @_decoder_kernel(%arg0: i32, %arg1: memref<8x2xf32, #tpu.memory_space<vmem>>, %arg2: memref<8x2xf32, #tpu.memory_space<vmem>>, %arg3: memref<8x32xf32, #tpu.memory_space<vmem>>, %arg4: memref<8x32xf32, #tpu.memory_space<vmem>>, %arg5: memref<8x8xf32, #tpu.memory_space<vmem>>, %arg6: memref<2x16xf32, #tpu.memory_space<vmem>>, %arg7: memref<1x16xf32, #tpu.memory_space<vmem>>, %arg8: memref<16x128xf32, #tpu.memory_space<vmem>>, %arg9: memref<32x128xf32, #tpu.memory_space<vmem>>, %arg10: memref<1x128xf32, #tpu.memory_space<vmem>>, %arg11: memref<32x2xf32, #tpu.memory_space<vmem>>, %arg12: memref<1x2xf32, #tpu.memory_space<vmem>>, %arg13: memref<512x32xf32, #tpu.memory_space<vmem>>, %arg14: memref<1x32xf32, #tpu.memory_space<vmem>>, %arg15: memref<32x32xf32, #tpu.memory_space<vmem>>, %arg16: memref<32x32xf32, #tpu.memory_space<vmem>>, %arg17: memref<1x32xf32, #tpu.memory_space<vmem>>, %arg18: memref<32x32xf32, #tpu.memory_space<vmem>>, %arg19: memref<1x32xf32, #tpu.memory_space<vmem>>, %arg20: memref<4x8x2xf32, #tpu.memory_space<vmem>>, %arg21: memref<4x8x2xf32, #tpu.memory_space<vmem>>, %arg22: memref<8x32xf32, #tpu.memory_space<vmem>>) attributes {dimension_semantics = [#tpu.dimension_semantics<arbitrary>], iteration_bounds = array<i64: 1>, scalar_prefetch = 0 : i64, scratch_operands = 0 : i64, tpu.core_type = #tpu.core_type<tc>, window_params = [{pipeline_mode = #tpu.pipeline_mode<synchronous>, transform_indices = @transform_0, window_bounds = array<i64: 8, 2>}, {pipeline_mode = #tpu.pipeline_mode<synchronous>, transform_indices = @transform_1, window_bounds = array<i64: 8, 2>}, {pipeline_mode = #tpu.pipeline_mode<synchronous>, transform_indices = @transform_2, window_bounds = array<i64: 8, 32>}, {pipeline_mode = #tpu.pipeline_mode<synchronous>, transform_indices = @transform_3, window_bounds = array<i64: 8, 32>}, {pipeline_mode = #tpu.pipeline_mode<synchronous>, transform_indices = @transform_4, window_bounds = array<i64: 8, 8>}, {pipeline_mode = #tpu.pipeline_mode<synchronous>, transform_indices = @transform_5, window_bounds = array<i64: 2, 16>}, {pipeline_mode = #tpu.pipeline_mode<synchronous>, transform_indices = @transform_6, window_bounds = array<i64: 1, 16>}, {pipeline_mode = #tpu.pipeline_mode<synchronous>, transform_indices = @transform_7, window_bounds = array<i64: 16, 128>}, {pipeline_mode = #tpu.pipeline_mode<synchronous>, transform_indices = @transform_8, window_bounds = array<i64: 32, 128>}, {pipeline_mode = #tpu.pipeline_mode<synchronous>, transform_indices = @transform_9, window_bounds = array<i64: 1, 128>}, {pipeline_mode = #tpu.pipeline_mode<synchronous>, transform_indices = @transform_10, window_bounds = array<i64: 32, 2>}, {pipeline_mode = #tpu.pipeline_mode<synchronous>, transform_indices = @transform_11, window_bounds = array<i64: 1, 2>}, {pipeline_mode = #tpu.pipeline_mode<synchronous>, transform_indices = @transform_12, window_bounds = array<i64: 512, 32>}, {pipeline_mode = #tpu.pipeline_mode<synchronous>, transform_indices = @transform_13, window_bounds = array<i64: 1, 32>}, {pipeline_mode = #tpu.pipeline_mode<synchronous>, transform_indices = @transform_14, window_bounds = array<i64: 32, 32>}, {pipeline_mode = #tpu.pipeline_mode<synchronous>, transform_indices = @transform_15, window_bounds = array<i64: 32, 32>}, {pipeline_mode = #tpu.pipeline_mode<synchronous>, transform_indices = @transform_16, window_bounds = array<i64: 1, 32>}, {pipeline_mode = #tpu.pipeline_mode<synchronous>, transform_indices = @transform_17, window_bounds = array<i64: 32, 32>}, {pipeline_mode = #tpu.pipeline_mode<synchronous>, transform_indices = @transform_18, window_bounds = array<i64: 1, 32>}, {pipeline_mode = #tpu.pipeline_mode<synchronous>, transform_indices = @transform_19, window_bounds = array<i64: 4, 8, 2>}, {pipeline_mode = #tpu.pipeline_mode<synchronous>, transform_indices = @transform_20, window_bounds = array<i64: 4, 8, 2>}, {pipeline_mode = #tpu.pipeline_mode<synchronous>, transform_indices = @transform_21, window_bounds = array<i64: 8, 32>}]} {
    %c0 = arith.constant 0 : index
    %c0_0 = arith.constant 0 : index
    %0 = vector.load %arg6[%c0, %c0_0] : memref<2x16xf32, #tpu.memory_space<vmem>>, vector<2x16xf32>
    %c0_1 = arith.constant 0 : index
    %c0_2 = arith.constant 0 : index
    %1 = vector.load %arg8[%c0_1, %c0_2] : memref<16x128xf32, #tpu.memory_space<vmem>>, vector<16x128xf32>
    %c0_3 = arith.constant 0 : index
    %c0_4 = arith.constant 0 : index
    %2 = vector.load %arg9[%c0_3, %c0_4] : memref<32x128xf32, #tpu.memory_space<vmem>>, vector<32x128xf32>
    %c0_5 = arith.constant 0 : index
    %c0_6 = arith.constant 0 : index
    %3 = vector.load %arg11[%c0_5, %c0_6] : memref<32x2xf32, #tpu.memory_space<vmem>>, vector<32x2xf32>
    %c0_7 = arith.constant 0 : index
    %c0_8 = arith.constant 0 : index
    %4 = vector.load %arg13[%c0_7, %c0_8] : memref<512x32xf32, #tpu.memory_space<vmem>>, vector<512x32xf32>
    %c0_9 = arith.constant 0 : index
    %c0_10 = arith.constant 0 : index
    %5 = vector.load %arg15[%c0_9, %c0_10] : memref<32x32xf32, #tpu.memory_space<vmem>>, vector<32x32xf32>
    %c0_11 = arith.constant 0 : index
    %c0_12 = arith.constant 0 : index
    %6 = vector.load %arg16[%c0_11, %c0_12] : memref<32x32xf32, #tpu.memory_space<vmem>>, vector<32x32xf32>
    %c0_13 = arith.constant 0 : index
    %c0_14 = arith.constant 0 : index
    %7 = vector.load %arg18[%c0_13, %c0_14] : memref<32x32xf32, #tpu.memory_space<vmem>>, vector<32x32xf32>
    %c0_15 = arith.constant 0 : index
    %c0_16 = arith.constant 0 : index
    %8 = vector.load %arg7[%c0_15, %c0_16] : memref<1x16xf32, #tpu.memory_space<vmem>>, vector<1x16xf32>
    %9 = vector.shape_cast %8 : vector<1x16xf32> to vector<1x16xf32>
    %10 = vector.broadcast %9 : vector<1x16xf32> to vector<8x16xf32>
    %c0_17 = arith.constant 0 : index
    %c0_18 = arith.constant 0 : index
    %11 = vector.load %arg10[%c0_17, %c0_18] : memref<1x128xf32, #tpu.memory_space<vmem>>, vector<1x128xf32>
    %12 = vector.shape_cast %11 : vector<1x128xf32> to vector<1x128xf32>
    %13 = vector.broadcast %12 : vector<1x128xf32> to vector<8x128xf32>
    %c0_19 = arith.constant 0 : index
    %c0_20 = arith.constant 0 : index
    %14 = vector.load %arg12[%c0_19, %c0_20] : memref<1x2xf32, #tpu.memory_space<vmem>>, vector<1x2xf32>
    %15 = vector.shape_cast %14 : vector<1x2xf32> to vector<1x2xf32>
    %16 = vector.broadcast %15 : vector<1x2xf32> to vector<8x2xf32>
    %c0_21 = arith.constant 0 : index
    %c0_22 = arith.constant 0 : index
    %17 = vector.load %arg14[%c0_21, %c0_22] : memref<1x32xf32, #tpu.memory_space<vmem>>, vector<1x32xf32>
    %18 = vector.shape_cast %17 : vector<1x32xf32> to vector<1x32xf32>
    %19 = vector.broadcast %18 : vector<1x32xf32> to vector<8x32xf32>
    %c0_23 = arith.constant 0 : index
    %c0_24 = arith.constant 0 : index
    %20 = vector.load %arg17[%c0_23, %c0_24] : memref<1x32xf32, #tpu.memory_space<vmem>>, vector<1x32xf32>
    %21 = vector.shape_cast %20 : vector<1x32xf32> to vector<1x32xf32>
    %22 = vector.broadcast %21 : vector<1x32xf32> to vector<8x32xf32>
    %c0_25 = arith.constant 0 : index
    %c0_26 = arith.constant 0 : index
    %23 = vector.load %arg19[%c0_25, %c0_26] : memref<1x32xf32, #tpu.memory_space<vmem>>, vector<1x32xf32>
    %24 = vector.shape_cast %23 : vector<1x32xf32> to vector<1x32xf32>
    %25 = vector.broadcast %24 : vector<1x32xf32> to vector<8x32xf32>
    %c0_27 = arith.constant 0 : index
    %c0_28 = arith.constant 0 : index
    %26 = vector.load %arg5[%c0_27, %c0_28] : memref<8x8xf32, #tpu.memory_space<vmem>>, vector<8x8xf32>
    %cst = arith.constant 5.000000e-01 : f32
    %27 = vector.broadcast %cst : f32 to vector<8x8xf32>
    %28 = arith.cmpf ogt, %26, %27 : vector<8x8xf32>
    %cst_29 = arith.constant 1.000000e+00 : f32
    %29 = vector.broadcast %cst_29 : f32 to vector<8x1xf32>
    %c0_30 = arith.constant 0 : index
    %c0_31 = arith.constant 0 : index
    %30 = vector.load %arg3[%c0_30, %c0_31] : memref<8x32xf32, #tpu.memory_space<vmem>>, vector<8x32xf32>
    %c0_32 = arith.constant 0 : index
    %c0_33 = arith.constant 0 : index
    %31 = vector.load %arg4[%c0_32, %c0_33] : memref<8x32xf32, #tpu.memory_space<vmem>>, vector<8x32xf32>
    %c0_34 = arith.constant 0 : index
    %c0_35 = arith.constant 0 : index
    %32 = vector.load %arg1[%c0_34, %c0_35] : memref<8x2xf32, #tpu.memory_space<vmem>>, vector<8x2xf32>
    %c0_36 = arith.constant 0 : index
    %c0_37 = arith.constant 0 : index
    %33 = vector.load %arg2[%c0_36, %c0_37] : memref<8x2xf32, #tpu.memory_space<vmem>>, vector<8x2xf32>
    %cst_38 = arith.constant dense<0.000000e+00> : vector<8x16xf32>
    %34 = tpu.matmul %33, %0, %cst_38 {dimension_numbers = #tpu.dot_dimension_numbers<[1], [0], [0], [1], [0, 0, 1, 1], [], []>} : vector<8x2xf32>, vector<2x16xf32>, vector<8x16xf32> -> vector<8x16xf32>
    %35 = arith.addf %34, %10 : vector<8x16xf32>
    %cst_39 = arith.constant 0.000000e+00 : f32
    %cst_40 = arith.constant 6.000000e+00 : f32
    %36 = vector.broadcast %cst_39 : f32 to vector<8x16xf32>
    %37 = arith.maximumf %36, %35 : vector<8x16xf32>
    %38 = vector.broadcast %cst_40 : f32 to vector<8x16xf32>
    %39 = arith.minimumf %38, %37 : vector<8x16xf32>
    %cst_41 = arith.constant dense<0.000000e+00> : vector<8x128xf32>
    %40 = tpu.matmul %39, %1, %cst_41 {dimension_numbers = #tpu.dot_dimension_numbers<[1], [0], [0], [1], [0, 0, 1, 1], [], []>} : vector<8x16xf32>, vector<16x128xf32>, vector<8x128xf32> -> vector<8x128xf32>
    %cst_42 = arith.constant dense<0.000000e+00> : vector<8x128xf32>
    %41 = tpu.matmul %30, %2, %cst_42 {dimension_numbers = #tpu.dot_dimension_numbers<[1], [0], [0], [1], [0, 0, 1, 1], [], []>} : vector<8x32xf32>, vector<32x128xf32>, vector<8x128xf32> -> vector<8x128xf32>
    %42 = arith.addf %40, %41 : vector<8x128xf32>
    %43 = arith.addf %42, %13 : vector<8x128xf32>
    %44 = vector.extract_strided_slice %43 {offsets = [0, 0], sizes = [8, 32], strides = [1, 1]} : vector<8x128xf32> to vector<8x32xf32>
    %45 = arith.negf %44 : vector<8x32xf32>
    %46 = math.exp %45 : vector<8x32xf32>
    %cst_43 = arith.constant 1.000000e+00 : f32
    %47 = vector.broadcast %cst_43 : f32 to vector<8x32xf32>
    %48 = arith.addf %47, %46 : vector<8x32xf32>
    %49 = arith.divf %47, %48 : vector<8x32xf32>
    %50 = vector.extract_strided_slice %43 {offsets = [0, 32], sizes = [8, 32], strides = [1, 1]} : vector<8x128xf32> to vector<8x32xf32>
    %51 = arith.negf %50 : vector<8x32xf32>
    %52 = math.exp %51 : vector<8x32xf32>
    %cst_44 = arith.constant 1.000000e+00 : f32
    %53 = vector.broadcast %cst_44 : f32 to vector<8x32xf32>
    %54 = arith.addf %53, %52 : vector<8x32xf32>
    %55 = arith.divf %53, %54 : vector<8x32xf32>
    %56 = vector.extract_strided_slice %43 {offsets = [0, 64], sizes = [8, 32], strides = [1, 1]} : vector<8x128xf32> to vector<8x32xf32>
    %57 = math.tanh %56 : vector<8x32xf32>
    %58 = vector.extract_strided_slice %43 {offsets = [0, 96], sizes = [8, 32], strides = [1, 1]} : vector<8x128xf32> to vector<8x32xf32>
    %59 = arith.negf %58 : vector<8x32xf32>
    %60 = math.exp %59 : vector<8x32xf32>
    %cst_45 = arith.constant 1.000000e+00 : f32
    %61 = vector.broadcast %cst_45 : f32 to vector<8x32xf32>
    %62 = arith.addf %61, %60 : vector<8x32xf32>
    %63 = arith.divf %61, %62 : vector<8x32xf32>
    %64 = arith.mulf %55, %31 : vector<8x32xf32>
    %65 = arith.mulf %49, %57 : vector<8x32xf32>
    %66 = arith.addf %64, %65 : vector<8x32xf32>
    %67 = math.tanh %66 : vector<8x32xf32>
    %68 = arith.mulf %63, %67 : vector<8x32xf32>
    %cst_46 = arith.constant dense<0.000000e+00> : vector<8x2xf32>
    %69 = tpu.matmul %68, %3, %cst_46 {dimension_numbers = #tpu.dot_dimension_numbers<[1], [0], [0], [1], [0, 0, 1, 1], [], []>} : vector<8x32xf32>, vector<32x2xf32>, vector<8x2xf32> -> vector<8x2xf32>
    %70 = arith.addf %69, %16 : vector<8x2xf32>
    %71 = arith.addf %70, %32 : vector<8x2xf32>
    %72 = vector.extract_strided_slice %71 {offsets = [0, 0], sizes = [8, 1], strides = [1, 1]} : vector<8x2xf32> to vector<8x1xf32>
    %73 = vector.extract_strided_slice %71 {offsets = [0, 1], sizes = [8, 1], strides = [1, 1]} : vector<8x2xf32> to vector<8x1xf32>
    %cst_47 = arith.constant dense<0.000000e+00> : vector<8x8xf32>
    %74 = tpu.matmul %29, %72, %cst_47 {dimension_numbers = #tpu.dot_dimension_numbers<[1], [1], [0], [0], [0, 0, 1, 0], [], []>} : vector<8x1xf32>, vector<8x1xf32>, vector<8x8xf32> -> vector<8x8xf32>
    %cst_48 = arith.constant dense<0.000000e+00> : vector<8x8xf32>
    %75 = tpu.matmul %29, %73, %cst_48 {dimension_numbers = #tpu.dot_dimension_numbers<[1], [1], [0], [0], [0, 0, 1, 0], [], []>} : vector<8x1xf32>, vector<8x1xf32>, vector<8x8xf32> -> vector<8x8xf32>
    %76 = vector.broadcast %72 : vector<8x1xf32> to vector<8x8xf32>
    %77 = arith.subf %74, %76 : vector<8x8xf32>
    %78 = vector.broadcast %73 : vector<8x1xf32> to vector<8x8xf32>
    %79 = arith.subf %75, %78 : vector<8x8xf32>
    %cst_49 = arith.constant 1.000000e+00 : f32
    %80 = vector.broadcast %cst_49 : f32 to vector<8x8xf32>
    %81 = arith.cmpf oge, %77, %80 : vector<8x8xf32>
    %cst_50 = arith.constant -1.000000e+00 : f32
    %82 = vector.broadcast %cst_50 : f32 to vector<8x8xf32>
    %83 = arith.cmpf ole, %77, %82 : vector<8x8xf32>
    %84 = arith.ori %81, %83 : vector<8x8xi1>
    %cst_51 = arith.constant 1.000000e+00 : f32
    %85 = vector.broadcast %cst_51 : f32 to vector<8x8xf32>
    %86 = arith.cmpf oge, %79, %85 : vector<8x8xf32>
    %cst_52 = arith.constant -1.000000e+00 : f32
    %87 = vector.broadcast %cst_52 : f32 to vector<8x8xf32>
    %88 = arith.cmpf ole, %79, %87 : vector<8x8xf32>
    %89 = arith.ori %86, %88 : vector<8x8xi1>
    %90 = arith.ori %84, %89 : vector<8x8xi1>
    %cst_53 = arith.constant 1.000000e+00 : f32
    %91 = vector.broadcast %cst_53 : f32 to vector<8x8xf32>
    %92 = arith.addf %77, %91 : vector<8x8xf32>
    %cst_54 = arith.constant 2.000000e+00 : f32
    %93 = vector.broadcast %cst_54 : f32 to vector<8x8xf32>
    %94 = arith.divf %92, %93 : vector<8x8xf32>
    %cst_55 = arith.constant 4.000000e+00 : f32
    %95 = vector.broadcast %cst_55 : f32 to vector<8x8xf32>
    %96 = arith.mulf %94, %95 : vector<8x8xf32>
    %97 = math.floor %96 : vector<8x8xf32>
    %cst_56 = arith.constant 4.000000e+00 : f32
    %98 = vector.broadcast %cst_56 : f32 to vector<8x8xf32>
    %99 = arith.cmpf oeq, %97, %98 : vector<8x8xf32>
    %cst_57 = arith.constant 1.000000e+00 : f32
    %100 = vector.broadcast %cst_57 : f32 to vector<8x8xf32>
    %101 = arith.subf %97, %100 : vector<8x8xf32>
    %102 = arith.select %99, %101, %97 : vector<8x8xi1>, vector<8x8xf32>
    %cst_58 = arith.constant 1.000000e+00 : f32
    %103 = vector.broadcast %cst_58 : f32 to vector<8x8xf32>
    %104 = arith.subf %103, %79 : vector<8x8xf32>
    %cst_59 = arith.constant 2.000000e+00 : f32
    %105 = vector.broadcast %cst_59 : f32 to vector<8x8xf32>
    %106 = arith.divf %104, %105 : vector<8x8xf32>
    %cst_60 = arith.constant 4.000000e+00 : f32
    %107 = vector.broadcast %cst_60 : f32 to vector<8x8xf32>
    %108 = arith.mulf %106, %107 : vector<8x8xf32>
    %109 = math.floor %108 : vector<8x8xf32>
    %cst_61 = arith.constant 4.000000e+00 : f32
    %110 = vector.broadcast %cst_61 : f32 to vector<8x8xf32>
    %111 = arith.cmpf oeq, %109, %110 : vector<8x8xf32>
    %cst_62 = arith.constant 1.000000e+00 : f32
    %112 = vector.broadcast %cst_62 : f32 to vector<8x8xf32>
    %113 = arith.subf %109, %112 : vector<8x8xf32>
    %114 = arith.select %111, %113, %109 : vector<8x8xi1>, vector<8x8xf32>
    %cst_63 = arith.constant 4.000000e+00 : f32
    %115 = vector.broadcast %cst_63 : f32 to vector<8x8xf32>
    %116 = arith.mulf %114, %115 : vector<8x8xf32>
    %117 = arith.addf %102, %116 : vector<8x8xf32>
    %cst_64 = arith.constant dense<true> : vector<8x8xi1>
    %118 = arith.xori %90, %cst_64 : vector<8x8xi1>
    %119 = arith.andi %28, %118 : vector<8x8xi1>
    %cst_65 = arith.constant 0.000000e+00 : f32
    %120 = vector.broadcast %cst_65 : f32 to vector<8x8xf32>
    %121 = arith.cmpf oeq, %117, %120 : vector<8x8xf32>
    %122 = arith.andi %121, %119 : vector<8x8xi1>
    %cst_66 = arith.constant 1.000000e+00 : f32
    %cst_67 = arith.constant 0.000000e+00 : f32
    %123 = vector.broadcast %cst_66 : f32 to vector<8x8xf32>
    %124 = vector.broadcast %cst_67 : f32 to vector<8x8xf32>
    %125 = arith.select %122, %123, %124 : vector<8x8xi1>, vector<8x8xf32>
    %cst_68 = arith.constant dense<0.000000e+00> : vector<8x32xf32>
    %126 = tpu.matmul %125, %68, %cst_68 {dimension_numbers = #tpu.dot_dimension_numbers<[1], [0], [0], [1], [0, 0, 1, 1], [], []>} : vector<8x8xf32>, vector<8x32xf32>, vector<8x32xf32> -> vector<8x32xf32>
    %cst_69 = arith.constant 1.000000e+00 : f32
    %127 = vector.broadcast %cst_69 : f32 to vector<8x8xf32>
    %128 = arith.cmpf oeq, %117, %127 : vector<8x8xf32>
    %129 = arith.andi %128, %119 : vector<8x8xi1>
    %cst_70 = arith.constant 1.000000e+00 : f32
    %cst_71 = arith.constant 0.000000e+00 : f32
    %130 = vector.broadcast %cst_70 : f32 to vector<8x8xf32>
    %131 = vector.broadcast %cst_71 : f32 to vector<8x8xf32>
    %132 = arith.select %129, %130, %131 : vector<8x8xi1>, vector<8x8xf32>
    %cst_72 = arith.constant dense<0.000000e+00> : vector<8x32xf32>
    %133 = tpu.matmul %132, %68, %cst_72 {dimension_numbers = #tpu.dot_dimension_numbers<[1], [0], [0], [1], [0, 0, 1, 1], [], []>} : vector<8x8xf32>, vector<8x32xf32>, vector<8x32xf32> -> vector<8x32xf32>
    %cst_73 = arith.constant 2.000000e+00 : f32
    %134 = vector.broadcast %cst_73 : f32 to vector<8x8xf32>
    %135 = arith.cmpf oeq, %117, %134 : vector<8x8xf32>
    %136 = arith.andi %135, %119 : vector<8x8xi1>
    %cst_74 = arith.constant 1.000000e+00 : f32
    %cst_75 = arith.constant 0.000000e+00 : f32
    %137 = vector.broadcast %cst_74 : f32 to vector<8x8xf32>
    %138 = vector.broadcast %cst_75 : f32 to vector<8x8xf32>
    %139 = arith.select %136, %137, %138 : vector<8x8xi1>, vector<8x8xf32>
    %cst_76 = arith.constant dense<0.000000e+00> : vector<8x32xf32>
    %140 = tpu.matmul %139, %68, %cst_76 {dimension_numbers = #tpu.dot_dimension_numbers<[1], [0], [0], [1], [0, 0, 1, 1], [], []>} : vector<8x8xf32>, vector<8x32xf32>, vector<8x32xf32> -> vector<8x32xf32>
    %cst_77 = arith.constant 3.000000e+00 : f32
    %141 = vector.broadcast %cst_77 : f32 to vector<8x8xf32>
    %142 = arith.cmpf oeq, %117, %141 : vector<8x8xf32>
    %143 = arith.andi %142, %119 : vector<8x8xi1>
    %cst_78 = arith.constant 1.000000e+00 : f32
    %cst_79 = arith.constant 0.000000e+00 : f32
    %144 = vector.broadcast %cst_78 : f32 to vector<8x8xf32>
    %145 = vector.broadcast %cst_79 : f32 to vector<8x8xf32>
    %146 = arith.select %143, %144, %145 : vector<8x8xi1>, vector<8x8xf32>
    %cst_80 = arith.constant dense<0.000000e+00> : vector<8x32xf32>
    %147 = tpu.matmul %146, %68, %cst_80 {dimension_numbers = #tpu.dot_dimension_numbers<[1], [0], [0], [1], [0, 0, 1, 1], [], []>} : vector<8x8xf32>, vector<8x32xf32>, vector<8x32xf32> -> vector<8x32xf32>
    %cst_81 = arith.constant 4.000000e+00 : f32
    %148 = vector.broadcast %cst_81 : f32 to vector<8x8xf32>
    %149 = arith.cmpf oeq, %117, %148 : vector<8x8xf32>
    %150 = arith.andi %149, %119 : vector<8x8xi1>
    %cst_82 = arith.constant 1.000000e+00 : f32
    %cst_83 = arith.constant 0.000000e+00 : f32
    %151 = vector.broadcast %cst_82 : f32 to vector<8x8xf32>
    %152 = vector.broadcast %cst_83 : f32 to vector<8x8xf32>
    %153 = arith.select %150, %151, %152 : vector<8x8xi1>, vector<8x8xf32>
    %cst_84 = arith.constant dense<0.000000e+00> : vector<8x32xf32>
    %154 = tpu.matmul %153, %68, %cst_84 {dimension_numbers = #tpu.dot_dimension_numbers<[1], [0], [0], [1], [0, 0, 1, 1], [], []>} : vector<8x8xf32>, vector<8x32xf32>, vector<8x32xf32> -> vector<8x32xf32>
    %cst_85 = arith.constant 5.000000e+00 : f32
    %155 = vector.broadcast %cst_85 : f32 to vector<8x8xf32>
    %156 = arith.cmpf oeq, %117, %155 : vector<8x8xf32>
    %157 = arith.andi %156, %119 : vector<8x8xi1>
    %cst_86 = arith.constant 1.000000e+00 : f32
    %cst_87 = arith.constant 0.000000e+00 : f32
    %158 = vector.broadcast %cst_86 : f32 to vector<8x8xf32>
    %159 = vector.broadcast %cst_87 : f32 to vector<8x8xf32>
    %160 = arith.select %157, %158, %159 : vector<8x8xi1>, vector<8x8xf32>
    %cst_88 = arith.constant dense<0.000000e+00> : vector<8x32xf32>
    %161 = tpu.matmul %160, %68, %cst_88 {dimension_numbers = #tpu.dot_dimension_numbers<[1], [0], [0], [1], [0, 0, 1, 1], [], []>} : vector<8x8xf32>, vector<8x32xf32>, vector<8x32xf32> -> vector<8x32xf32>
    %cst_89 = arith.constant 6.000000e+00 : f32
    %162 = vector.broadcast %cst_89 : f32 to vector<8x8xf32>
    %163 = arith.cmpf oeq, %117, %162 : vector<8x8xf32>
    %164 = arith.andi %163, %119 : vector<8x8xi1>
    %cst_90 = arith.constant 1.000000e+00 : f32
    %cst_91 = arith.constant 0.000000e+00 : f32
    %165 = vector.broadcast %cst_90 : f32 to vector<8x8xf32>
    %166 = vector.broadcast %cst_91 : f32 to vector<8x8xf32>
    %167 = arith.select %164, %165, %166 : vector<8x8xi1>, vector<8x8xf32>
    %cst_92 = arith.constant dense<0.000000e+00> : vector<8x32xf32>
    %168 = tpu.matmul %167, %68, %cst_92 {dimension_numbers = #tpu.dot_dimension_numbers<[1], [0], [0], [1], [0, 0, 1, 1], [], []>} : vector<8x8xf32>, vector<8x32xf32>, vector<8x32xf32> -> vector<8x32xf32>
    %cst_93 = arith.constant 7.000000e+00 : f32
    %169 = vector.broadcast %cst_93 : f32 to vector<8x8xf32>
    %170 = arith.cmpf oeq, %117, %169 : vector<8x8xf32>
    %171 = arith.andi %170, %119 : vector<8x8xi1>
    %cst_94 = arith.constant 1.000000e+00 : f32
    %cst_95 = arith.constant 0.000000e+00 : f32
    %172 = vector.broadcast %cst_94 : f32 to vector<8x8xf32>
    %173 = vector.broadcast %cst_95 : f32 to vector<8x8xf32>
    %174 = arith.select %171, %172, %173 : vector<8x8xi1>, vector<8x8xf32>
    %cst_96 = arith.constant dense<0.000000e+00> : vector<8x32xf32>
    %175 = tpu.matmul %174, %68, %cst_96 {dimension_numbers = #tpu.dot_dimension_numbers<[1], [0], [0], [1], [0, 0, 1, 1], [], []>} : vector<8x8xf32>, vector<8x32xf32>, vector<8x32xf32> -> vector<8x32xf32>
    %cst_97 = arith.constant 8.000000e+00 : f32
    %176 = vector.broadcast %cst_97 : f32 to vector<8x8xf32>
    %177 = arith.cmpf oeq, %117, %176 : vector<8x8xf32>
    %178 = arith.andi %177, %119 : vector<8x8xi1>
    %cst_98 = arith.constant 1.000000e+00 : f32
    %cst_99 = arith.constant 0.000000e+00 : f32
    %179 = vector.broadcast %cst_98 : f32 to vector<8x8xf32>
    %180 = vector.broadcast %cst_99 : f32 to vector<8x8xf32>
    %181 = arith.select %178, %179, %180 : vector<8x8xi1>, vector<8x8xf32>
    %cst_100 = arith.constant dense<0.000000e+00> : vector<8x32xf32>
    %182 = tpu.matmul %181, %68, %cst_100 {dimension_numbers = #tpu.dot_dimension_numbers<[1], [0], [0], [1], [0, 0, 1, 1], [], []>} : vector<8x8xf32>, vector<8x32xf32>, vector<8x32xf32> -> vector<8x32xf32>
    %cst_101 = arith.constant 9.000000e+00 : f32
    %183 = vector.broadcast %cst_101 : f32 to vector<8x8xf32>
    %184 = arith.cmpf oeq, %117, %183 : vector<8x8xf32>
    %185 = arith.andi %184, %119 : vector<8x8xi1>
    %cst_102 = arith.constant 1.000000e+00 : f32
    %cst_103 = arith.constant 0.000000e+00 : f32
    %186 = vector.broadcast %cst_102 : f32 to vector<8x8xf32>
    %187 = vector.broadcast %cst_103 : f32 to vector<8x8xf32>
    %188 = arith.select %185, %186, %187 : vector<8x8xi1>, vector<8x8xf32>
    %cst_104 = arith.constant dense<0.000000e+00> : vector<8x32xf32>
    %189 = tpu.matmul %188, %68, %cst_104 {dimension_numbers = #tpu.dot_dimension_numbers<[1], [0], [0], [1], [0, 0, 1, 1], [], []>} : vector<8x8xf32>, vector<8x32xf32>, vector<8x32xf32> -> vector<8x32xf32>
    %cst_105 = arith.constant 1.000000e+01 : f32
    %190 = vector.broadcast %cst_105 : f32 to vector<8x8xf32>
    %191 = arith.cmpf oeq, %117, %190 : vector<8x8xf32>
    %192 = arith.andi %191, %119 : vector<8x8xi1>
    %cst_106 = arith.constant 1.000000e+00 : f32
    %cst_107 = arith.constant 0.000000e+00 : f32
    %193 = vector.broadcast %cst_106 : f32 to vector<8x8xf32>
    %194 = vector.broadcast %cst_107 : f32 to vector<8x8xf32>
    %195 = arith.select %192, %193, %194 : vector<8x8xi1>, vector<8x8xf32>
    %cst_108 = arith.constant dense<0.000000e+00> : vector<8x32xf32>
    %196 = tpu.matmul %195, %68, %cst_108 {dimension_numbers = #tpu.dot_dimension_numbers<[1], [0], [0], [1], [0, 0, 1, 1], [], []>} : vector<8x8xf32>, vector<8x32xf32>, vector<8x32xf32> -> vector<8x32xf32>
    %cst_109 = arith.constant 1.100000e+01 : f32
    %197 = vector.broadcast %cst_109 : f32 to vector<8x8xf32>
    %198 = arith.cmpf oeq, %117, %197 : vector<8x8xf32>
    %199 = arith.andi %198, %119 : vector<8x8xi1>
    %cst_110 = arith.constant 1.000000e+00 : f32
    %cst_111 = arith.constant 0.000000e+00 : f32
    %200 = vector.broadcast %cst_110 : f32 to vector<8x8xf32>
    %201 = vector.broadcast %cst_111 : f32 to vector<8x8xf32>
    %202 = arith.select %199, %200, %201 : vector<8x8xi1>, vector<8x8xf32>
    %cst_112 = arith.constant dense<0.000000e+00> : vector<8x32xf32>
    %203 = tpu.matmul %202, %68, %cst_112 {dimension_numbers = #tpu.dot_dimension_numbers<[1], [0], [0], [1], [0, 0, 1, 1], [], []>} : vector<8x8xf32>, vector<8x32xf32>, vector<8x32xf32> -> vector<8x32xf32>
    %cst_113 = arith.constant 1.200000e+01 : f32
    %204 = vector.broadcast %cst_113 : f32 to vector<8x8xf32>
    %205 = arith.cmpf oeq, %117, %204 : vector<8x8xf32>
    %206 = arith.andi %205, %119 : vector<8x8xi1>
    %cst_114 = arith.constant 1.000000e+00 : f32
    %cst_115 = arith.constant 0.000000e+00 : f32
    %207 = vector.broadcast %cst_114 : f32 to vector<8x8xf32>
    %208 = vector.broadcast %cst_115 : f32 to vector<8x8xf32>
    %209 = arith.select %206, %207, %208 : vector<8x8xi1>, vector<8x8xf32>
    %cst_116 = arith.constant dense<0.000000e+00> : vector<8x32xf32>
    %210 = tpu.matmul %209, %68, %cst_116 {dimension_numbers = #tpu.dot_dimension_numbers<[1], [0], [0], [1], [0, 0, 1, 1], [], []>} : vector<8x8xf32>, vector<8x32xf32>, vector<8x32xf32> -> vector<8x32xf32>
    %cst_117 = arith.constant 1.300000e+01 : f32
    %211 = vector.broadcast %cst_117 : f32 to vector<8x8xf32>
    %212 = arith.cmpf oeq, %117, %211 : vector<8x8xf32>
    %213 = arith.andi %212, %119 : vector<8x8xi1>
    %cst_118 = arith.constant 1.000000e+00 : f32
    %cst_119 = arith.constant 0.000000e+00 : f32
    %214 = vector.broadcast %cst_118 : f32 to vector<8x8xf32>
    %215 = vector.broadcast %cst_119 : f32 to vector<8x8xf32>
    %216 = arith.select %213, %214, %215 : vector<8x8xi1>, vector<8x8xf32>
    %cst_120 = arith.constant dense<0.000000e+00> : vector<8x32xf32>
    %217 = tpu.matmul %216, %68, %cst_120 {dimension_numbers = #tpu.dot_dimension_numbers<[1], [0], [0], [1], [0, 0, 1, 1], [], []>} : vector<8x8xf32>, vector<8x32xf32>, vector<8x32xf32> -> vector<8x32xf32>
    %cst_121 = arith.constant 1.400000e+01 : f32
    %218 = vector.broadcast %cst_121 : f32 to vector<8x8xf32>
    %219 = arith.cmpf oeq, %117, %218 : vector<8x8xf32>
    %220 = arith.andi %219, %119 : vector<8x8xi1>
    %cst_122 = arith.constant 1.000000e+00 : f32
    %cst_123 = arith.constant 0.000000e+00 : f32
    %221 = vector.broadcast %cst_122 : f32 to vector<8x8xf32>
    %222 = vector.broadcast %cst_123 : f32 to vector<8x8xf32>
    %223 = arith.select %220, %221, %222 : vector<8x8xi1>, vector<8x8xf32>
    %cst_124 = arith.constant dense<0.000000e+00> : vector<8x32xf32>
    %224 = tpu.matmul %223, %68, %cst_124 {dimension_numbers = #tpu.dot_dimension_numbers<[1], [0], [0], [1], [0, 0, 1, 1], [], []>} : vector<8x8xf32>, vector<8x32xf32>, vector<8x32xf32> -> vector<8x32xf32>
    %cst_125 = arith.constant 1.500000e+01 : f32
    %225 = vector.broadcast %cst_125 : f32 to vector<8x8xf32>
    %226 = arith.cmpf oeq, %117, %225 : vector<8x8xf32>
    %227 = arith.andi %226, %119 : vector<8x8xi1>
    %cst_126 = arith.constant 1.000000e+00 : f32
    %cst_127 = arith.constant 0.000000e+00 : f32
    %228 = vector.broadcast %cst_126 : f32 to vector<8x8xf32>
    %229 = vector.broadcast %cst_127 : f32 to vector<8x8xf32>
    %230 = arith.select %227, %228, %229 : vector<8x8xi1>, vector<8x8xf32>
    %cst_128 = arith.constant dense<0.000000e+00> : vector<8x32xf32>
    %231 = tpu.matmul %230, %68, %cst_128 {dimension_numbers = #tpu.dot_dimension_numbers<[1], [0], [0], [1], [0, 0, 1, 1], [], []>} : vector<8x8xf32>, vector<8x32xf32>, vector<8x32xf32> -> vector<8x32xf32>
    %232 = tpu.concatenate %126, %133, %140, %147, %154, %161, %168, %175, %182, %189, %196, %203, %210, %217, %224, %231 in 1 : vector<8x32xf32>, vector<8x32xf32>, vector<8x32xf32>, vector<8x32xf32>, vector<8x32xf32>, vector<8x32xf32>, vector<8x32xf32>, vector<8x32xf32>, vector<8x32xf32>, vector<8x32xf32>, vector<8x32xf32>, vector<8x32xf32>, vector<8x32xf32>, vector<8x32xf32>, vector<8x32xf32>, vector<8x32xf32> -> vector<8x512xf32>
    %cst_129 = arith.constant dense<0.000000e+00> : vector<8x32xf32>
    %233 = tpu.matmul %232, %4, %cst_129 {dimension_numbers = #tpu.dot_dimension_numbers<[1], [0], [0], [1], [0, 0, 1, 1], [], []>} : vector<8x512xf32>, vector<512x32xf32>, vector<8x32xf32> -> vector<8x32xf32>
    %234 = arith.addf %233, %19 : vector<8x32xf32>
    %cst_130 = arith.constant 0.000000e+00 : f32
    %235 = vector.broadcast %cst_130 : f32 to vector<8x32xf32>
    %236 = arith.maximumf %234, %235 : vector<8x32xf32>
    %cst_131 = arith.constant dense<0.000000e+00> : vector<8x32xf32>
    %237 = tpu.matmul %68, %5, %cst_131 {dimension_numbers = #tpu.dot_dimension_numbers<[1], [0], [0], [1], [0, 0, 1, 1], [], []>} : vector<8x32xf32>, vector<32x32xf32>, vector<8x32xf32> -> vector<8x32xf32>
    %cst_132 = arith.constant dense<0.000000e+00> : vector<8x32xf32>
    %238 = tpu.matmul %236, %6, %cst_132 {dimension_numbers = #tpu.dot_dimension_numbers<[1], [0], [0], [1], [0, 0, 1, 1], [], []>} : vector<8x32xf32>, vector<32x32xf32>, vector<8x32xf32> -> vector<8x32xf32>
    %239 = arith.addf %237, %238 : vector<8x32xf32>
    %240 = arith.addf %239, %22 : vector<8x32xf32>
    %cst_133 = arith.constant 0.000000e+00 : f32
    %241 = vector.broadcast %cst_133 : f32 to vector<8x32xf32>
    %242 = arith.maximumf %240, %241 : vector<8x32xf32>
    %cst_134 = arith.constant dense<0.000000e+00> : vector<8x32xf32>
    %243 = tpu.matmul %242, %7, %cst_134 {dimension_numbers = #tpu.dot_dimension_numbers<[1], [0], [0], [1], [0, 0, 1, 1], [], []>} : vector<8x32xf32>, vector<32x32xf32>, vector<8x32xf32> -> vector<8x32xf32>
    %244 = arith.addf %243, %25 : vector<8x32xf32>
    %cst_135 = arith.constant 0.000000e+00 : f32
    %245 = vector.broadcast %cst_135 : f32 to vector<8x32xf32>
    %246 = arith.maximumf %244, %245 : vector<8x32xf32>
    %c0_136 = arith.constant 0 : index
    %c0_137 = arith.constant 0 : index
    %c0_138 = arith.constant 0 : index
    %247 = vector.load %arg20[%c0_136, %c0_137, %c0_138] : memref<4x8x2xf32, #tpu.memory_space<vmem>>, vector<1x8x2xf32>
    %248 = vector.shape_cast %247 : vector<1x8x2xf32> to vector<8x2xf32>
    %249 = vector.shape_cast %70 : vector<8x2xf32> to vector<1x8x2xf32>
    tpu.vector_store %arg20[%c0_136, %c0_137, %c0_138], %249 {strides = array<i32>} : memref<4x8x2xf32, #tpu.memory_space<vmem>>, vector<1x8x2xf32>,
    %c0_139 = arith.constant 0 : index
    %c0_140 = arith.constant 0 : index
    %c0_141 = arith.constant 0 : index
    %250 = vector.load %arg21[%c0_139, %c0_140, %c0_141] : memref<4x8x2xf32, #tpu.memory_space<vmem>>, vector<1x8x2xf32>
    %251 = vector.shape_cast %250 : vector<1x8x2xf32> to vector<8x2xf32>
    %252 = vector.shape_cast %71 : vector<8x2xf32> to vector<1x8x2xf32>
    tpu.vector_store %arg21[%c0_139, %c0_140, %c0_141], %252 {strides = array<i32>} : memref<4x8x2xf32, #tpu.memory_space<vmem>>, vector<1x8x2xf32>,
    %cst_142 = arith.constant dense<0.000000e+00> : vector<8x16xf32>
    %253 = tpu.matmul %70, %0, %cst_142 {dimension_numbers = #tpu.dot_dimension_numbers<[1], [0], [0], [1], [0, 0, 1, 1], [], []>} : vector<8x2xf32>, vector<2x16xf32>, vector<8x16xf32> -> vector<8x16xf32>
    %254 = arith.addf %253, %10 : vector<8x16xf32>
    %cst_143 = arith.constant 0.000000e+00 : f32
    %cst_144 = arith.constant 6.000000e+00 : f32
    %255 = vector.broadcast %cst_143 : f32 to vector<8x16xf32>
    %256 = arith.maximumf %255, %254 : vector<8x16xf32>
    %257 = vector.broadcast %cst_144 : f32 to vector<8x16xf32>
    %258 = arith.minimumf %257, %256 : vector<8x16xf32>
    %cst_145 = arith.constant dense<0.000000e+00> : vector<8x128xf32>
    %259 = tpu.matmul %258, %1, %cst_145 {dimension_numbers = #tpu.dot_dimension_numbers<[1], [0], [0], [1], [0, 0, 1, 1], [], []>} : vector<8x16xf32>, vector<16x128xf32>, vector<8x128xf32> -> vector<8x128xf32>
    %cst_146 = arith.constant dense<0.000000e+00> : vector<8x128xf32>
    %260 = tpu.matmul %246, %2, %cst_146 {dimension_numbers = #tpu.dot_dimension_numbers<[1], [0], [0], [1], [0, 0, 1, 1], [], []>} : vector<8x32xf32>, vector<32x128xf32>, vector<8x128xf32> -> vector<8x128xf32>
    %261 = arith.addf %259, %260 : vector<8x128xf32>
    %262 = arith.addf %261, %13 : vector<8x128xf32>
    %263 = vector.extract_strided_slice %262 {offsets = [0, 0], sizes = [8, 32], strides = [1, 1]} : vector<8x128xf32> to vector<8x32xf32>
    %264 = arith.negf %263 : vector<8x32xf32>
    %265 = math.exp %264 : vector<8x32xf32>
    %cst_147 = arith.constant 1.000000e+00 : f32
    %266 = vector.broadcast %cst_147 : f32 to vector<8x32xf32>
    %267 = arith.addf %266, %265 : vector<8x32xf32>
    %268 = arith.divf %266, %267 : vector<8x32xf32>
    %269 = vector.extract_strided_slice %262 {offsets = [0, 32], sizes = [8, 32], strides = [1, 1]} : vector<8x128xf32> to vector<8x32xf32>
    %270 = arith.negf %269 : vector<8x32xf32>
    %271 = math.exp %270 : vector<8x32xf32>
    %cst_148 = arith.constant 1.000000e+00 : f32
    %272 = vector.broadcast %cst_148 : f32 to vector<8x32xf32>
    %273 = arith.addf %272, %271 : vector<8x32xf32>
    %274 = arith.divf %272, %273 : vector<8x32xf32>
    %275 = vector.extract_strided_slice %262 {offsets = [0, 64], sizes = [8, 32], strides = [1, 1]} : vector<8x128xf32> to vector<8x32xf32>
    %276 = math.tanh %275 : vector<8x32xf32>
    %277 = vector.extract_strided_slice %262 {offsets = [0, 96], sizes = [8, 32], strides = [1, 1]} : vector<8x128xf32> to vector<8x32xf32>
    %278 = arith.negf %277 : vector<8x32xf32>
    %279 = math.exp %278 : vector<8x32xf32>
    %cst_149 = arith.constant 1.000000e+00 : f32
    %280 = vector.broadcast %cst_149 : f32 to vector<8x32xf32>
    %281 = arith.addf %280, %279 : vector<8x32xf32>
    %282 = arith.divf %280, %281 : vector<8x32xf32>
    %283 = arith.mulf %274, %66 : vector<8x32xf32>
    %284 = arith.mulf %268, %276 : vector<8x32xf32>
    %285 = arith.addf %283, %284 : vector<8x32xf32>
    %286 = math.tanh %285 : vector<8x32xf32>
    %287 = arith.mulf %282, %286 : vector<8x32xf32>
    %cst_150 = arith.constant dense<0.000000e+00> : vector<8x2xf32>
    %288 = tpu.matmul %287, %3, %cst_150 {dimension_numbers = #tpu.dot_dimension_numbers<[1], [0], [0], [1], [0, 0, 1, 1], [], []>} : vector<8x32xf32>, vector<32x2xf32>, vector<8x2xf32> -> vector<8x2xf32>
    %289 = arith.addf %288, %16 : vector<8x2xf32>
    %290 = arith.addf %289, %71 : vector<8x2xf32>
    %291 = vector.extract_strided_slice %290 {offsets = [0, 0], sizes = [8, 1], strides = [1, 1]} : vector<8x2xf32> to vector<8x1xf32>
    %292 = vector.extract_strided_slice %290 {offsets = [0, 1], sizes = [8, 1], strides = [1, 1]} : vector<8x2xf32> to vector<8x1xf32>
    %cst_151 = arith.constant dense<0.000000e+00> : vector<8x8xf32>
    %293 = tpu.matmul %29, %291, %cst_151 {dimension_numbers = #tpu.dot_dimension_numbers<[1], [1], [0], [0], [0, 0, 1, 0], [], []>} : vector<8x1xf32>, vector<8x1xf32>, vector<8x8xf32> -> vector<8x8xf32>
    %cst_152 = arith.constant dense<0.000000e+00> : vector<8x8xf32>
    %294 = tpu.matmul %29, %292, %cst_152 {dimension_numbers = #tpu.dot_dimension_numbers<[1], [1], [0], [0], [0, 0, 1, 0], [], []>} : vector<8x1xf32>, vector<8x1xf32>, vector<8x8xf32> -> vector<8x8xf32>
    %295 = vector.broadcast %291 : vector<8x1xf32> to vector<8x8xf32>
    %296 = arith.subf %293, %295 : vector<8x8xf32>
    %297 = vector.broadcast %292 : vector<8x1xf32> to vector<8x8xf32>
    %298 = arith.subf %294, %297 : vector<8x8xf32>
    %cst_153 = arith.constant 1.000000e+00 : f32
    %299 = vector.broadcast %cst_153 : f32 to vector<8x8xf32>
    %300 = arith.cmpf oge, %296, %299 : vector<8x8xf32>
    %cst_154 = arith.constant -1.000000e+00 : f32
    %301 = vector.broadcast %cst_154 : f32 to vector<8x8xf32>
    %302 = arith.cmpf ole, %296, %301 : vector<8x8xf32>
    %303 = arith.ori %300, %302 : vector<8x8xi1>
    %cst_155 = arith.constant 1.000000e+00 : f32
    %304 = vector.broadcast %cst_155 : f32 to vector<8x8xf32>
    %305 = arith.cmpf oge, %298, %304 : vector<8x8xf32>
    %cst_156 = arith.constant -1.000000e+00 : f32
    %306 = vector.broadcast %cst_156 : f32 to vector<8x8xf32>
    %307 = arith.cmpf ole, %298, %306 : vector<8x8xf32>
    %308 = arith.ori %305, %307 : vector<8x8xi1>
    %309 = arith.ori %303, %308 : vector<8x8xi1>
    %cst_157 = arith.constant 1.000000e+00 : f32
    %310 = vector.broadcast %cst_157 : f32 to vector<8x8xf32>
    %311 = arith.addf %296, %310 : vector<8x8xf32>
    %cst_158 = arith.constant 2.000000e+00 : f32
    %312 = vector.broadcast %cst_158 : f32 to vector<8x8xf32>
    %313 = arith.divf %311, %312 : vector<8x8xf32>
    %cst_159 = arith.constant 4.000000e+00 : f32
    %314 = vector.broadcast %cst_159 : f32 to vector<8x8xf32>
    %315 = arith.mulf %313, %314 : vector<8x8xf32>
    %316 = math.floor %315 : vector<8x8xf32>
    %cst_160 = arith.constant 4.000000e+00 : f32
    %317 = vector.broadcast %cst_160 : f32 to vector<8x8xf32>
    %318 = arith.cmpf oeq, %316, %317 : vector<8x8xf32>
    %cst_161 = arith.constant 1.000000e+00 : f32
    %319 = vector.broadcast %cst_161 : f32 to vector<8x8xf32>
    %320 = arith.subf %316, %319 : vector<8x8xf32>
    %321 = arith.select %318, %320, %316 : vector<8x8xi1>, vector<8x8xf32>
    %cst_162 = arith.constant 1.000000e+00 : f32
    %322 = vector.broadcast %cst_162 : f32 to vector<8x8xf32>
    %323 = arith.subf %322, %298 : vector<8x8xf32>
    %cst_163 = arith.constant 2.000000e+00 : f32
    %324 = vector.broadcast %cst_163 : f32 to vector<8x8xf32>
    %325 = arith.divf %323, %324 : vector<8x8xf32>
    %cst_164 = arith.constant 4.000000e+00 : f32
    %326 = vector.broadcast %cst_164 : f32 to vector<8x8xf32>
    %327 = arith.mulf %325, %326 : vector<8x8xf32>
    %328 = math.floor %327 : vector<8x8xf32>
    %cst_165 = arith.constant 4.000000e+00 : f32
    %329 = vector.broadcast %cst_165 : f32 to vector<8x8xf32>
    %330 = arith.cmpf oeq, %328, %329 : vector<8x8xf32>
    %cst_166 = arith.constant 1.000000e+00 : f32
    %331 = vector.broadcast %cst_166 : f32 to vector<8x8xf32>
    %332 = arith.subf %328, %331 : vector<8x8xf32>
    %333 = arith.select %330, %332, %328 : vector<8x8xi1>, vector<8x8xf32>
    %cst_167 = arith.constant 4.000000e+00 : f32
    %334 = vector.broadcast %cst_167 : f32 to vector<8x8xf32>
    %335 = arith.mulf %333, %334 : vector<8x8xf32>
    %336 = arith.addf %321, %335 : vector<8x8xf32>
    %cst_168 = arith.constant dense<true> : vector<8x8xi1>
    %337 = arith.xori %309, %cst_168 : vector<8x8xi1>
    %338 = arith.andi %28, %337 : vector<8x8xi1>
    %cst_169 = arith.constant 0.000000e+00 : f32
    %339 = vector.broadcast %cst_169 : f32 to vector<8x8xf32>
    %340 = arith.cmpf oeq, %336, %339 : vector<8x8xf32>
    %341 = arith.andi %340, %338 : vector<8x8xi1>
    %cst_170 = arith.constant 1.000000e+00 : f32
    %cst_171 = arith.constant 0.000000e+00 : f32
    %342 = vector.broadcast %cst_170 : f32 to vector<8x8xf32>
    %343 = vector.broadcast %cst_171 : f32 to vector<8x8xf32>
    %344 = arith.select %341, %342, %343 : vector<8x8xi1>, vector<8x8xf32>
    %cst_172 = arith.constant dense<0.000000e+00> : vector<8x32xf32>
    %345 = tpu.matmul %344, %287, %cst_172 {dimension_numbers = #tpu.dot_dimension_numbers<[1], [0], [0], [1], [0, 0, 1, 1], [], []>} : vector<8x8xf32>, vector<8x32xf32>, vector<8x32xf32> -> vector<8x32xf32>
    %cst_173 = arith.constant 1.000000e+00 : f32
    %346 = vector.broadcast %cst_173 : f32 to vector<8x8xf32>
    %347 = arith.cmpf oeq, %336, %346 : vector<8x8xf32>
    %348 = arith.andi %347, %338 : vector<8x8xi1>
    %cst_174 = arith.constant 1.000000e+00 : f32
    %cst_175 = arith.constant 0.000000e+00 : f32
    %349 = vector.broadcast %cst_174 : f32 to vector<8x8xf32>
    %350 = vector.broadcast %cst_175 : f32 to vector<8x8xf32>
    %351 = arith.select %348, %349, %350 : vector<8x8xi1>, vector<8x8xf32>
    %cst_176 = arith.constant dense<0.000000e+00> : vector<8x32xf32>
    %352 = tpu.matmul %351, %287, %cst_176 {dimension_numbers = #tpu.dot_dimension_numbers<[1], [0], [0], [1], [0, 0, 1, 1], [], []>} : vector<8x8xf32>, vector<8x32xf32>, vector<8x32xf32> -> vector<8x32xf32>
    %cst_177 = arith.constant 2.000000e+00 : f32
    %353 = vector.broadcast %cst_177 : f32 to vector<8x8xf32>
    %354 = arith.cmpf oeq, %336, %353 : vector<8x8xf32>
    %355 = arith.andi %354, %338 : vector<8x8xi1>
    %cst_178 = arith.constant 1.000000e+00 : f32
    %cst_179 = arith.constant 0.000000e+00 : f32
    %356 = vector.broadcast %cst_178 : f32 to vector<8x8xf32>
    %357 = vector.broadcast %cst_179 : f32 to vector<8x8xf32>
    %358 = arith.select %355, %356, %357 : vector<8x8xi1>, vector<8x8xf32>
    %cst_180 = arith.constant dense<0.000000e+00> : vector<8x32xf32>
    %359 = tpu.matmul %358, %287, %cst_180 {dimension_numbers = #tpu.dot_dimension_numbers<[1], [0], [0], [1], [0, 0, 1, 1], [], []>} : vector<8x8xf32>, vector<8x32xf32>, vector<8x32xf32> -> vector<8x32xf32>
    %cst_181 = arith.constant 3.000000e+00 : f32
    %360 = vector.broadcast %cst_181 : f32 to vector<8x8xf32>
    %361 = arith.cmpf oeq, %336, %360 : vector<8x8xf32>
    %362 = arith.andi %361, %338 : vector<8x8xi1>
    %cst_182 = arith.constant 1.000000e+00 : f32
    %cst_183 = arith.constant 0.000000e+00 : f32
    %363 = vector.broadcast %cst_182 : f32 to vector<8x8xf32>
    %364 = vector.broadcast %cst_183 : f32 to vector<8x8xf32>
    %365 = arith.select %362, %363, %364 : vector<8x8xi1>, vector<8x8xf32>
    %cst_184 = arith.constant dense<0.000000e+00> : vector<8x32xf32>
    %366 = tpu.matmul %365, %287, %cst_184 {dimension_numbers = #tpu.dot_dimension_numbers<[1], [0], [0], [1], [0, 0, 1, 1], [], []>} : vector<8x8xf32>, vector<8x32xf32>, vector<8x32xf32> -> vector<8x32xf32>
    %cst_185 = arith.constant 4.000000e+00 : f32
    %367 = vector.broadcast %cst_185 : f32 to vector<8x8xf32>
    %368 = arith.cmpf oeq, %336, %367 : vector<8x8xf32>
    %369 = arith.andi %368, %338 : vector<8x8xi1>
    %cst_186 = arith.constant 1.000000e+00 : f32
    %cst_187 = arith.constant 0.000000e+00 : f32
    %370 = vector.broadcast %cst_186 : f32 to vector<8x8xf32>
    %371 = vector.broadcast %cst_187 : f32 to vector<8x8xf32>
    %372 = arith.select %369, %370, %371 : vector<8x8xi1>, vector<8x8xf32>
    %cst_188 = arith.constant dense<0.000000e+00> : vector<8x32xf32>
    %373 = tpu.matmul %372, %287, %cst_188 {dimension_numbers = #tpu.dot_dimension_numbers<[1], [0], [0], [1], [0, 0, 1, 1], [], []>} : vector<8x8xf32>, vector<8x32xf32>, vector<8x32xf32> -> vector<8x32xf32>
    %cst_189 = arith.constant 5.000000e+00 : f32
    %374 = vector.broadcast %cst_189 : f32 to vector<8x8xf32>
    %375 = arith.cmpf oeq, %336, %374 : vector<8x8xf32>
    %376 = arith.andi %375, %338 : vector<8x8xi1>
    %cst_190 = arith.constant 1.000000e+00 : f32
    %cst_191 = arith.constant 0.000000e+00 : f32
    %377 = vector.broadcast %cst_190 : f32 to vector<8x8xf32>
    %378 = vector.broadcast %cst_191 : f32 to vector<8x8xf32>
    %379 = arith.select %376, %377, %378 : vector<8x8xi1>, vector<8x8xf32>
    %cst_192 = arith.constant dense<0.000000e+00> : vector<8x32xf32>
    %380 = tpu.matmul %379, %287, %cst_192 {dimension_numbers = #tpu.dot_dimension_numbers<[1], [0], [0], [1], [0, 0, 1, 1], [], []>} : vector<8x8xf32>, vector<8x32xf32>, vector<8x32xf32> -> vector<8x32xf32>
    %cst_193 = arith.constant 6.000000e+00 : f32
    %381 = vector.broadcast %cst_193 : f32 to vector<8x8xf32>
    %382 = arith.cmpf oeq, %336, %381 : vector<8x8xf32>
    %383 = arith.andi %382, %338 : vector<8x8xi1>
    %cst_194 = arith.constant 1.000000e+00 : f32
    %cst_195 = arith.constant 0.000000e+00 : f32
    %384 = vector.broadcast %cst_194 : f32 to vector<8x8xf32>
    %385 = vector.broadcast %cst_195 : f32 to vector<8x8xf32>
    %386 = arith.select %383, %384, %385 : vector<8x8xi1>, vector<8x8xf32>
    %cst_196 = arith.constant dense<0.000000e+00> : vector<8x32xf32>
    %387 = tpu.matmul %386, %287, %cst_196 {dimension_numbers = #tpu.dot_dimension_numbers<[1], [0], [0], [1], [0, 0, 1, 1], [], []>} : vector<8x8xf32>, vector<8x32xf32>, vector<8x32xf32> -> vector<8x32xf32>
    %cst_197 = arith.constant 7.000000e+00 : f32
    %388 = vector.broadcast %cst_197 : f32 to vector<8x8xf32>
    %389 = arith.cmpf oeq, %336, %388 : vector<8x8xf32>
    %390 = arith.andi %389, %338 : vector<8x8xi1>
    %cst_198 = arith.constant 1.000000e+00 : f32
    %cst_199 = arith.constant 0.000000e+00 : f32
    %391 = vector.broadcast %cst_198 : f32 to vector<8x8xf32>
    %392 = vector.broadcast %cst_199 : f32 to vector<8x8xf32>
    %393 = arith.select %390, %391, %392 : vector<8x8xi1>, vector<8x8xf32>
    %cst_200 = arith.constant dense<0.000000e+00> : vector<8x32xf32>
    %394 = tpu.matmul %393, %287, %cst_200 {dimension_numbers = #tpu.dot_dimension_numbers<[1], [0], [0], [1], [0, 0, 1, 1], [], []>} : vector<8x8xf32>, vector<8x32xf32>, vector<8x32xf32> -> vector<8x32xf32>
    %cst_201 = arith.constant 8.000000e+00 : f32
    %395 = vector.broadcast %cst_201 : f32 to vector<8x8xf32>
    %396 = arith.cmpf oeq, %336, %395 : vector<8x8xf32>
    %397 = arith.andi %396, %338 : vector<8x8xi1>
    %cst_202 = arith.constant 1.000000e+00 : f32
    %cst_203 = arith.constant 0.000000e+00 : f32
    %398 = vector.broadcast %cst_202 : f32 to vector<8x8xf32>
    %399 = vector.broadcast %cst_203 : f32 to vector<8x8xf32>
    %400 = arith.select %397, %398, %399 : vector<8x8xi1>, vector<8x8xf32>
    %cst_204 = arith.constant dense<0.000000e+00> : vector<8x32xf32>
    %401 = tpu.matmul %400, %287, %cst_204 {dimension_numbers = #tpu.dot_dimension_numbers<[1], [0], [0], [1], [0, 0, 1, 1], [], []>} : vector<8x8xf32>, vector<8x32xf32>, vector<8x32xf32> -> vector<8x32xf32>
    %cst_205 = arith.constant 9.000000e+00 : f32
    %402 = vector.broadcast %cst_205 : f32 to vector<8x8xf32>
    %403 = arith.cmpf oeq, %336, %402 : vector<8x8xf32>
    %404 = arith.andi %403, %338 : vector<8x8xi1>
    %cst_206 = arith.constant 1.000000e+00 : f32
    %cst_207 = arith.constant 0.000000e+00 : f32
    %405 = vector.broadcast %cst_206 : f32 to vector<8x8xf32>
    %406 = vector.broadcast %cst_207 : f32 to vector<8x8xf32>
    %407 = arith.select %404, %405, %406 : vector<8x8xi1>, vector<8x8xf32>
    %cst_208 = arith.constant dense<0.000000e+00> : vector<8x32xf32>
    %408 = tpu.matmul %407, %287, %cst_208 {dimension_numbers = #tpu.dot_dimension_numbers<[1], [0], [0], [1], [0, 0, 1, 1], [], []>} : vector<8x8xf32>, vector<8x32xf32>, vector<8x32xf32> -> vector<8x32xf32>
    %cst_209 = arith.constant 1.000000e+01 : f32
    %409 = vector.broadcast %cst_209 : f32 to vector<8x8xf32>
    %410 = arith.cmpf oeq, %336, %409 : vector<8x8xf32>
    %411 = arith.andi %410, %338 : vector<8x8xi1>
    %cst_210 = arith.constant 1.000000e+00 : f32
    %cst_211 = arith.constant 0.000000e+00 : f32
    %412 = vector.broadcast %cst_210 : f32 to vector<8x8xf32>
    %413 = vector.broadcast %cst_211 : f32 to vector<8x8xf32>
    %414 = arith.select %411, %412, %413 : vector<8x8xi1>, vector<8x8xf32>
    %cst_212 = arith.constant dense<0.000000e+00> : vector<8x32xf32>
    %415 = tpu.matmul %414, %287, %cst_212 {dimension_numbers = #tpu.dot_dimension_numbers<[1], [0], [0], [1], [0, 0, 1, 1], [], []>} : vector<8x8xf32>, vector<8x32xf32>, vector<8x32xf32> -> vector<8x32xf32>
    %cst_213 = arith.constant 1.100000e+01 : f32
    %416 = vector.broadcast %cst_213 : f32 to vector<8x8xf32>
    %417 = arith.cmpf oeq, %336, %416 : vector<8x8xf32>
    %418 = arith.andi %417, %338 : vector<8x8xi1>
    %cst_214 = arith.constant 1.000000e+00 : f32
    %cst_215 = arith.constant 0.000000e+00 : f32
    %419 = vector.broadcast %cst_214 : f32 to vector<8x8xf32>
    %420 = vector.broadcast %cst_215 : f32 to vector<8x8xf32>
    %421 = arith.select %418, %419, %420 : vector<8x8xi1>, vector<8x8xf32>
    %cst_216 = arith.constant dense<0.000000e+00> : vector<8x32xf32>
    %422 = tpu.matmul %421, %287, %cst_216 {dimension_numbers = #tpu.dot_dimension_numbers<[1], [0], [0], [1], [0, 0, 1, 1], [], []>} : vector<8x8xf32>, vector<8x32xf32>, vector<8x32xf32> -> vector<8x32xf32>
    %cst_217 = arith.constant 1.200000e+01 : f32
    %423 = vector.broadcast %cst_217 : f32 to vector<8x8xf32>
    %424 = arith.cmpf oeq, %336, %423 : vector<8x8xf32>
    %425 = arith.andi %424, %338 : vector<8x8xi1>
    %cst_218 = arith.constant 1.000000e+00 : f32
    %cst_219 = arith.constant 0.000000e+00 : f32
    %426 = vector.broadcast %cst_218 : f32 to vector<8x8xf32>
    %427 = vector.broadcast %cst_219 : f32 to vector<8x8xf32>
    %428 = arith.select %425, %426, %427 : vector<8x8xi1>, vector<8x8xf32>
    %cst_220 = arith.constant dense<0.000000e+00> : vector<8x32xf32>
    %429 = tpu.matmul %428, %287, %cst_220 {dimension_numbers = #tpu.dot_dimension_numbers<[1], [0], [0], [1], [0, 0, 1, 1], [], []>} : vector<8x8xf32>, vector<8x32xf32>, vector<8x32xf32> -> vector<8x32xf32>
    %cst_221 = arith.constant 1.300000e+01 : f32
    %430 = vector.broadcast %cst_221 : f32 to vector<8x8xf32>
    %431 = arith.cmpf oeq, %336, %430 : vector<8x8xf32>
    %432 = arith.andi %431, %338 : vector<8x8xi1>
    %cst_222 = arith.constant 1.000000e+00 : f32
    %cst_223 = arith.constant 0.000000e+00 : f32
    %433 = vector.broadcast %cst_222 : f32 to vector<8x8xf32>
    %434 = vector.broadcast %cst_223 : f32 to vector<8x8xf32>
    %435 = arith.select %432, %433, %434 : vector<8x8xi1>, vector<8x8xf32>
    %cst_224 = arith.constant dense<0.000000e+00> : vector<8x32xf32>
    %436 = tpu.matmul %435, %287, %cst_224 {dimension_numbers = #tpu.dot_dimension_numbers<[1], [0], [0], [1], [0, 0, 1, 1], [], []>} : vector<8x8xf32>, vector<8x32xf32>, vector<8x32xf32> -> vector<8x32xf32>
    %cst_225 = arith.constant 1.400000e+01 : f32
    %437 = vector.broadcast %cst_225 : f32 to vector<8x8xf32>
    %438 = arith.cmpf oeq, %336, %437 : vector<8x8xf32>
    %439 = arith.andi %438, %338 : vector<8x8xi1>
    %cst_226 = arith.constant 1.000000e+00 : f32
    %cst_227 = arith.constant 0.000000e+00 : f32
    %440 = vector.broadcast %cst_226 : f32 to vector<8x8xf32>
    %441 = vector.broadcast %cst_227 : f32 to vector<8x8xf32>
    %442 = arith.select %439, %440, %441 : vector<8x8xi1>, vector<8x8xf32>
    %cst_228 = arith.constant dense<0.000000e+00> : vector<8x32xf32>
    %443 = tpu.matmul %442, %287, %cst_228 {dimension_numbers = #tpu.dot_dimension_numbers<[1], [0], [0], [1], [0, 0, 1, 1], [], []>} : vector<8x8xf32>, vector<8x32xf32>, vector<8x32xf32> -> vector<8x32xf32>
    %cst_229 = arith.constant 1.500000e+01 : f32
    %444 = vector.broadcast %cst_229 : f32 to vector<8x8xf32>
    %445 = arith.cmpf oeq, %336, %444 : vector<8x8xf32>
    %446 = arith.andi %445, %338 : vector<8x8xi1>
    %cst_230 = arith.constant 1.000000e+00 : f32
    %cst_231 = arith.constant 0.000000e+00 : f32
    %447 = vector.broadcast %cst_230 : f32 to vector<8x8xf32>
    %448 = vector.broadcast %cst_231 : f32 to vector<8x8xf32>
    %449 = arith.select %446, %447, %448 : vector<8x8xi1>, vector<8x8xf32>
    %cst_232 = arith.constant dense<0.000000e+00> : vector<8x32xf32>
    %450 = tpu.matmul %449, %287, %cst_232 {dimension_numbers = #tpu.dot_dimension_numbers<[1], [0], [0], [1], [0, 0, 1, 1], [], []>} : vector<8x8xf32>, vector<8x32xf32>, vector<8x32xf32> -> vector<8x32xf32>
    %451 = tpu.concatenate %345, %352, %359, %366, %373, %380, %387, %394, %401, %408, %415, %422, %429, %436, %443, %450 in 1 : vector<8x32xf32>, vector<8x32xf32>, vector<8x32xf32>, vector<8x32xf32>, vector<8x32xf32>, vector<8x32xf32>, vector<8x32xf32>, vector<8x32xf32>, vector<8x32xf32>, vector<8x32xf32>, vector<8x32xf32>, vector<8x32xf32>, vector<8x32xf32>, vector<8x32xf32>, vector<8x32xf32>, vector<8x32xf32> -> vector<8x512xf32>
    %cst_233 = arith.constant dense<0.000000e+00> : vector<8x32xf32>
    %452 = tpu.matmul %451, %4, %cst_233 {dimension_numbers = #tpu.dot_dimension_numbers<[1], [0], [0], [1], [0, 0, 1, 1], [], []>} : vector<8x512xf32>, vector<512x32xf32>, vector<8x32xf32> -> vector<8x32xf32>
    %453 = arith.addf %452, %19 : vector<8x32xf32>
    %cst_234 = arith.constant 0.000000e+00 : f32
    %454 = vector.broadcast %cst_234 : f32 to vector<8x32xf32>
    %455 = arith.maximumf %453, %454 : vector<8x32xf32>
    %cst_235 = arith.constant dense<0.000000e+00> : vector<8x32xf32>
    %456 = tpu.matmul %287, %5, %cst_235 {dimension_numbers = #tpu.dot_dimension_numbers<[1], [0], [0], [1], [0, 0, 1, 1], [], []>} : vector<8x32xf32>, vector<32x32xf32>, vector<8x32xf32> -> vector<8x32xf32>
    %cst_236 = arith.constant dense<0.000000e+00> : vector<8x32xf32>
    %457 = tpu.matmul %455, %6, %cst_236 {dimension_numbers = #tpu.dot_dimension_numbers<[1], [0], [0], [1], [0, 0, 1, 1], [], []>} : vector<8x32xf32>, vector<32x32xf32>, vector<8x32xf32> -> vector<8x32xf32>
    %458 = arith.addf %456, %457 : vector<8x32xf32>
    %459 = arith.addf %458, %22 : vector<8x32xf32>
    %cst_237 = arith.constant 0.000000e+00 : f32
    %460 = vector.broadcast %cst_237 : f32 to vector<8x32xf32>
    %461 = arith.maximumf %459, %460 : vector<8x32xf32>
    %cst_238 = arith.constant dense<0.000000e+00> : vector<8x32xf32>
    %462 = tpu.matmul %461, %7, %cst_238 {dimension_numbers = #tpu.dot_dimension_numbers<[1], [0], [0], [1], [0, 0, 1, 1], [], []>} : vector<8x32xf32>, vector<32x32xf32>, vector<8x32xf32> -> vector<8x32xf32>
    %463 = arith.addf %462, %25 : vector<8x32xf32>
    %cst_239 = arith.constant 0.000000e+00 : f32
    %464 = vector.broadcast %cst_239 : f32 to vector<8x32xf32>
    %465 = arith.maximumf %463, %464 : vector<8x32xf32>
    %c1 = arith.constant 1 : index
    %c0_240 = arith.constant 0 : index
    %c0_241 = arith.constant 0 : index
    %466 = vector.load %arg20[%c1, %c0_240, %c0_241] : memref<4x8x2xf32, #tpu.memory_space<vmem>>, vector<1x8x2xf32>
    %467 = vector.shape_cast %466 : vector<1x8x2xf32> to vector<8x2xf32>
    %468 = vector.shape_cast %289 : vector<8x2xf32> to vector<1x8x2xf32>
    tpu.vector_store %arg20[%c1, %c0_240, %c0_241], %468 {strides = array<i32>} : memref<4x8x2xf32, #tpu.memory_space<vmem>>, vector<1x8x2xf32>,
    %c1_242 = arith.constant 1 : index
    %c0_243 = arith.constant 0 : index
    %c0_244 = arith.constant 0 : index
    %469 = vector.load %arg21[%c1_242, %c0_243, %c0_244] : memref<4x8x2xf32, #tpu.memory_space<vmem>>, vector<1x8x2xf32>
    %470 = vector.shape_cast %469 : vector<1x8x2xf32> to vector<8x2xf32>
    %471 = vector.shape_cast %290 : vector<8x2xf32> to vector<1x8x2xf32>
    tpu.vector_store %arg21[%c1_242, %c0_243, %c0_244], %471 {strides = array<i32>} : memref<4x8x2xf32, #tpu.memory_space<vmem>>, vector<1x8x2xf32>,
    %cst_245 = arith.constant dense<0.000000e+00> : vector<8x16xf32>
    %472 = tpu.matmul %289, %0, %cst_245 {dimension_numbers = #tpu.dot_dimension_numbers<[1], [0], [0], [1], [0, 0, 1, 1], [], []>} : vector<8x2xf32>, vector<2x16xf32>, vector<8x16xf32> -> vector<8x16xf32>
    %473 = arith.addf %472, %10 : vector<8x16xf32>
    %cst_246 = arith.constant 0.000000e+00 : f32
    %cst_247 = arith.constant 6.000000e+00 : f32
    %474 = vector.broadcast %cst_246 : f32 to vector<8x16xf32>
    %475 = arith.maximumf %474, %473 : vector<8x16xf32>
    %476 = vector.broadcast %cst_247 : f32 to vector<8x16xf32>
    %477 = arith.minimumf %476, %475 : vector<8x16xf32>
    %cst_248 = arith.constant dense<0.000000e+00> : vector<8x128xf32>
    %478 = tpu.matmul %477, %1, %cst_248 {dimension_numbers = #tpu.dot_dimension_numbers<[1], [0], [0], [1], [0, 0, 1, 1], [], []>} : vector<8x16xf32>, vector<16x128xf32>, vector<8x128xf32> -> vector<8x128xf32>
    %cst_249 = arith.constant dense<0.000000e+00> : vector<8x128xf32>
    %479 = tpu.matmul %465, %2, %cst_249 {dimension_numbers = #tpu.dot_dimension_numbers<[1], [0], [0], [1], [0, 0, 1, 1], [], []>} : vector<8x32xf32>, vector<32x128xf32>, vector<8x128xf32> -> vector<8x128xf32>
    %480 = arith.addf %478, %479 : vector<8x128xf32>
    %481 = arith.addf %480, %13 : vector<8x128xf32>
    %482 = vector.extract_strided_slice %481 {offsets = [0, 0], sizes = [8, 32], strides = [1, 1]} : vector<8x128xf32> to vector<8x32xf32>
    %483 = arith.negf %482 : vector<8x32xf32>
    %484 = math.exp %483 : vector<8x32xf32>
    %cst_250 = arith.constant 1.000000e+00 : f32
    %485 = vector.broadcast %cst_250 : f32 to vector<8x32xf32>
    %486 = arith.addf %485, %484 : vector<8x32xf32>
    %487 = arith.divf %485, %486 : vector<8x32xf32>
    %488 = vector.extract_strided_slice %481 {offsets = [0, 32], sizes = [8, 32], strides = [1, 1]} : vector<8x128xf32> to vector<8x32xf32>
    %489 = arith.negf %488 : vector<8x32xf32>
    %490 = math.exp %489 : vector<8x32xf32>
    %cst_251 = arith.constant 1.000000e+00 : f32
    %491 = vector.broadcast %cst_251 : f32 to vector<8x32xf32>
    %492 = arith.addf %491, %490 : vector<8x32xf32>
    %493 = arith.divf %491, %492 : vector<8x32xf32>
    %494 = vector.extract_strided_slice %481 {offsets = [0, 64], sizes = [8, 32], strides = [1, 1]} : vector<8x128xf32> to vector<8x32xf32>
    %495 = math.tanh %494 : vector<8x32xf32>
    %496 = vector.extract_strided_slice %481 {offsets = [0, 96], sizes = [8, 32], strides = [1, 1]} : vector<8x128xf32> to vector<8x32xf32>
    %497 = arith.negf %496 : vector<8x32xf32>
    %498 = math.exp %497 : vector<8x32xf32>
    %cst_252 = arith.constant 1.000000e+00 : f32
    %499 = vector.broadcast %cst_252 : f32 to vector<8x32xf32>
    %500 = arith.addf %499, %498 : vector<8x32xf32>
    %501 = arith.divf %499, %500 : vector<8x32xf32>
    %502 = arith.mulf %493, %285 : vector<8x32xf32>
    %503 = arith.mulf %487, %495 : vector<8x32xf32>
    %504 = arith.addf %502, %503 : vector<8x32xf32>
    %505 = math.tanh %504 : vector<8x32xf32>
    %506 = arith.mulf %501, %505 : vector<8x32xf32>
    %cst_253 = arith.constant dense<0.000000e+00> : vector<8x2xf32>
    %507 = tpu.matmul %506, %3, %cst_253 {dimension_numbers = #tpu.dot_dimension_numbers<[1], [0], [0], [1], [0, 0, 1, 1], [], []>} : vector<8x32xf32>, vector<32x2xf32>, vector<8x2xf32> -> vector<8x2xf32>
    %508 = arith.addf %507, %16 : vector<8x2xf32>
    %509 = arith.addf %508, %290 : vector<8x2xf32>
    %510 = vector.extract_strided_slice %509 {offsets = [0, 0], sizes = [8, 1], strides = [1, 1]} : vector<8x2xf32> to vector<8x1xf32>
    %511 = vector.extract_strided_slice %509 {offsets = [0, 1], sizes = [8, 1], strides = [1, 1]} : vector<8x2xf32> to vector<8x1xf32>
    %cst_254 = arith.constant dense<0.000000e+00> : vector<8x8xf32>
    %512 = tpu.matmul %29, %510, %cst_254 {dimension_numbers = #tpu.dot_dimension_numbers<[1], [1], [0], [0], [0, 0, 1, 0], [], []>} : vector<8x1xf32>, vector<8x1xf32>, vector<8x8xf32> -> vector<8x8xf32>
    %cst_255 = arith.constant dense<0.000000e+00> : vector<8x8xf32>
    %513 = tpu.matmul %29, %511, %cst_255 {dimension_numbers = #tpu.dot_dimension_numbers<[1], [1], [0], [0], [0, 0, 1, 0], [], []>} : vector<8x1xf32>, vector<8x1xf32>, vector<8x8xf32> -> vector<8x8xf32>
    %514 = vector.broadcast %510 : vector<8x1xf32> to vector<8x8xf32>
    %515 = arith.subf %512, %514 : vector<8x8xf32>
    %516 = vector.broadcast %511 : vector<8x1xf32> to vector<8x8xf32>
    %517 = arith.subf %513, %516 : vector<8x8xf32>
    %cst_256 = arith.constant 1.000000e+00 : f32
    %518 = vector.broadcast %cst_256 : f32 to vector<8x8xf32>
    %519 = arith.cmpf oge, %515, %518 : vector<8x8xf32>
    %cst_257 = arith.constant -1.000000e+00 : f32
    %520 = vector.broadcast %cst_257 : f32 to vector<8x8xf32>
    %521 = arith.cmpf ole, %515, %520 : vector<8x8xf32>
    %522 = arith.ori %519, %521 : vector<8x8xi1>
    %cst_258 = arith.constant 1.000000e+00 : f32
    %523 = vector.broadcast %cst_258 : f32 to vector<8x8xf32>
    %524 = arith.cmpf oge, %517, %523 : vector<8x8xf32>
    %cst_259 = arith.constant -1.000000e+00 : f32
    %525 = vector.broadcast %cst_259 : f32 to vector<8x8xf32>
    %526 = arith.cmpf ole, %517, %525 : vector<8x8xf32>
    %527 = arith.ori %524, %526 : vector<8x8xi1>
    %528 = arith.ori %522, %527 : vector<8x8xi1>
    %cst_260 = arith.constant 1.000000e+00 : f32
    %529 = vector.broadcast %cst_260 : f32 to vector<8x8xf32>
    %530 = arith.addf %515, %529 : vector<8x8xf32>
    %cst_261 = arith.constant 2.000000e+00 : f32
    %531 = vector.broadcast %cst_261 : f32 to vector<8x8xf32>
    %532 = arith.divf %530, %531 : vector<8x8xf32>
    %cst_262 = arith.constant 4.000000e+00 : f32
    %533 = vector.broadcast %cst_262 : f32 to vector<8x8xf32>
    %534 = arith.mulf %532, %533 : vector<8x8xf32>
    %535 = math.floor %534 : vector<8x8xf32>
    %cst_263 = arith.constant 4.000000e+00 : f32
    %536 = vector.broadcast %cst_263 : f32 to vector<8x8xf32>
    %537 = arith.cmpf oeq, %535, %536 : vector<8x8xf32>
    %cst_264 = arith.constant 1.000000e+00 : f32
    %538 = vector.broadcast %cst_264 : f32 to vector<8x8xf32>
    %539 = arith.subf %535, %538 : vector<8x8xf32>
    %540 = arith.select %537, %539, %535 : vector<8x8xi1>, vector<8x8xf32>
    %cst_265 = arith.constant 1.000000e+00 : f32
    %541 = vector.broadcast %cst_265 : f32 to vector<8x8xf32>
    %542 = arith.subf %541, %517 : vector<8x8xf32>
    %cst_266 = arith.constant 2.000000e+00 : f32
    %543 = vector.broadcast %cst_266 : f32 to vector<8x8xf32>
    %544 = arith.divf %542, %543 : vector<8x8xf32>
    %cst_267 = arith.constant 4.000000e+00 : f32
    %545 = vector.broadcast %cst_267 : f32 to vector<8x8xf32>
    %546 = arith.mulf %544, %545 : vector<8x8xf32>
    %547 = math.floor %546 : vector<8x8xf32>
    %cst_268 = arith.constant 4.000000e+00 : f32
    %548 = vector.broadcast %cst_268 : f32 to vector<8x8xf32>
    %549 = arith.cmpf oeq, %547, %548 : vector<8x8xf32>
    %cst_269 = arith.constant 1.000000e+00 : f32
    %550 = vector.broadcast %cst_269 : f32 to vector<8x8xf32>
    %551 = arith.subf %547, %550 : vector<8x8xf32>
    %552 = arith.select %549, %551, %547 : vector<8x8xi1>, vector<8x8xf32>
    %cst_270 = arith.constant 4.000000e+00 : f32
    %553 = vector.broadcast %cst_270 : f32 to vector<8x8xf32>
    %554 = arith.mulf %552, %553 : vector<8x8xf32>
    %555 = arith.addf %540, %554 : vector<8x8xf32>
    %cst_271 = arith.constant dense<true> : vector<8x8xi1>
    %556 = arith.xori %528, %cst_271 : vector<8x8xi1>
    %557 = arith.andi %28, %556 : vector<8x8xi1>
    %cst_272 = arith.constant 0.000000e+00 : f32
    %558 = vector.broadcast %cst_272 : f32 to vector<8x8xf32>
    %559 = arith.cmpf oeq, %555, %558 : vector<8x8xf32>
    %560 = arith.andi %559, %557 : vector<8x8xi1>
    %cst_273 = arith.constant 1.000000e+00 : f32
    %cst_274 = arith.constant 0.000000e+00 : f32
    %561 = vector.broadcast %cst_273 : f32 to vector<8x8xf32>
    %562 = vector.broadcast %cst_274 : f32 to vector<8x8xf32>
    %563 = arith.select %560, %561, %562 : vector<8x8xi1>, vector<8x8xf32>
    %cst_275 = arith.constant dense<0.000000e+00> : vector<8x32xf32>
    %564 = tpu.matmul %563, %506, %cst_275 {dimension_numbers = #tpu.dot_dimension_numbers<[1], [0], [0], [1], [0, 0, 1, 1], [], []>} : vector<8x8xf32>, vector<8x32xf32>, vector<8x32xf32> -> vector<8x32xf32>
    %cst_276 = arith.constant 1.000000e+00 : f32
    %565 = vector.broadcast %cst_276 : f32 to vector<8x8xf32>
    %566 = arith.cmpf oeq, %555, %565 : vector<8x8xf32>
    %567 = arith.andi %566, %557 : vector<8x8xi1>
    %cst_277 = arith.constant 1.000000e+00 : f32
    %cst_278 = arith.constant 0.000000e+00 : f32
    %568 = vector.broadcast %cst_277 : f32 to vector<8x8xf32>
    %569 = vector.broadcast %cst_278 : f32 to vector<8x8xf32>
    %570 = arith.select %567, %568, %569 : vector<8x8xi1>, vector<8x8xf32>
    %cst_279 = arith.constant dense<0.000000e+00> : vector<8x32xf32>
    %571 = tpu.matmul %570, %506, %cst_279 {dimension_numbers = #tpu.dot_dimension_numbers<[1], [0], [0], [1], [0, 0, 1, 1], [], []>} : vector<8x8xf32>, vector<8x32xf32>, vector<8x32xf32> -> vector<8x32xf32>
    %cst_280 = arith.constant 2.000000e+00 : f32
    %572 = vector.broadcast %cst_280 : f32 to vector<8x8xf32>
    %573 = arith.cmpf oeq, %555, %572 : vector<8x8xf32>
    %574 = arith.andi %573, %557 : vector<8x8xi1>
    %cst_281 = arith.constant 1.000000e+00 : f32
    %cst_282 = arith.constant 0.000000e+00 : f32
    %575 = vector.broadcast %cst_281 : f32 to vector<8x8xf32>
    %576 = vector.broadcast %cst_282 : f32 to vector<8x8xf32>
    %577 = arith.select %574, %575, %576 : vector<8x8xi1>, vector<8x8xf32>
    %cst_283 = arith.constant dense<0.000000e+00> : vector<8x32xf32>
    %578 = tpu.matmul %577, %506, %cst_283 {dimension_numbers = #tpu.dot_dimension_numbers<[1], [0], [0], [1], [0, 0, 1, 1], [], []>} : vector<8x8xf32>, vector<8x32xf32>, vector<8x32xf32> -> vector<8x32xf32>
    %cst_284 = arith.constant 3.000000e+00 : f32
    %579 = vector.broadcast %cst_284 : f32 to vector<8x8xf32>
    %580 = arith.cmpf oeq, %555, %579 : vector<8x8xf32>
    %581 = arith.andi %580, %557 : vector<8x8xi1>
    %cst_285 = arith.constant 1.000000e+00 : f32
    %cst_286 = arith.constant 0.000000e+00 : f32
    %582 = vector.broadcast %cst_285 : f32 to vector<8x8xf32>
    %583 = vector.broadcast %cst_286 : f32 to vector<8x8xf32>
    %584 = arith.select %581, %582, %583 : vector<8x8xi1>, vector<8x8xf32>
    %cst_287 = arith.constant dense<0.000000e+00> : vector<8x32xf32>
    %585 = tpu.matmul %584, %506, %cst_287 {dimension_numbers = #tpu.dot_dimension_numbers<[1], [0], [0], [1], [0, 0, 1, 1], [], []>} : vector<8x8xf32>, vector<8x32xf32>, vector<8x32xf32> -> vector<8x32xf32>
    %cst_288 = arith.constant 4.000000e+00 : f32
    %586 = vector.broadcast %cst_288 : f32 to vector<8x8xf32>
    %587 = arith.cmpf oeq, %555, %586 : vector<8x8xf32>
    %588 = arith.andi %587, %557 : vector<8x8xi1>
    %cst_289 = arith.constant 1.000000e+00 : f32
    %cst_290 = arith.constant 0.000000e+00 : f32
    %589 = vector.broadcast %cst_289 : f32 to vector<8x8xf32>
    %590 = vector.broadcast %cst_290 : f32 to vector<8x8xf32>
    %591 = arith.select %588, %589, %590 : vector<8x8xi1>, vector<8x8xf32>
    %cst_291 = arith.constant dense<0.000000e+00> : vector<8x32xf32>
    %592 = tpu.matmul %591, %506, %cst_291 {dimension_numbers = #tpu.dot_dimension_numbers<[1], [0], [0], [1], [0, 0, 1, 1], [], []>} : vector<8x8xf32>, vector<8x32xf32>, vector<8x32xf32> -> vector<8x32xf32>
    %cst_292 = arith.constant 5.000000e+00 : f32
    %593 = vector.broadcast %cst_292 : f32 to vector<8x8xf32>
    %594 = arith.cmpf oeq, %555, %593 : vector<8x8xf32>
    %595 = arith.andi %594, %557 : vector<8x8xi1>
    %cst_293 = arith.constant 1.000000e+00 : f32
    %cst_294 = arith.constant 0.000000e+00 : f32
    %596 = vector.broadcast %cst_293 : f32 to vector<8x8xf32>
    %597 = vector.broadcast %cst_294 : f32 to vector<8x8xf32>
    %598 = arith.select %595, %596, %597 : vector<8x8xi1>, vector<8x8xf32>
    %cst_295 = arith.constant dense<0.000000e+00> : vector<8x32xf32>
    %599 = tpu.matmul %598, %506, %cst_295 {dimension_numbers = #tpu.dot_dimension_numbers<[1], [0], [0], [1], [0, 0, 1, 1], [], []>} : vector<8x8xf32>, vector<8x32xf32>, vector<8x32xf32> -> vector<8x32xf32>
    %cst_296 = arith.constant 6.000000e+00 : f32
    %600 = vector.broadcast %cst_296 : f32 to vector<8x8xf32>
    %601 = arith.cmpf oeq, %555, %600 : vector<8x8xf32>
    %602 = arith.andi %601, %557 : vector<8x8xi1>
    %cst_297 = arith.constant 1.000000e+00 : f32
    %cst_298 = arith.constant 0.000000e+00 : f32
    %603 = vector.broadcast %cst_297 : f32 to vector<8x8xf32>
    %604 = vector.broadcast %cst_298 : f32 to vector<8x8xf32>
    %605 = arith.select %602, %603, %604 : vector<8x8xi1>, vector<8x8xf32>
    %cst_299 = arith.constant dense<0.000000e+00> : vector<8x32xf32>
    %606 = tpu.matmul %605, %506, %cst_299 {dimension_numbers = #tpu.dot_dimension_numbers<[1], [0], [0], [1], [0, 0, 1, 1], [], []>} : vector<8x8xf32>, vector<8x32xf32>, vector<8x32xf32> -> vector<8x32xf32>
    %cst_300 = arith.constant 7.000000e+00 : f32
    %607 = vector.broadcast %cst_300 : f32 to vector<8x8xf32>
    %608 = arith.cmpf oeq, %555, %607 : vector<8x8xf32>
    %609 = arith.andi %608, %557 : vector<8x8xi1>
    %cst_301 = arith.constant 1.000000e+00 : f32
    %cst_302 = arith.constant 0.000000e+00 : f32
    %610 = vector.broadcast %cst_301 : f32 to vector<8x8xf32>
    %611 = vector.broadcast %cst_302 : f32 to vector<8x8xf32>
    %612 = arith.select %609, %610, %611 : vector<8x8xi1>, vector<8x8xf32>
    %cst_303 = arith.constant dense<0.000000e+00> : vector<8x32xf32>
    %613 = tpu.matmul %612, %506, %cst_303 {dimension_numbers = #tpu.dot_dimension_numbers<[1], [0], [0], [1], [0, 0, 1, 1], [], []>} : vector<8x8xf32>, vector<8x32xf32>, vector<8x32xf32> -> vector<8x32xf32>
    %cst_304 = arith.constant 8.000000e+00 : f32
    %614 = vector.broadcast %cst_304 : f32 to vector<8x8xf32>
    %615 = arith.cmpf oeq, %555, %614 : vector<8x8xf32>
    %616 = arith.andi %615, %557 : vector<8x8xi1>
    %cst_305 = arith.constant 1.000000e+00 : f32
    %cst_306 = arith.constant 0.000000e+00 : f32
    %617 = vector.broadcast %cst_305 : f32 to vector<8x8xf32>
    %618 = vector.broadcast %cst_306 : f32 to vector<8x8xf32>
    %619 = arith.select %616, %617, %618 : vector<8x8xi1>, vector<8x8xf32>
    %cst_307 = arith.constant dense<0.000000e+00> : vector<8x32xf32>
    %620 = tpu.matmul %619, %506, %cst_307 {dimension_numbers = #tpu.dot_dimension_numbers<[1], [0], [0], [1], [0, 0, 1, 1], [], []>} : vector<8x8xf32>, vector<8x32xf32>, vector<8x32xf32> -> vector<8x32xf32>
    %cst_308 = arith.constant 9.000000e+00 : f32
    %621 = vector.broadcast %cst_308 : f32 to vector<8x8xf32>
    %622 = arith.cmpf oeq, %555, %621 : vector<8x8xf32>
    %623 = arith.andi %622, %557 : vector<8x8xi1>
    %cst_309 = arith.constant 1.000000e+00 : f32
    %cst_310 = arith.constant 0.000000e+00 : f32
    %624 = vector.broadcast %cst_309 : f32 to vector<8x8xf32>
    %625 = vector.broadcast %cst_310 : f32 to vector<8x8xf32>
    %626 = arith.select %623, %624, %625 : vector<8x8xi1>, vector<8x8xf32>
    %cst_311 = arith.constant dense<0.000000e+00> : vector<8x32xf32>
    %627 = tpu.matmul %626, %506, %cst_311 {dimension_numbers = #tpu.dot_dimension_numbers<[1], [0], [0], [1], [0, 0, 1, 1], [], []>} : vector<8x8xf32>, vector<8x32xf32>, vector<8x32xf32> -> vector<8x32xf32>
    %cst_312 = arith.constant 1.000000e+01 : f32
    %628 = vector.broadcast %cst_312 : f32 to vector<8x8xf32>
    %629 = arith.cmpf oeq, %555, %628 : vector<8x8xf32>
    %630 = arith.andi %629, %557 : vector<8x8xi1>
    %cst_313 = arith.constant 1.000000e+00 : f32
    %cst_314 = arith.constant 0.000000e+00 : f32
    %631 = vector.broadcast %cst_313 : f32 to vector<8x8xf32>
    %632 = vector.broadcast %cst_314 : f32 to vector<8x8xf32>
    %633 = arith.select %630, %631, %632 : vector<8x8xi1>, vector<8x8xf32>
    %cst_315 = arith.constant dense<0.000000e+00> : vector<8x32xf32>
    %634 = tpu.matmul %633, %506, %cst_315 {dimension_numbers = #tpu.dot_dimension_numbers<[1], [0], [0], [1], [0, 0, 1, 1], [], []>} : vector<8x8xf32>, vector<8x32xf32>, vector<8x32xf32> -> vector<8x32xf32>
    %cst_316 = arith.constant 1.100000e+01 : f32
    %635 = vector.broadcast %cst_316 : f32 to vector<8x8xf32>
    %636 = arith.cmpf oeq, %555, %635 : vector<8x8xf32>
    %637 = arith.andi %636, %557 : vector<8x8xi1>
    %cst_317 = arith.constant 1.000000e+00 : f32
    %cst_318 = arith.constant 0.000000e+00 : f32
    %638 = vector.broadcast %cst_317 : f32 to vector<8x8xf32>
    %639 = vector.broadcast %cst_318 : f32 to vector<8x8xf32>
    %640 = arith.select %637, %638, %639 : vector<8x8xi1>, vector<8x8xf32>
    %cst_319 = arith.constant dense<0.000000e+00> : vector<8x32xf32>
    %641 = tpu.matmul %640, %506, %cst_319 {dimension_numbers = #tpu.dot_dimension_numbers<[1], [0], [0], [1], [0, 0, 1, 1], [], []>} : vector<8x8xf32>, vector<8x32xf32>, vector<8x32xf32> -> vector<8x32xf32>
    %cst_320 = arith.constant 1.200000e+01 : f32
    %642 = vector.broadcast %cst_320 : f32 to vector<8x8xf32>
    %643 = arith.cmpf oeq, %555, %642 : vector<8x8xf32>
    %644 = arith.andi %643, %557 : vector<8x8xi1>
    %cst_321 = arith.constant 1.000000e+00 : f32
    %cst_322 = arith.constant 0.000000e+00 : f32
    %645 = vector.broadcast %cst_321 : f32 to vector<8x8xf32>
    %646 = vector.broadcast %cst_322 : f32 to vector<8x8xf32>
    %647 = arith.select %644, %645, %646 : vector<8x8xi1>, vector<8x8xf32>
    %cst_323 = arith.constant dense<0.000000e+00> : vector<8x32xf32>
    %648 = tpu.matmul %647, %506, %cst_323 {dimension_numbers = #tpu.dot_dimension_numbers<[1], [0], [0], [1], [0, 0, 1, 1], [], []>} : vector<8x8xf32>, vector<8x32xf32>, vector<8x32xf32> -> vector<8x32xf32>
    %cst_324 = arith.constant 1.300000e+01 : f32
    %649 = vector.broadcast %cst_324 : f32 to vector<8x8xf32>
    %650 = arith.cmpf oeq, %555, %649 : vector<8x8xf32>
    %651 = arith.andi %650, %557 : vector<8x8xi1>
    %cst_325 = arith.constant 1.000000e+00 : f32
    %cst_326 = arith.constant 0.000000e+00 : f32
    %652 = vector.broadcast %cst_325 : f32 to vector<8x8xf32>
    %653 = vector.broadcast %cst_326 : f32 to vector<8x8xf32>
    %654 = arith.select %651, %652, %653 : vector<8x8xi1>, vector<8x8xf32>
    %cst_327 = arith.constant dense<0.000000e+00> : vector<8x32xf32>
    %655 = tpu.matmul %654, %506, %cst_327 {dimension_numbers = #tpu.dot_dimension_numbers<[1], [0], [0], [1], [0, 0, 1, 1], [], []>} : vector<8x8xf32>, vector<8x32xf32>, vector<8x32xf32> -> vector<8x32xf32>
    %cst_328 = arith.constant 1.400000e+01 : f32
    %656 = vector.broadcast %cst_328 : f32 to vector<8x8xf32>
    %657 = arith.cmpf oeq, %555, %656 : vector<8x8xf32>
    %658 = arith.andi %657, %557 : vector<8x8xi1>
    %cst_329 = arith.constant 1.000000e+00 : f32
    %cst_330 = arith.constant 0.000000e+00 : f32
    %659 = vector.broadcast %cst_329 : f32 to vector<8x8xf32>
    %660 = vector.broadcast %cst_330 : f32 to vector<8x8xf32>
    %661 = arith.select %658, %659, %660 : vector<8x8xi1>, vector<8x8xf32>
    %cst_331 = arith.constant dense<0.000000e+00> : vector<8x32xf32>
    %662 = tpu.matmul %661, %506, %cst_331 {dimension_numbers = #tpu.dot_dimension_numbers<[1], [0], [0], [1], [0, 0, 1, 1], [], []>} : vector<8x8xf32>, vector<8x32xf32>, vector<8x32xf32> -> vector<8x32xf32>
    %cst_332 = arith.constant 1.500000e+01 : f32
    %663 = vector.broadcast %cst_332 : f32 to vector<8x8xf32>
    %664 = arith.cmpf oeq, %555, %663 : vector<8x8xf32>
    %665 = arith.andi %664, %557 : vector<8x8xi1>
    %cst_333 = arith.constant 1.000000e+00 : f32
    %cst_334 = arith.constant 0.000000e+00 : f32
    %666 = vector.broadcast %cst_333 : f32 to vector<8x8xf32>
    %667 = vector.broadcast %cst_334 : f32 to vector<8x8xf32>
    %668 = arith.select %665, %666, %667 : vector<8x8xi1>, vector<8x8xf32>
    %cst_335 = arith.constant dense<0.000000e+00> : vector<8x32xf32>
    %669 = tpu.matmul %668, %506, %cst_335 {dimension_numbers = #tpu.dot_dimension_numbers<[1], [0], [0], [1], [0, 0, 1, 1], [], []>} : vector<8x8xf32>, vector<8x32xf32>, vector<8x32xf32> -> vector<8x32xf32>
    %670 = tpu.concatenate %564, %571, %578, %585, %592, %599, %606, %613, %620, %627, %634, %641, %648, %655, %662, %669 in 1 : vector<8x32xf32>, vector<8x32xf32>, vector<8x32xf32>, vector<8x32xf32>, vector<8x32xf32>, vector<8x32xf32>, vector<8x32xf32>, vector<8x32xf32>, vector<8x32xf32>, vector<8x32xf32>, vector<8x32xf32>, vector<8x32xf32>, vector<8x32xf32>, vector<8x32xf32>, vector<8x32xf32>, vector<8x32xf32> -> vector<8x512xf32>
    %cst_336 = arith.constant dense<0.000000e+00> : vector<8x32xf32>
    %671 = tpu.matmul %670, %4, %cst_336 {dimension_numbers = #tpu.dot_dimension_numbers<[1], [0], [0], [1], [0, 0, 1, 1], [], []>} : vector<8x512xf32>, vector<512x32xf32>, vector<8x32xf32> -> vector<8x32xf32>
    %672 = arith.addf %671, %19 : vector<8x32xf32>
    %cst_337 = arith.constant 0.000000e+00 : f32
    %673 = vector.broadcast %cst_337 : f32 to vector<8x32xf32>
    %674 = arith.maximumf %672, %673 : vector<8x32xf32>
    %cst_338 = arith.constant dense<0.000000e+00> : vector<8x32xf32>
    %675 = tpu.matmul %506, %5, %cst_338 {dimension_numbers = #tpu.dot_dimension_numbers<[1], [0], [0], [1], [0, 0, 1, 1], [], []>} : vector<8x32xf32>, vector<32x32xf32>, vector<8x32xf32> -> vector<8x32xf32>
    %cst_339 = arith.constant dense<0.000000e+00> : vector<8x32xf32>
    %676 = tpu.matmul %674, %6, %cst_339 {dimension_numbers = #tpu.dot_dimension_numbers<[1], [0], [0], [1], [0, 0, 1, 1], [], []>} : vector<8x32xf32>, vector<32x32xf32>, vector<8x32xf32> -> vector<8x32xf32>
    %677 = arith.addf %675, %676 : vector<8x32xf32>
    %678 = arith.addf %677, %22 : vector<8x32xf32>
    %cst_340 = arith.constant 0.000000e+00 : f32
    %679 = vector.broadcast %cst_340 : f32 to vector<8x32xf32>
    %680 = arith.maximumf %678, %679 : vector<8x32xf32>
    %cst_341 = arith.constant dense<0.000000e+00> : vector<8x32xf32>
    %681 = tpu.matmul %680, %7, %cst_341 {dimension_numbers = #tpu.dot_dimension_numbers<[1], [0], [0], [1], [0, 0, 1, 1], [], []>} : vector<8x32xf32>, vector<32x32xf32>, vector<8x32xf32> -> vector<8x32xf32>
    %682 = arith.addf %681, %25 : vector<8x32xf32>
    %cst_342 = arith.constant 0.000000e+00 : f32
    %683 = vector.broadcast %cst_342 : f32 to vector<8x32xf32>
    %684 = arith.maximumf %682, %683 : vector<8x32xf32>
    %c2 = arith.constant 2 : index
    %c0_343 = arith.constant 0 : index
    %c0_344 = arith.constant 0 : index
    %685 = vector.load %arg20[%c2, %c0_343, %c0_344] : memref<4x8x2xf32, #tpu.memory_space<vmem>>, vector<1x8x2xf32>
    %686 = vector.shape_cast %685 : vector<1x8x2xf32> to vector<8x2xf32>
    %687 = vector.shape_cast %508 : vector<8x2xf32> to vector<1x8x2xf32>
    tpu.vector_store %arg20[%c2, %c0_343, %c0_344], %687 {strides = array<i32>} : memref<4x8x2xf32, #tpu.memory_space<vmem>>, vector<1x8x2xf32>,
    %c2_345 = arith.constant 2 : index
    %c0_346 = arith.constant 0 : index
    %c0_347 = arith.constant 0 : index
    %688 = vector.load %arg21[%c2_345, %c0_346, %c0_347] : memref<4x8x2xf32, #tpu.memory_space<vmem>>, vector<1x8x2xf32>
    %689 = vector.shape_cast %688 : vector<1x8x2xf32> to vector<8x2xf32>
    %690 = vector.shape_cast %509 : vector<8x2xf32> to vector<1x8x2xf32>
    tpu.vector_store %arg21[%c2_345, %c0_346, %c0_347], %690 {strides = array<i32>} : memref<4x8x2xf32, #tpu.memory_space<vmem>>, vector<1x8x2xf32>,
    %cst_348 = arith.constant dense<0.000000e+00> : vector<8x16xf32>
    %691 = tpu.matmul %508, %0, %cst_348 {dimension_numbers = #tpu.dot_dimension_numbers<[1], [0], [0], [1], [0, 0, 1, 1], [], []>} : vector<8x2xf32>, vector<2x16xf32>, vector<8x16xf32> -> vector<8x16xf32>
    %692 = arith.addf %691, %10 : vector<8x16xf32>
    %cst_349 = arith.constant 0.000000e+00 : f32
    %cst_350 = arith.constant 6.000000e+00 : f32
    %693 = vector.broadcast %cst_349 : f32 to vector<8x16xf32>
    %694 = arith.maximumf %693, %692 : vector<8x16xf32>
    %695 = vector.broadcast %cst_350 : f32 to vector<8x16xf32>
    %696 = arith.minimumf %695, %694 : vector<8x16xf32>
    %cst_351 = arith.constant dense<0.000000e+00> : vector<8x128xf32>
    %697 = tpu.matmul %696, %1, %cst_351 {dimension_numbers = #tpu.dot_dimension_numbers<[1], [0], [0], [1], [0, 0, 1, 1], [], []>} : vector<8x16xf32>, vector<16x128xf32>, vector<8x128xf32> -> vector<8x128xf32>
    %cst_352 = arith.constant dense<0.000000e+00> : vector<8x128xf32>
    %698 = tpu.matmul %684, %2, %cst_352 {dimension_numbers = #tpu.dot_dimension_numbers<[1], [0], [0], [1], [0, 0, 1, 1], [], []>} : vector<8x32xf32>, vector<32x128xf32>, vector<8x128xf32> -> vector<8x128xf32>
    %699 = arith.addf %697, %698 : vector<8x128xf32>
    %700 = arith.addf %699, %13 : vector<8x128xf32>
    %701 = vector.extract_strided_slice %700 {offsets = [0, 0], sizes = [8, 32], strides = [1, 1]} : vector<8x128xf32> to vector<8x32xf32>
    %702 = arith.negf %701 : vector<8x32xf32>
    %703 = math.exp %702 : vector<8x32xf32>
    %cst_353 = arith.constant 1.000000e+00 : f32
    %704 = vector.broadcast %cst_353 : f32 to vector<8x32xf32>
    %705 = arith.addf %704, %703 : vector<8x32xf32>
    %706 = arith.divf %704, %705 : vector<8x32xf32>
    %707 = vector.extract_strided_slice %700 {offsets = [0, 32], sizes = [8, 32], strides = [1, 1]} : vector<8x128xf32> to vector<8x32xf32>
    %708 = arith.negf %707 : vector<8x32xf32>
    %709 = math.exp %708 : vector<8x32xf32>
    %cst_354 = arith.constant 1.000000e+00 : f32
    %710 = vector.broadcast %cst_354 : f32 to vector<8x32xf32>
    %711 = arith.addf %710, %709 : vector<8x32xf32>
    %712 = arith.divf %710, %711 : vector<8x32xf32>
    %713 = vector.extract_strided_slice %700 {offsets = [0, 64], sizes = [8, 32], strides = [1, 1]} : vector<8x128xf32> to vector<8x32xf32>
    %714 = math.tanh %713 : vector<8x32xf32>
    %715 = vector.extract_strided_slice %700 {offsets = [0, 96], sizes = [8, 32], strides = [1, 1]} : vector<8x128xf32> to vector<8x32xf32>
    %716 = arith.negf %715 : vector<8x32xf32>
    %717 = math.exp %716 : vector<8x32xf32>
    %cst_355 = arith.constant 1.000000e+00 : f32
    %718 = vector.broadcast %cst_355 : f32 to vector<8x32xf32>
    %719 = arith.addf %718, %717 : vector<8x32xf32>
    %720 = arith.divf %718, %719 : vector<8x32xf32>
    %721 = arith.mulf %712, %504 : vector<8x32xf32>
    %722 = arith.mulf %706, %714 : vector<8x32xf32>
    %723 = arith.addf %721, %722 : vector<8x32xf32>
    %724 = math.tanh %723 : vector<8x32xf32>
    %725 = arith.mulf %720, %724 : vector<8x32xf32>
    %cst_356 = arith.constant dense<0.000000e+00> : vector<8x2xf32>
    %726 = tpu.matmul %725, %3, %cst_356 {dimension_numbers = #tpu.dot_dimension_numbers<[1], [0], [0], [1], [0, 0, 1, 1], [], []>} : vector<8x32xf32>, vector<32x2xf32>, vector<8x2xf32> -> vector<8x2xf32>
    %727 = arith.addf %726, %16 : vector<8x2xf32>
    %728 = arith.addf %727, %509 : vector<8x2xf32>
    %729 = vector.extract_strided_slice %728 {offsets = [0, 0], sizes = [8, 1], strides = [1, 1]} : vector<8x2xf32> to vector<8x1xf32>
    %730 = vector.extract_strided_slice %728 {offsets = [0, 1], sizes = [8, 1], strides = [1, 1]} : vector<8x2xf32> to vector<8x1xf32>
    %cst_357 = arith.constant dense<0.000000e+00> : vector<8x8xf32>
    %731 = tpu.matmul %29, %729, %cst_357 {dimension_numbers = #tpu.dot_dimension_numbers<[1], [1], [0], [0], [0, 0, 1, 0], [], []>} : vector<8x1xf32>, vector<8x1xf32>, vector<8x8xf32> -> vector<8x8xf32>
    %cst_358 = arith.constant dense<0.000000e+00> : vector<8x8xf32>
    %732 = tpu.matmul %29, %730, %cst_358 {dimension_numbers = #tpu.dot_dimension_numbers<[1], [1], [0], [0], [0, 0, 1, 0], [], []>} : vector<8x1xf32>, vector<8x1xf32>, vector<8x8xf32> -> vector<8x8xf32>
    %733 = vector.broadcast %729 : vector<8x1xf32> to vector<8x8xf32>
    %734 = arith.subf %731, %733 : vector<8x8xf32>
    %735 = vector.broadcast %730 : vector<8x1xf32> to vector<8x8xf32>
    %736 = arith.subf %732, %735 : vector<8x8xf32>
    %cst_359 = arith.constant 1.000000e+00 : f32
    %737 = vector.broadcast %cst_359 : f32 to vector<8x8xf32>
    %738 = arith.cmpf oge, %734, %737 : vector<8x8xf32>
    %cst_360 = arith.constant -1.000000e+00 : f32
    %739 = vector.broadcast %cst_360 : f32 to vector<8x8xf32>
    %740 = arith.cmpf ole, %734, %739 : vector<8x8xf32>
    %741 = arith.ori %738, %740 : vector<8x8xi1>
    %cst_361 = arith.constant 1.000000e+00 : f32
    %742 = vector.broadcast %cst_361 : f32 to vector<8x8xf32>
    %743 = arith.cmpf oge, %736, %742 : vector<8x8xf32>
    %cst_362 = arith.constant -1.000000e+00 : f32
    %744 = vector.broadcast %cst_362 : f32 to vector<8x8xf32>
    %745 = arith.cmpf ole, %736, %744 : vector<8x8xf32>
    %746 = arith.ori %743, %745 : vector<8x8xi1>
    %747 = arith.ori %741, %746 : vector<8x8xi1>
    %cst_363 = arith.constant 1.000000e+00 : f32
    %748 = vector.broadcast %cst_363 : f32 to vector<8x8xf32>
    %749 = arith.addf %734, %748 : vector<8x8xf32>
    %cst_364 = arith.constant 2.000000e+00 : f32
    %750 = vector.broadcast %cst_364 : f32 to vector<8x8xf32>
    %751 = arith.divf %749, %750 : vector<8x8xf32>
    %cst_365 = arith.constant 4.000000e+00 : f32
    %752 = vector.broadcast %cst_365 : f32 to vector<8x8xf32>
    %753 = arith.mulf %751, %752 : vector<8x8xf32>
    %754 = math.floor %753 : vector<8x8xf32>
    %cst_366 = arith.constant 4.000000e+00 : f32
    %755 = vector.broadcast %cst_366 : f32 to vector<8x8xf32>
    %756 = arith.cmpf oeq, %754, %755 : vector<8x8xf32>
    %cst_367 = arith.constant 1.000000e+00 : f32
    %757 = vector.broadcast %cst_367 : f32 to vector<8x8xf32>
    %758 = arith.subf %754, %757 : vector<8x8xf32>
    %759 = arith.select %756, %758, %754 : vector<8x8xi1>, vector<8x8xf32>
    %cst_368 = arith.constant 1.000000e+00 : f32
    %760 = vector.broadcast %cst_368 : f32 to vector<8x8xf32>
    %761 = arith.subf %760, %736 : vector<8x8xf32>
    %cst_369 = arith.constant 2.000000e+00 : f32
    %762 = vector.broadcast %cst_369 : f32 to vector<8x8xf32>
    %763 = arith.divf %761, %762 : vector<8x8xf32>
    %cst_370 = arith.constant 4.000000e+00 : f32
    %764 = vector.broadcast %cst_370 : f32 to vector<8x8xf32>
    %765 = arith.mulf %763, %764 : vector<8x8xf32>
    %766 = math.floor %765 : vector<8x8xf32>
    %cst_371 = arith.constant 4.000000e+00 : f32
    %767 = vector.broadcast %cst_371 : f32 to vector<8x8xf32>
    %768 = arith.cmpf oeq, %766, %767 : vector<8x8xf32>
    %cst_372 = arith.constant 1.000000e+00 : f32
    %769 = vector.broadcast %cst_372 : f32 to vector<8x8xf32>
    %770 = arith.subf %766, %769 : vector<8x8xf32>
    %771 = arith.select %768, %770, %766 : vector<8x8xi1>, vector<8x8xf32>
    %cst_373 = arith.constant 4.000000e+00 : f32
    %772 = vector.broadcast %cst_373 : f32 to vector<8x8xf32>
    %773 = arith.mulf %771, %772 : vector<8x8xf32>
    %774 = arith.addf %759, %773 : vector<8x8xf32>
    %cst_374 = arith.constant dense<true> : vector<8x8xi1>
    %775 = arith.xori %747, %cst_374 : vector<8x8xi1>
    %776 = arith.andi %28, %775 : vector<8x8xi1>
    %cst_375 = arith.constant 0.000000e+00 : f32
    %777 = vector.broadcast %cst_375 : f32 to vector<8x8xf32>
    %778 = arith.cmpf oeq, %774, %777 : vector<8x8xf32>
    %779 = arith.andi %778, %776 : vector<8x8xi1>
    %cst_376 = arith.constant 1.000000e+00 : f32
    %cst_377 = arith.constant 0.000000e+00 : f32
    %780 = vector.broadcast %cst_376 : f32 to vector<8x8xf32>
    %781 = vector.broadcast %cst_377 : f32 to vector<8x8xf32>
    %782 = arith.select %779, %780, %781 : vector<8x8xi1>, vector<8x8xf32>
    %cst_378 = arith.constant dense<0.000000e+00> : vector<8x32xf32>
    %783 = tpu.matmul %782, %725, %cst_378 {dimension_numbers = #tpu.dot_dimension_numbers<[1], [0], [0], [1], [0, 0, 1, 1], [], []>} : vector<8x8xf32>, vector<8x32xf32>, vector<8x32xf32> -> vector<8x32xf32>
    %cst_379 = arith.constant 1.000000e+00 : f32
    %784 = vector.broadcast %cst_379 : f32 to vector<8x8xf32>
    %785 = arith.cmpf oeq, %774, %784 : vector<8x8xf32>
    %786 = arith.andi %785, %776 : vector<8x8xi1>
    %cst_380 = arith.constant 1.000000e+00 : f32
    %cst_381 = arith.constant 0.000000e+00 : f32
    %787 = vector.broadcast %cst_380 : f32 to vector<8x8xf32>
    %788 = vector.broadcast %cst_381 : f32 to vector<8x8xf32>
    %789 = arith.select %786, %787, %788 : vector<8x8xi1>, vector<8x8xf32>
    %cst_382 = arith.constant dense<0.000000e+00> : vector<8x32xf32>
    %790 = tpu.matmul %789, %725, %cst_382 {dimension_numbers = #tpu.dot_dimension_numbers<[1], [0], [0], [1], [0, 0, 1, 1], [], []>} : vector<8x8xf32>, vector<8x32xf32>, vector<8x32xf32> -> vector<8x32xf32>
    %cst_383 = arith.constant 2.000000e+00 : f32
    %791 = vector.broadcast %cst_383 : f32 to vector<8x8xf32>
    %792 = arith.cmpf oeq, %774, %791 : vector<8x8xf32>
    %793 = arith.andi %792, %776 : vector<8x8xi1>
    %cst_384 = arith.constant 1.000000e+00 : f32
    %cst_385 = arith.constant 0.000000e+00 : f32
    %794 = vector.broadcast %cst_384 : f32 to vector<8x8xf32>
    %795 = vector.broadcast %cst_385 : f32 to vector<8x8xf32>
    %796 = arith.select %793, %794, %795 : vector<8x8xi1>, vector<8x8xf32>
    %cst_386 = arith.constant dense<0.000000e+00> : vector<8x32xf32>
    %797 = tpu.matmul %796, %725, %cst_386 {dimension_numbers = #tpu.dot_dimension_numbers<[1], [0], [0], [1], [0, 0, 1, 1], [], []>} : vector<8x8xf32>, vector<8x32xf32>, vector<8x32xf32> -> vector<8x32xf32>
    %cst_387 = arith.constant 3.000000e+00 : f32
    %798 = vector.broadcast %cst_387 : f32 to vector<8x8xf32>
    %799 = arith.cmpf oeq, %774, %798 : vector<8x8xf32>
    %800 = arith.andi %799, %776 : vector<8x8xi1>
    %cst_388 = arith.constant 1.000000e+00 : f32
    %cst_389 = arith.constant 0.000000e+00 : f32
    %801 = vector.broadcast %cst_388 : f32 to vector<8x8xf32>
    %802 = vector.broadcast %cst_389 : f32 to vector<8x8xf32>
    %803 = arith.select %800, %801, %802 : vector<8x8xi1>, vector<8x8xf32>
    %cst_390 = arith.constant dense<0.000000e+00> : vector<8x32xf32>
    %804 = tpu.matmul %803, %725, %cst_390 {dimension_numbers = #tpu.dot_dimension_numbers<[1], [0], [0], [1], [0, 0, 1, 1], [], []>} : vector<8x8xf32>, vector<8x32xf32>, vector<8x32xf32> -> vector<8x32xf32>
    %cst_391 = arith.constant 4.000000e+00 : f32
    %805 = vector.broadcast %cst_391 : f32 to vector<8x8xf32>
    %806 = arith.cmpf oeq, %774, %805 : vector<8x8xf32>
    %807 = arith.andi %806, %776 : vector<8x8xi1>
    %cst_392 = arith.constant 1.000000e+00 : f32
    %cst_393 = arith.constant 0.000000e+00 : f32
    %808 = vector.broadcast %cst_392 : f32 to vector<8x8xf32>
    %809 = vector.broadcast %cst_393 : f32 to vector<8x8xf32>
    %810 = arith.select %807, %808, %809 : vector<8x8xi1>, vector<8x8xf32>
    %cst_394 = arith.constant dense<0.000000e+00> : vector<8x32xf32>
    %811 = tpu.matmul %810, %725, %cst_394 {dimension_numbers = #tpu.dot_dimension_numbers<[1], [0], [0], [1], [0, 0, 1, 1], [], []>} : vector<8x8xf32>, vector<8x32xf32>, vector<8x32xf32> -> vector<8x32xf32>
    %cst_395 = arith.constant 5.000000e+00 : f32
    %812 = vector.broadcast %cst_395 : f32 to vector<8x8xf32>
    %813 = arith.cmpf oeq, %774, %812 : vector<8x8xf32>
    %814 = arith.andi %813, %776 : vector<8x8xi1>
    %cst_396 = arith.constant 1.000000e+00 : f32
    %cst_397 = arith.constant 0.000000e+00 : f32
    %815 = vector.broadcast %cst_396 : f32 to vector<8x8xf32>
    %816 = vector.broadcast %cst_397 : f32 to vector<8x8xf32>
    %817 = arith.select %814, %815, %816 : vector<8x8xi1>, vector<8x8xf32>
    %cst_398 = arith.constant dense<0.000000e+00> : vector<8x32xf32>
    %818 = tpu.matmul %817, %725, %cst_398 {dimension_numbers = #tpu.dot_dimension_numbers<[1], [0], [0], [1], [0, 0, 1, 1], [], []>} : vector<8x8xf32>, vector<8x32xf32>, vector<8x32xf32> -> vector<8x32xf32>
    %cst_399 = arith.constant 6.000000e+00 : f32
    %819 = vector.broadcast %cst_399 : f32 to vector<8x8xf32>
    %820 = arith.cmpf oeq, %774, %819 : vector<8x8xf32>
    %821 = arith.andi %820, %776 : vector<8x8xi1>
    %cst_400 = arith.constant 1.000000e+00 : f32
    %cst_401 = arith.constant 0.000000e+00 : f32
    %822 = vector.broadcast %cst_400 : f32 to vector<8x8xf32>
    %823 = vector.broadcast %cst_401 : f32 to vector<8x8xf32>
    %824 = arith.select %821, %822, %823 : vector<8x8xi1>, vector<8x8xf32>
    %cst_402 = arith.constant dense<0.000000e+00> : vector<8x32xf32>
    %825 = tpu.matmul %824, %725, %cst_402 {dimension_numbers = #tpu.dot_dimension_numbers<[1], [0], [0], [1], [0, 0, 1, 1], [], []>} : vector<8x8xf32>, vector<8x32xf32>, vector<8x32xf32> -> vector<8x32xf32>
    %cst_403 = arith.constant 7.000000e+00 : f32
    %826 = vector.broadcast %cst_403 : f32 to vector<8x8xf32>
    %827 = arith.cmpf oeq, %774, %826 : vector<8x8xf32>
    %828 = arith.andi %827, %776 : vector<8x8xi1>
    %cst_404 = arith.constant 1.000000e+00 : f32
    %cst_405 = arith.constant 0.000000e+00 : f32
    %829 = vector.broadcast %cst_404 : f32 to vector<8x8xf32>
    %830 = vector.broadcast %cst_405 : f32 to vector<8x8xf32>
    %831 = arith.select %828, %829, %830 : vector<8x8xi1>, vector<8x8xf32>
    %cst_406 = arith.constant dense<0.000000e+00> : vector<8x32xf32>
    %832 = tpu.matmul %831, %725, %cst_406 {dimension_numbers = #tpu.dot_dimension_numbers<[1], [0], [0], [1], [0, 0, 1, 1], [], []>} : vector<8x8xf32>, vector<8x32xf32>, vector<8x32xf32> -> vector<8x32xf32>
    %cst_407 = arith.constant 8.000000e+00 : f32
    %833 = vector.broadcast %cst_407 : f32 to vector<8x8xf32>
    %834 = arith.cmpf oeq, %774, %833 : vector<8x8xf32>
    %835 = arith.andi %834, %776 : vector<8x8xi1>
    %cst_408 = arith.constant 1.000000e+00 : f32
    %cst_409 = arith.constant 0.000000e+00 : f32
    %836 = vector.broadcast %cst_408 : f32 to vector<8x8xf32>
    %837 = vector.broadcast %cst_409 : f32 to vector<8x8xf32>
    %838 = arith.select %835, %836, %837 : vector<8x8xi1>, vector<8x8xf32>
    %cst_410 = arith.constant dense<0.000000e+00> : vector<8x32xf32>
    %839 = tpu.matmul %838, %725, %cst_410 {dimension_numbers = #tpu.dot_dimension_numbers<[1], [0], [0], [1], [0, 0, 1, 1], [], []>} : vector<8x8xf32>, vector<8x32xf32>, vector<8x32xf32> -> vector<8x32xf32>
    %cst_411 = arith.constant 9.000000e+00 : f32
    %840 = vector.broadcast %cst_411 : f32 to vector<8x8xf32>
    %841 = arith.cmpf oeq, %774, %840 : vector<8x8xf32>
    %842 = arith.andi %841, %776 : vector<8x8xi1>
    %cst_412 = arith.constant 1.000000e+00 : f32
    %cst_413 = arith.constant 0.000000e+00 : f32
    %843 = vector.broadcast %cst_412 : f32 to vector<8x8xf32>
    %844 = vector.broadcast %cst_413 : f32 to vector<8x8xf32>
    %845 = arith.select %842, %843, %844 : vector<8x8xi1>, vector<8x8xf32>
    %cst_414 = arith.constant dense<0.000000e+00> : vector<8x32xf32>
    %846 = tpu.matmul %845, %725, %cst_414 {dimension_numbers = #tpu.dot_dimension_numbers<[1], [0], [0], [1], [0, 0, 1, 1], [], []>} : vector<8x8xf32>, vector<8x32xf32>, vector<8x32xf32> -> vector<8x32xf32>
    %cst_415 = arith.constant 1.000000e+01 : f32
    %847 = vector.broadcast %cst_415 : f32 to vector<8x8xf32>
    %848 = arith.cmpf oeq, %774, %847 : vector<8x8xf32>
    %849 = arith.andi %848, %776 : vector<8x8xi1>
    %cst_416 = arith.constant 1.000000e+00 : f32
    %cst_417 = arith.constant 0.000000e+00 : f32
    %850 = vector.broadcast %cst_416 : f32 to vector<8x8xf32>
    %851 = vector.broadcast %cst_417 : f32 to vector<8x8xf32>
    %852 = arith.select %849, %850, %851 : vector<8x8xi1>, vector<8x8xf32>
    %cst_418 = arith.constant dense<0.000000e+00> : vector<8x32xf32>
    %853 = tpu.matmul %852, %725, %cst_418 {dimension_numbers = #tpu.dot_dimension_numbers<[1], [0], [0], [1], [0, 0, 1, 1], [], []>} : vector<8x8xf32>, vector<8x32xf32>, vector<8x32xf32> -> vector<8x32xf32>
    %cst_419 = arith.constant 1.100000e+01 : f32
    %854 = vector.broadcast %cst_419 : f32 to vector<8x8xf32>
    %855 = arith.cmpf oeq, %774, %854 : vector<8x8xf32>
    %856 = arith.andi %855, %776 : vector<8x8xi1>
    %cst_420 = arith.constant 1.000000e+00 : f32
    %cst_421 = arith.constant 0.000000e+00 : f32
    %857 = vector.broadcast %cst_420 : f32 to vector<8x8xf32>
    %858 = vector.broadcast %cst_421 : f32 to vector<8x8xf32>
    %859 = arith.select %856, %857, %858 : vector<8x8xi1>, vector<8x8xf32>
    %cst_422 = arith.constant dense<0.000000e+00> : vector<8x32xf32>
    %860 = tpu.matmul %859, %725, %cst_422 {dimension_numbers = #tpu.dot_dimension_numbers<[1], [0], [0], [1], [0, 0, 1, 1], [], []>} : vector<8x8xf32>, vector<8x32xf32>, vector<8x32xf32> -> vector<8x32xf32>
    %cst_423 = arith.constant 1.200000e+01 : f32
    %861 = vector.broadcast %cst_423 : f32 to vector<8x8xf32>
    %862 = arith.cmpf oeq, %774, %861 : vector<8x8xf32>
    %863 = arith.andi %862, %776 : vector<8x8xi1>
    %cst_424 = arith.constant 1.000000e+00 : f32
    %cst_425 = arith.constant 0.000000e+00 : f32
    %864 = vector.broadcast %cst_424 : f32 to vector<8x8xf32>
    %865 = vector.broadcast %cst_425 : f32 to vector<8x8xf32>
    %866 = arith.select %863, %864, %865 : vector<8x8xi1>, vector<8x8xf32>
    %cst_426 = arith.constant dense<0.000000e+00> : vector<8x32xf32>
    %867 = tpu.matmul %866, %725, %cst_426 {dimension_numbers = #tpu.dot_dimension_numbers<[1], [0], [0], [1], [0, 0, 1, 1], [], []>} : vector<8x8xf32>, vector<8x32xf32>, vector<8x32xf32> -> vector<8x32xf32>
    %cst_427 = arith.constant 1.300000e+01 : f32
    %868 = vector.broadcast %cst_427 : f32 to vector<8x8xf32>
    %869 = arith.cmpf oeq, %774, %868 : vector<8x8xf32>
    %870 = arith.andi %869, %776 : vector<8x8xi1>
    %cst_428 = arith.constant 1.000000e+00 : f32
    %cst_429 = arith.constant 0.000000e+00 : f32
    %871 = vector.broadcast %cst_428 : f32 to vector<8x8xf32>
    %872 = vector.broadcast %cst_429 : f32 to vector<8x8xf32>
    %873 = arith.select %870, %871, %872 : vector<8x8xi1>, vector<8x8xf32>
    %cst_430 = arith.constant dense<0.000000e+00> : vector<8x32xf32>
    %874 = tpu.matmul %873, %725, %cst_430 {dimension_numbers = #tpu.dot_dimension_numbers<[1], [0], [0], [1], [0, 0, 1, 1], [], []>} : vector<8x8xf32>, vector<8x32xf32>, vector<8x32xf32> -> vector<8x32xf32>
    %cst_431 = arith.constant 1.400000e+01 : f32
    %875 = vector.broadcast %cst_431 : f32 to vector<8x8xf32>
    %876 = arith.cmpf oeq, %774, %875 : vector<8x8xf32>
    %877 = arith.andi %876, %776 : vector<8x8xi1>
    %cst_432 = arith.constant 1.000000e+00 : f32
    %cst_433 = arith.constant 0.000000e+00 : f32
    %878 = vector.broadcast %cst_432 : f32 to vector<8x8xf32>
    %879 = vector.broadcast %cst_433 : f32 to vector<8x8xf32>
    %880 = arith.select %877, %878, %879 : vector<8x8xi1>, vector<8x8xf32>
    %cst_434 = arith.constant dense<0.000000e+00> : vector<8x32xf32>
    %881 = tpu.matmul %880, %725, %cst_434 {dimension_numbers = #tpu.dot_dimension_numbers<[1], [0], [0], [1], [0, 0, 1, 1], [], []>} : vector<8x8xf32>, vector<8x32xf32>, vector<8x32xf32> -> vector<8x32xf32>
    %cst_435 = arith.constant 1.500000e+01 : f32
    %882 = vector.broadcast %cst_435 : f32 to vector<8x8xf32>
    %883 = arith.cmpf oeq, %774, %882 : vector<8x8xf32>
    %884 = arith.andi %883, %776 : vector<8x8xi1>
    %cst_436 = arith.constant 1.000000e+00 : f32
    %cst_437 = arith.constant 0.000000e+00 : f32
    %885 = vector.broadcast %cst_436 : f32 to vector<8x8xf32>
    %886 = vector.broadcast %cst_437 : f32 to vector<8x8xf32>
    %887 = arith.select %884, %885, %886 : vector<8x8xi1>, vector<8x8xf32>
    %cst_438 = arith.constant dense<0.000000e+00> : vector<8x32xf32>
    %888 = tpu.matmul %887, %725, %cst_438 {dimension_numbers = #tpu.dot_dimension_numbers<[1], [0], [0], [1], [0, 0, 1, 1], [], []>} : vector<8x8xf32>, vector<8x32xf32>, vector<8x32xf32> -> vector<8x32xf32>
    %889 = tpu.concatenate %783, %790, %797, %804, %811, %818, %825, %832, %839, %846, %853, %860, %867, %874, %881, %888 in 1 : vector<8x32xf32>, vector<8x32xf32>, vector<8x32xf32>, vector<8x32xf32>, vector<8x32xf32>, vector<8x32xf32>, vector<8x32xf32>, vector<8x32xf32>, vector<8x32xf32>, vector<8x32xf32>, vector<8x32xf32>, vector<8x32xf32>, vector<8x32xf32>, vector<8x32xf32>, vector<8x32xf32>, vector<8x32xf32> -> vector<8x512xf32>
    %cst_439 = arith.constant dense<0.000000e+00> : vector<8x32xf32>
    %890 = tpu.matmul %889, %4, %cst_439 {dimension_numbers = #tpu.dot_dimension_numbers<[1], [0], [0], [1], [0, 0, 1, 1], [], []>} : vector<8x512xf32>, vector<512x32xf32>, vector<8x32xf32> -> vector<8x32xf32>
    %891 = arith.addf %890, %19 : vector<8x32xf32>
    %cst_440 = arith.constant 0.000000e+00 : f32
    %892 = vector.broadcast %cst_440 : f32 to vector<8x32xf32>
    %893 = arith.maximumf %891, %892 : vector<8x32xf32>
    %cst_441 = arith.constant dense<0.000000e+00> : vector<8x32xf32>
    %894 = tpu.matmul %725, %5, %cst_441 {dimension_numbers = #tpu.dot_dimension_numbers<[1], [0], [0], [1], [0, 0, 1, 1], [], []>} : vector<8x32xf32>, vector<32x32xf32>, vector<8x32xf32> -> vector<8x32xf32>
    %cst_442 = arith.constant dense<0.000000e+00> : vector<8x32xf32>
    %895 = tpu.matmul %893, %6, %cst_442 {dimension_numbers = #tpu.dot_dimension_numbers<[1], [0], [0], [1], [0, 0, 1, 1], [], []>} : vector<8x32xf32>, vector<32x32xf32>, vector<8x32xf32> -> vector<8x32xf32>
    %896 = arith.addf %894, %895 : vector<8x32xf32>
    %897 = arith.addf %896, %22 : vector<8x32xf32>
    %cst_443 = arith.constant 0.000000e+00 : f32
    %898 = vector.broadcast %cst_443 : f32 to vector<8x32xf32>
    %899 = arith.maximumf %897, %898 : vector<8x32xf32>
    %cst_444 = arith.constant dense<0.000000e+00> : vector<8x32xf32>
    %900 = tpu.matmul %899, %7, %cst_444 {dimension_numbers = #tpu.dot_dimension_numbers<[1], [0], [0], [1], [0, 0, 1, 1], [], []>} : vector<8x32xf32>, vector<32x32xf32>, vector<8x32xf32> -> vector<8x32xf32>
    %901 = arith.addf %900, %25 : vector<8x32xf32>
    %cst_445 = arith.constant 0.000000e+00 : f32
    %902 = vector.broadcast %cst_445 : f32 to vector<8x32xf32>
    %903 = arith.maximumf %901, %902 : vector<8x32xf32>
    %c3 = arith.constant 3 : index
    %c0_446 = arith.constant 0 : index
    %c0_447 = arith.constant 0 : index
    %904 = vector.load %arg20[%c3, %c0_446, %c0_447] : memref<4x8x2xf32, #tpu.memory_space<vmem>>, vector<1x8x2xf32>
    %905 = vector.shape_cast %904 : vector<1x8x2xf32> to vector<8x2xf32>
    %906 = vector.shape_cast %727 : vector<8x2xf32> to vector<1x8x2xf32>
    tpu.vector_store %arg20[%c3, %c0_446, %c0_447], %906 {strides = array<i32>} : memref<4x8x2xf32, #tpu.memory_space<vmem>>, vector<1x8x2xf32>,
    %c3_448 = arith.constant 3 : index
    %c0_449 = arith.constant 0 : index
    %c0_450 = arith.constant 0 : index
    %907 = vector.load %arg21[%c3_448, %c0_449, %c0_450] : memref<4x8x2xf32, #tpu.memory_space<vmem>>, vector<1x8x2xf32>
    %908 = vector.shape_cast %907 : vector<1x8x2xf32> to vector<8x2xf32>
    %909 = vector.shape_cast %728 : vector<8x2xf32> to vector<1x8x2xf32>
    tpu.vector_store %arg21[%c3_448, %c0_449, %c0_450], %909 {strides = array<i32>} : memref<4x8x2xf32, #tpu.memory_space<vmem>>, vector<1x8x2xf32>,
    %c0_451 = arith.constant 0 : index
    %c0_452 = arith.constant 0 : index
    %910 = vector.load %arg22[%c0_451, %c0_452] : memref<8x32xf32, #tpu.memory_space<vmem>>, vector<8x32xf32>
    tpu.vector_store %arg22[%c0_451, %c0_452], %903 {strides = array<i32>} : memref<8x32xf32, #tpu.memory_space<vmem>>, vector<8x32xf32>,
    return
  }
  func.func @transform_0(%arg0: i32) -> (i32, i32) {
    %c0_i32 = arith.constant 0 : i32
    %c0_i32_0 = arith.constant 0 : i32
    %c0_i32_1 = arith.constant 0 : i32
    return %c0_i32, %c0_i32_0 : i32, i32
  }
  func.func @transform_1(%arg0: i32) -> (i32, i32) {
    %c0_i32 = arith.constant 0 : i32
    %c0_i32_0 = arith.constant 0 : i32
    %c0_i32_1 = arith.constant 0 : i32
    return %c0_i32, %c0_i32_0 : i32, i32
  }
  func.func @transform_2(%arg0: i32) -> (i32, i32) {
    %c0_i32 = arith.constant 0 : i32
    %c0_i32_0 = arith.constant 0 : i32
    %c0_i32_1 = arith.constant 0 : i32
    return %c0_i32, %c0_i32_0 : i32, i32
  }
  func.func @transform_3(%arg0: i32) -> (i32, i32) {
    %c0_i32 = arith.constant 0 : i32
    %c0_i32_0 = arith.constant 0 : i32
    %c0_i32_1 = arith.constant 0 : i32
    return %c0_i32, %c0_i32_0 : i32, i32
  }
  func.func @transform_4(%arg0: i32) -> (i32, i32) {
    %c0_i32 = arith.constant 0 : i32
    %c0_i32_0 = arith.constant 0 : i32
    %c0_i32_1 = arith.constant 0 : i32
    return %c0_i32, %c0_i32_0 : i32, i32
  }
  func.func @transform_5(%arg0: i32) -> (i32, i32) {
    %c0_i32 = arith.constant 0 : i32
    %c0_i32_0 = arith.constant 0 : i32
    %c0_i32_1 = arith.constant 0 : i32
    return %c0_i32, %c0_i32_0 : i32, i32
  }
  func.func @transform_6(%arg0: i32) -> (i32, i32) {
    %c0_i32 = arith.constant 0 : i32
    %c0_i32_0 = arith.constant 0 : i32
    %c0_i32_1 = arith.constant 0 : i32
    return %c0_i32, %c0_i32_0 : i32, i32
  }
  func.func @transform_7(%arg0: i32) -> (i32, i32) {
    %c0_i32 = arith.constant 0 : i32
    %c0_i32_0 = arith.constant 0 : i32
    %c0_i32_1 = arith.constant 0 : i32
    return %c0_i32, %c0_i32_0 : i32, i32
  }
  func.func @transform_8(%arg0: i32) -> (i32, i32) {
    %c0_i32 = arith.constant 0 : i32
    %c0_i32_0 = arith.constant 0 : i32
    %c0_i32_1 = arith.constant 0 : i32
    return %c0_i32, %c0_i32_0 : i32, i32
  }
  func.func @transform_9(%arg0: i32) -> (i32, i32) {
    %c0_i32 = arith.constant 0 : i32
    %c0_i32_0 = arith.constant 0 : i32
    %c0_i32_1 = arith.constant 0 : i32
    return %c0_i32, %c0_i32_0 : i32, i32
  }
  func.func @transform_10(%arg0: i32) -> (i32, i32) {
    %c0_i32 = arith.constant 0 : i32
    %c0_i32_0 = arith.constant 0 : i32
    %c0_i32_1 = arith.constant 0 : i32
    return %c0_i32, %c0_i32_0 : i32, i32
  }
  func.func @transform_11(%arg0: i32) -> (i32, i32) {
    %c0_i32 = arith.constant 0 : i32
    %c0_i32_0 = arith.constant 0 : i32
    %c0_i32_1 = arith.constant 0 : i32
    return %c0_i32, %c0_i32_0 : i32, i32
  }
  func.func @transform_12(%arg0: i32) -> (i32, i32) {
    %c0_i32 = arith.constant 0 : i32
    %c0_i32_0 = arith.constant 0 : i32
    %c0_i32_1 = arith.constant 0 : i32
    return %c0_i32, %c0_i32_0 : i32, i32
  }
  func.func @transform_13(%arg0: i32) -> (i32, i32) {
    %c0_i32 = arith.constant 0 : i32
    %c0_i32_0 = arith.constant 0 : i32
    %c0_i32_1 = arith.constant 0 : i32
    return %c0_i32, %c0_i32_0 : i32, i32
  }
  func.func @transform_14(%arg0: i32) -> (i32, i32) {
    %c0_i32 = arith.constant 0 : i32
    %c0_i32_0 = arith.constant 0 : i32
    %c0_i32_1 = arith.constant 0 : i32
    return %c0_i32, %c0_i32_0 : i32, i32
  }
  func.func @transform_15(%arg0: i32) -> (i32, i32) {
    %c0_i32 = arith.constant 0 : i32
    %c0_i32_0 = arith.constant 0 : i32
    %c0_i32_1 = arith.constant 0 : i32
    return %c0_i32, %c0_i32_0 : i32, i32
  }
  func.func @transform_16(%arg0: i32) -> (i32, i32) {
    %c0_i32 = arith.constant 0 : i32
    %c0_i32_0 = arith.constant 0 : i32
    %c0_i32_1 = arith.constant 0 : i32
    return %c0_i32, %c0_i32_0 : i32, i32
  }
  func.func @transform_17(%arg0: i32) -> (i32, i32) {
    %c0_i32 = arith.constant 0 : i32
    %c0_i32_0 = arith.constant 0 : i32
    %c0_i32_1 = arith.constant 0 : i32
    return %c0_i32, %c0_i32_0 : i32, i32
  }
  func.func @transform_18(%arg0: i32) -> (i32, i32) {
    %c0_i32 = arith.constant 0 : i32
    %c0_i32_0 = arith.constant 0 : i32
    %c0_i32_1 = arith.constant 0 : i32
    return %c0_i32, %c0_i32_0 : i32, i32
  }
  func.func @transform_19(%arg0: i32) -> (i32, i32, i32) {
    %c0_i32 = arith.constant 0 : i32
    %c0_i32_0 = arith.constant 0 : i32
    %c0_i32_1 = arith.constant 0 : i32
    %c0_i32_2 = arith.constant 0 : i32
    return %c0_i32, %c0_i32_0, %c0_i32_1 : i32, i32, i32
  }
  func.func @transform_20(%arg0: i32) -> (i32, i32, i32) {
    %c0_i32 = arith.constant 0 : i32
    %c0_i32_0 = arith.constant 0 : i32
    %c0_i32_1 = arith.constant 0 : i32
    %c0_i32_2 = arith.constant 0 : i32
    return %c0_i32, %c0_i32_0, %c0_i32_1 : i32, i32, i32
  }
  func.func @transform_21(%arg0: i32) -> (i32, i32) {
    %c0_i32 = arith.constant 0 : i32
    %c0_i32_0 = arith.constant 0 : i32
    %c0_i32_1 = arith.constant 0 : i32
    return %c0_i32, %c0_i32_0 : i32, i32
  }
}

</mosaic_0001>

<llo_original>
// kernel: tpu_custom_call.1
$region0: #{tpu_custom_call.1}
  #allocation0 [shape = 'u32[]', space=smem, size = 0x4, offset = 0x4, fixed_abs, tag = 'smem constant byte address 0x4 - core index']
  #allocation1 [shape = 'u32[72,128]{1,0:T(1,128)}', space=vmem, size = 0x9000, scoped, tag = 'internal scratch']
  %s0 = inlined_call_operand.vmem [shape: f32[8,2], index: 0, kind: input, shape index: {}]
  %s1 = inlined_call_operand.vmem [shape: f32[8,2], index: 1, kind: input, shape index: {}]
  %s2 = inlined_call_operand.vmem [shape: f32[8,32], index: 2, kind: input, shape index: {}]
  %s3 = inlined_call_operand.vmem [shape: f32[8,32], index: 3, kind: input, shape index: {}]
  %s4 = inlined_call_operand.vmem [shape: f32[8,8], index: 4, kind: input, shape index: {}]
  %s5 = inlined_call_operand.vmem [shape: f32[2,16], index: 5, kind: input, shape index: {}]
  %s6 = inlined_call_operand.vmem [shape: f32[1,16], index: 6, kind: input, shape index: {}]
  %s7 = inlined_call_operand.vmem [shape: f32[16,128], index: 7, kind: input, shape index: {}]
  %s8 = inlined_call_operand.vmem [shape: f32[32,128], index: 8, kind: input, shape index: {}]
  %s9 = inlined_call_operand.vmem [shape: f32[1,128], index: 9, kind: input, shape index: {}]
  %s10 = inlined_call_operand.vmem [shape: f32[32,2], index: 10, kind: input, shape index: {}]
  %s11 = inlined_call_operand.vmem [shape: f32[1,2], index: 11, kind: input, shape index: {}]
  %s12 = inlined_call_operand.vmem [shape: f32[512,32], index: 12, kind: input, shape index: {}]
  %s13 = inlined_call_operand.vmem [shape: f32[1,32], index: 13, kind: input, shape index: {}]
  %s14 = inlined_call_operand.vmem [shape: f32[32,32], index: 14, kind: input, shape index: {}]
  %s15 = inlined_call_operand.vmem [shape: f32[32,32], index: 15, kind: input, shape index: {}]
  %s16 = inlined_call_operand.vmem [shape: f32[1,32], index: 16, kind: input, shape index: {}]
  %s17 = inlined_call_operand.vmem [shape: f32[32,32], index: 17, kind: input, shape index: {}]
  %s18 = inlined_call_operand.vmem [shape: f32[1,32], index: 18, kind: input, shape index: {}]
  %s19 = inlined_call_operand.vmem [shape: f32[4,8,2], index: 19, kind: output, shape index: {0}]
  %s20 = inlined_call_operand.vmem [shape: f32[4,8,2], index: 20, kind: output, shape index: {1}]
  %s21 = inlined_call_operand.hbm [shape: f32[8,32], index: 21, kind: output, shape index: {2}]
  %22 = xla_tuple %s19, %s20, %s21
  %s23 = sld [smem:[#allocation0]]
  $region102: #{tpu_custom_call.1} parent=0
    _
  %s25 = ssub.s32 1, %s23
  %s26 = scalar_select 0, %s25, %s23
  $region1: #{tpu_custom_call.1} parent=0
    #allocation2 [shape = 'u8[4096]{0}', space=vmem, size = 0x1000, scoped, tag = 'output window, operand 2, single buffered']
    #allocation3 [shape = 's32[1]{0}', space=sflag, size = 0x4, scoped, tag = 'scoped memory for tpu_custom_call.1']
    %27 = vsyncpa [#allocation3], 0
    // Predicated region
    $region2: #{tpu_custom_call.1} parent=1 // pred_check
      _
    $region3: #{tpu_custom_call.1} parent=1 // pred_check_branch
      %29 = sbr.rel (0) target = $region5
    $region4: #{tpu_custom_call.1} parent=1 // pred_region
      _
    $region5: #{tpu_custom_call.1} parent=1 // pred_fallthru
      _
    // Predicated region
    $region6: #{tpu_custom_call.1} parent=1 // pred_check
      _
    $region7: #{tpu_custom_call.1} parent=1 // pred_check_branch
      %31 = sbr.rel (0) target = $region9
    $region8: #{tpu_custom_call.1} parent=1 // pred_region
      _
    $region9: #{tpu_custom_call.1} parent=1 // pred_fallthru
      _
    // Predicated region
    $region10: #{tpu_custom_call.1} parent=1 // pred_check
      _
    $region11: #{tpu_custom_call.1} parent=1 // pred_check_branch
      %33 = sbr.rel (0) target = $region13
    $region12: #{tpu_custom_call.1} parent=1 // pred_region
      _
    $region13: #{tpu_custom_call.1} parent=1 // pred_fallthru
      _
    // Predicated region
    $region14: #{tpu_custom_call.1} parent=1 // pred_check
      _
    $region15: #{tpu_custom_call.1} parent=1 // pred_check_branch
      %35 = sbr.rel (0) target = $region17
    $region16: #{tpu_custom_call.1} parent=1 // pred_region
      _
    $region17: #{tpu_custom_call.1} parent=1 // pred_fallthru
      _
    // Predicated region
    $region18: #{tpu_custom_call.1} parent=1 // pred_check
      _
    $region19: #{tpu_custom_call.1} parent=1 // pred_check_branch
      %37 = sbr.rel (0) target = $region21
    $region20: #{tpu_custom_call.1} parent=1 // pred_region
      _
    $region21: #{tpu_custom_call.1} parent=1 // pred_fallthru
      _
    // Predicated region
    $region22: #{tpu_custom_call.1} parent=1 // pred_check
      _
    $region23: #{tpu_custom_call.1} parent=1 // pred_check_branch
      %39 = sbr.rel (0) target = $region25
    $region24: #{tpu_custom_call.1} parent=1 // pred_region
      _
    $region25: #{tpu_custom_call.1} parent=1 // pred_fallthru
      _
    // Predicated region
    $region26: #{tpu_custom_call.1} parent=1 // pred_check
      _
    $region27: #{tpu_custom_call.1} parent=1 // pred_check_branch
      %41 = sbr.rel (0) target = $region29
    $region28: #{tpu_custom_call.1} parent=1 // pred_region
      _
    $region29: #{tpu_custom_call.1} parent=1 // pred_fallthru
      _
    // Predicated region
    $region30: #{tpu_custom_call.1} parent=1 // pred_check
      _
    $region31: #{tpu_custom_call.1} parent=1 // pred_check_branch
      %43 = sbr.rel (0) target = $region33
    $region32: #{tpu_custom_call.1} parent=1 // pred_region
      _
    $region33: #{tpu_custom_call.1} parent=1 // pred_fallthru
      _
    // Predicated region
    $region34: #{tpu_custom_call.1} parent=1 // pred_check
      _
    $region35: #{tpu_custom_call.1} parent=1 // pred_check_branch
      %45 = sbr.rel (0) target = $region37
    $region36: #{tpu_custom_call.1} parent=1 // pred_region
      _
    $region37: #{tpu_custom_call.1} parent=1 // pred_fallthru
      _
    // Predicated region
    $region38: #{tpu_custom_call.1} parent=1 // pred_check
      _
    $region39: #{tpu_custom_call.1} parent=1 // pred_check_branch
      %47 = sbr.rel (0) target = $region41
    $region40: #{tpu_custom_call.1} parent=1 // pred_region
      _
    $region41: #{tpu_custom_call.1} parent=1 // pred_fallthru
      _
    // Predicated region
    $region42: #{tpu_custom_call.1} parent=1 // pred_check
      _
    $region43: #{tpu_custom_call.1} parent=1 // pred_check_branch
      %49 = sbr.rel (0) target = $region45
    $region44: #{tpu_custom_call.1} parent=1 // pred_region
      _
    $region45: #{tpu_custom_call.1} parent=1 // pred_fallthru
      _
    // Predicated region
    $region46: #{tpu_custom_call.1} parent=1 // pred_check
      _
    $region47: #{tpu_custom_call.1} parent=1 // pred_check_branch
      %51 = sbr.rel (0) target = $region49
    $region48: #{tpu_custom_call.1} parent=1 // pred_region
      _
    $region49: #{tpu_custom_call.1} parent=1 // pred_fallthru
      _
    // Predicated region
    $region50: #{tpu_custom_call.1} parent=1 // pred_check
      _
    $region51: #{tpu_custom_call.1} parent=1 // pred_check_branch
      %53 = sbr.rel (0) target = $region53
    $region52: #{tpu_custom_call.1} parent=1 // pred_region
      _
    $region53: #{tpu_custom_call.1} parent=1 // pred_fallthru
      _
    // Predicated region
    $region54: #{tpu_custom_call.1} parent=1 // pred_check
      _
    $region55: #{tpu_custom_call.1} parent=1 // pred_check_branch
      %55 = sbr.rel (0) target = $region57
    $region56: #{tpu_custom_call.1} parent=1 // pred_region
      _
    $region57: #{tpu_custom_call.1} parent=1 // pred_fallthru
      _
    // Predicated region
    $region58: #{tpu_custom_call.1} parent=1 // pred_check
      _
    $region59: #{tpu_custom_call.1} parent=1 // pred_check_branch
      %57 = sbr.rel (0) target = $region61
    $region60: #{tpu_custom_call.1} parent=1 // pred_region
      _
    $region61: #{tpu_custom_call.1} parent=1 // pred_fallthru
      _
    // Predicated region
    $region62: #{tpu_custom_call.1} parent=1 // pred_check
      _
    $region63: #{tpu_custom_call.1} parent=1 // pred_check_branch
      %59 = sbr.rel (0) target = $region65
    $region64: #{tpu_custom_call.1} parent=1 // pred_region
      _
    $region65: #{tpu_custom_call.1} parent=1 // pred_fallthru
      _
    // Predicated region
    $region66: #{tpu_custom_call.1} parent=1 // pred_check
      _
    $region67: #{tpu_custom_call.1} parent=1 // pred_check_branch
      %61 = sbr.rel (0) target = $region69
    $region68: #{tpu_custom_call.1} parent=1 // pred_region
      _
    $region69: #{tpu_custom_call.1} parent=1 // pred_fallthru
      _
    // Predicated region
    $region70: #{tpu_custom_call.1} parent=1 // pred_check
      _
    $region71: #{tpu_custom_call.1} parent=1 // pred_check_branch
      %63 = sbr.rel (0) target = $region73
    $region72: #{tpu_custom_call.1} parent=1 // pred_region
      _
    $region73: #{tpu_custom_call.1} parent=1 // pred_fallthru
      _
    // Predicated region
    $region74: #{tpu_custom_call.1} parent=1 // pred_check
      _
    $region75: #{tpu_custom_call.1} parent=1 // pred_check_branch
      %65 = sbr.rel (0) target = $region77
    $region76: #{tpu_custom_call.1} parent=1 // pred_region
      _
    $region77: #{tpu_custom_call.1} parent=1 // pred_fallthru
      _
    %v66 = vld [vmem:[%s5] sm:$0x3]
    %v67 = vld [vmem:[%s7] sm:$0xff]
    %v68 = vld [vmem:[%s7 + $0x8] sm:$0xff]
    %v69 = vld [vmem:[%s8] sm:$0xff]
    %v70 = vld [vmem:[%s8 + $0x8] sm:$0xff]
    %v71 = vld [vmem:[%s8 + $0x10] sm:$0xff]
    %v72 = vld [vmem:[%s8 + $0x18] sm:$0xff]
    %v73 = vld [vmem:[%s10] sm:$0xff]
    %v74 = vld [vmem:[%s10 + $0x8] sm:$0xff]
    %v75 = vld [vmem:[%s10 + $0x10] sm:$0xff]
    %v76 = vld [vmem:[%s10 + $0x18] sm:$0xff]
    %v77 = vld [vmem:[%s12] sm:$0xff]
    %v78 = vld [vmem:[%s12 + $0x8] sm:$0xff]
    %v79 = vld [vmem:[%s12 + $0x10] sm:$0xff]
    %v80 = vld [vmem:[%s12 + $0x18] sm:$0xff]
    %v81 = vld [vmem:[%s12 + $0x20] sm:$0xff]
    %v82 = vld [vmem:[%s12 + $0x28] sm:$0xff]
    %v83 = vld [vmem:[%s12 + $0x30] sm:$0xff]
    %v84 = vld [vmem:[%s12 + $0x38] sm:$0xff]
    %v85 = vld [vmem:[%s12 + $0x40] sm:$0xff]
    %v86 = vld [vmem:[%s12 + $0x48] sm:$0xff]
    %v87 = vld [vmem:[%s12 + $0x50] sm:$0xff]
    %v88 = vld [vmem:[%s12 + $0x58] sm:$0xff]
    %v89 = vld [vmem:[%s12 + $0x60] sm:$0xff]
    %v90 = vld [vmem:[%s12 + $0x68] sm:$0xff]
    %v91 = vld [vmem:[%s12 + $0x70] sm:$0xff]
    %v92 = vld [vmem:[%s12 + $0x78] sm:$0xff]
    %v93 = vld [vmem:[%s12 + $0x80] sm:$0xff]
    %v94 = vld [vmem:[%s12 + $0x88] sm:$0xff]
    %v95 = vld [vmem:[%s12 + $0x90] sm:$0xff]
    %v96 = vld [vmem:[%s12 + $0x98] sm:$0xff]
    %v97 = vld [vmem:[%s12 + $0xa0] sm:$0xff]
    %v98 = vld [vmem:[%s12 + $0xa8] sm:$0xff]
    %v99 = vld [vmem:[%s12 + $0xb0] sm:$0xff]
    %v100 = vld [vmem:[%s12 + $0xb8] sm:$0xff]
    %v101 = vld [vmem:[%s12 + $0xc0] sm:$0xff]
    %v102 = vld [vmem:[%s12 + $0xc8] sm:$0xff]
    %v103 = vld [vmem:[%s12 + $0xd0] sm:$0xff]
    %v104 = vld [vmem:[%s12 + $0xd8] sm:$0xff]
    %v105 = vld [vmem:[%s12 + $0xe0] sm:$0xff]
    %v106 = vld [vmem:[%s12 + $0xe8] sm:$0xff]
    %v107 = vld [vmem:[%s12 + $0xf0] sm:$0xff]
    %v108 = vld [vmem:[%s12 + $0xf8] sm:$0xff]
    %v109 = vld [vmem:[%s12 + $0x100] sm:$0xff]
    %v110 = vld [vmem:[%s12 + $0x108] sm:$0xff]
    %v111 = vld [vmem:[%s12 + $0x110] sm:$0xff]
    %v112 = vld [vmem:[%s12 + $0x118] sm:$0xff]
    %v113 = vld [vmem:[%s12 + $0x120] sm:$0xff]
    %v114 = vld [vmem:[%s12 + $0x128] sm:$0xff]
    %v115 = vld [vmem:[%s12 + $0x130] sm:$0xff]
    %v116 = vld [vmem:[%s12 + $0x138] sm:$0xff]
    %v117 = vld [vmem:[%s12 + $0x140] sm:$0xff]
    %v118 = vld [vmem:[%s12 + $0x148] sm:$0xff]
    %v119 = vld [vmem:[%s12 + $0x150] sm:$0xff]
    %v120 = vld [vmem:[%s12 + $0x158] sm:$0xff]
    %v121 = vld [vmem:[%s12 + $0x160] sm:$0xff]
    %v122 = vld [vmem:[%s12 + $0x168] sm:$0xff]
    %v123 = vld [vmem:[%s12 + $0x170] sm:$0xff]
    %v124 = vld [vmem:[%s12 + $0x178] sm:$0xff]
    %v125 = vld [vmem:[%s12 + $0x180] sm:$0xff]
    %v126 = vld [vmem:[%s12 + $0x188] sm:$0xff]
    %v127 = vld [vmem:[%s12 + $0x190] sm:$0xff]
    %v128 = vld [vmem:[%s12 + $0x198] sm:$0xff]
    %v129 = vld [vmem:[%s12 + $0x1a0] sm:$0xff]
    %v130 = vld [vmem:[%s12 + $0x1a8] sm:$0xff]
    %v131 = vld [vmem:[%s12 + $0x1b0] sm:$0xff]
    %v132 = vld [vmem:[%s12 + $0x1b8] sm:$0xff]
    %v133 = vld [vmem:[%s12 + $0x1c0] sm:$0xff]
    %v134 = vld [vmem:[%s12 + $0x1c8] sm:$0xff]
    %v135 = vld [vmem:[%s12 + $0x1d0] sm:$0xff]
    %v136 = vld [vmem:[%s12 + $0x1d8] sm:$0xff]
    %v137 = vld [vmem:[%s12 + $0x1e0] sm:$0xff]
    %v138 = vld [vmem:[%s12 + $0x1e8] sm:$0xff]
    %v139 = vld [vmem:[%s12 + $0x1f0] sm:$0xff]
    %v140 = vld [vmem:[%s12 + $0x1f8] sm:$0xff]
    %v141 = vld [vmem:[%s14] sm:$0xff]
    %v142 = vld [vmem:[%s14 + $0x8] sm:$0xff]
    %v143 = vld [vmem:[%s14 + $0x10] sm:$0xff]
    %v144 = vld [vmem:[%s14 + $0x18] sm:$0xff]
    %v145 = vld [vmem:[%s15] sm:$0xff]
    %v146 = vld [vmem:[%s15 + $0x8] sm:$0xff]
    %v147 = vld [vmem:[%s15 + $0x10] sm:$0xff]
    %v148 = vld [vmem:[%s15 + $0x18] sm:$0xff]
    %v149 = vld [vmem:[%s17] sm:$0xff]
    %v150 = vld [vmem:[%s17 + $0x8] sm:$0xff]
    %v151 = vld [vmem:[%s17 + $0x10] sm:$0xff]
    %v152 = vld [vmem:[%s17 + $0x18] sm:$0xff]
    %v153 = vld [vmem:[%s6] sm:$0x1]
    %v155 = vperm.slane %v153, 0
    %v157 = vld [vmem:[%s9] sm:$0x1]
    %v159 = vperm.slane %v157, 0
    %v161 = vld [vmem:[%s11] sm:$0x1]
    %v163 = vperm.slane %v161, 0
    %v165 = vld [vmem:[%s13] sm:$0x1]
    %v167 = vperm.slane %v165, 0
    %v169 = vld [vmem:[%s16] sm:$0x1]
    %v171 = vperm.slane %v169, 0
    %v173 = vld [vmem:[%s18] sm:$0x1]
    %v175 = vperm.slane %v173, 0
    %v177 = vld [vmem:[%s4] sm:$0xff]
    %vm178 = vcmp.gt.f32.partialorder %v177, 0.5
    %v179 = vld [vmem:[%s2] sm:$0xff]
    %v180 = vld [vmem:[%s3] sm:$0xff]
    %v181 = vld [vmem:[%s0] sm:$0xff]
    %v182 = vld [vmem:[%s1] sm:$0xff]
    %vm183 = vcmask 15360
    %v185 = vsel %vm183, %v182, 0
    %vm187 = vcmask 1041408
    %v189 = vsel %vm187, %v66, 0
    %191 = vmatpush.msra.mxu0 0.0
    %192 = vmatpush.msra.mxu0 0.0
    %193 = vmatpush.msra.mxu0 0.0
    %194 = vmatpush.msra.mxu0 0.0
    %195 = vmatpush.msra.mxu0 0.0
    %196 = vmatpush.msra.mxu0 0.0
    %197 = vmatpush.msra.mxu0 0.0
    %198 = vmatpush.msra.mxu0 0.0
    %199 = vmatpush.msra.mxu0 0.0
    %200 = vmatpush.msra.mxu0 0.0
    %201 = vmatpush.msra.mxu0 0.0
    %202 = vmatpush.msra.mxu0 0.0
    %203 = vmatpush.msra.mxu0 0.0
    %204 = vmatpush.msra.mxu0 0.0
    %205 = vmatpush.msra.mxu0 0.0
    %206 = vmatpush.msra.mxu0 %v189
    %207 = vmatmul.f32.gmra.mxu0 %v185
    %v208 = vpop.f32.mrf.mxu0
    %v209 = vadd.f32 %v155, %v208
    %210 = vdwg.mxu0
    %v211 = vmax.f32 %v209, 0.0
    %v212 = vmin.f32 %v211, 6.0
    %vm213 = vcmask 261120
    %v215 = vsel %vm213, %v179, 0
    %217 = vmatpush.msra.mxu0 0.0
    %218 = vmatpush.msra.mxu0 0.0
    %219 = vmatpush.msra.mxu0 0.0
    %220 = vmatpush.msra.mxu0 0.0
    %221 = vmatpush.msra.mxu0 0.0
    %222 = vmatpush.msra.mxu0 0.0
    %223 = vmatpush.msra.mxu0 0.0
    %224 = vmatpush.msra.mxu0 0.0
    %225 = vmatpush.msra.mxu0 0.0
    %226 = vmatpush.msra.mxu0 0.0
    %227 = vmatpush.msra.mxu0 0.0
    %228 = vmatpush.msra.mxu0 0.0
    %229 = vmatpush.msra.mxu0 %v72
    %230 = vmatpush.msra.mxu0 %v71
    %231 = vmatpush.msra.mxu0 %v70
    %232 = vmatpush.msra.mxu0 %v69
    %233 = vmatmul.f32.gmra.mxu0 %v215
    %v234 = vpop.f32.mrf.mxu0
    %v235 = vadd.f32 0.0, %v234
    %236 = vdwg.mxu0
    %vm237 = vcmask 130048
    %v239 = vsel %vm237, %v212, 0
    %241 = vmatpush.msra.mxu0 0.0
    %242 = vmatpush.msra.mxu0 0.0
    %243 = vmatpush.msra.mxu0 0.0
    %244 = vmatpush.msra.mxu0 0.0
    %245 = vmatpush.msra.mxu0 0.0
    %246 = vmatpush.msra.mxu0 0.0
    %247 = vmatpush.msra.mxu0 0.0
    %248 = vmatpush.msra.mxu0 0.0
    %249 = vmatpush.msra.mxu0 0.0
    %250 = vmatpush.msra.mxu0 0.0
    %251 = vmatpush.msra.mxu0 0.0
    %252 = vmatpush.msra.mxu0 0.0
    %253 = vmatpush.msra.mxu0 0.0
    %254 = vmatpush.msra.mxu0 0.0
    %255 = vmatpush.msra.mxu0 %v68
    %256 = vmatpush.msra.mxu0 %v67
    %257 = vmatmul.f32.gmra.mxu0 %v239
    %v258 = vpop.f32.mrf.mxu0
    %v259 = vadd.f32 %v235, %v258
    %260 = vdwg.mxu0
    %v261 = vadd.f32 %v259, %v159
    %v262 = vxor.u32 %v261, 2147483648
    %v263 = vmul.f32 %v262, 1.442695
    %v264 = vpow.pop %v263
    %v265 = vadd.f32 %v264, 1.0
    %v266 = vrcp.pop %v265
    %v267 = vmul.f32 %v265, %v266
    %v268 = vsub.f32 1.0, %v267
    %v269 = vmul.f32 %v266, %v268
    %v270 = vadd.f32 %v266, %v269
    %vm271 = vweird.f32 %v265
    %vm272 = vweird.f32 %v266
    %vm273 = vmor %vm271, %vm272
    %v274 = vsel %vm273, %v266, %v270
    %v275 = vand.u32 2147483647, %v265
    %vm276 = vcmp.eq.f32.partialorder %v275, 8.507059e+37
    %v277 = vand.u32 %v265, 2147483648
    %v278 = vor.u32 1.1754944e-38, %v277
    %v279 = vsel %vm276, %v278, %v274
    %v280 = vmul.f32 1.0, %v279
    %v281 = vtanh.pop %v261
    %283 = vrot.lane.b32.xlu0 %v180, 32
    %v284 = vpop.permute.xlu0 %283
    %v286 = vmul.f32 %v280, %v284
    %288 = vrot.lane.b32.xlu0 %v281, 64
    %v289 = vpop.permute.xlu0 %288
    %v291 = vmul.f32 %v280, %v289
    %293 = vrot.lane.b32.xlu0 %v291, 32
    %v294 = vpop.permute.xlu0 %293
    %v296 = vadd.f32 %v286, %v294
    %v297 = vtanh.pop %v296
    %299 = vrot.lane.b32.xlu0 %v297, 64
    %v300 = vpop.permute.xlu0 %299
    %v302 = vmul.f32 %v280, %v300
    %304 = vrot.lane.b32.xlu0 %v302, 32
    %v305 = vpop.permute.xlu0 %304
    %v306 = vsel %vm213, %v305, 0
    %308 = vmatpush.msra.mxu0 0.0
    %309 = vmatpush.msra.mxu0 0.0
    %310 = vmatpush.msra.mxu0 0.0
    %311 = vmatpush.msra.mxu0 0.0
    %312 = vmatpush.msra.mxu0 0.0
    %313 = vmatpush.msra.mxu0 0.0
    %314 = vmatpush.msra.mxu0 0.0
    %315 = vmatpush.msra.mxu0 0.0
    %316 = vmatpush.msra.mxu0 0.0
    %317 = vmatpush.msra.mxu0 0.0
    %318 = vmatpush.msra.mxu0 0.0
    %319 = vmatpush.msra.mxu0 0.0
    %320 = vmatpush.msra.mxu0 %v76
    %321 = vmatpush.msra.mxu0 %v75
    %322 = vmatpush.msra.mxu0 %v74
    %323 = vmatpush.msra.mxu0 %v73
    %324 = vmatmul.f32.gmra.mxu0 %v306
    %v325 = vpop.f32.mrf.mxu0
    %v326 = vadd.f32 %v163, %v325
    %327 = vdwg.mxu0
    %v328 = vadd.f32 %v326, %v181
    %vm329 = vcmask 7168
    %v331 = vsel %vm329, 1.0, 0
    %v334 = vsel %vm329, %v328, 0
    %336 = vmatpush.xpose.msra.mxu0 0.0
    %337 = vmatpush.xpose.msra.mxu0 0.0
    %338 = vmatpush.xpose.msra.mxu0 0.0
    %339 = vmatpush.xpose.msra.mxu0 0.0
    %340 = vmatpush.xpose.msra.mxu0 0.0
    %341 = vmatpush.xpose.msra.mxu0 0.0
    %342 = vmatpush.xpose.msra.mxu0 0.0
    %343 = vmatpush.xpose.msra.mxu0 0.0
    %344 = vmatpush.xpose.msra.mxu0 0.0
    %345 = vmatpush.xpose.msra.mxu0 0.0
    %346 = vmatpush.xpose.msra.mxu0 0.0
    %347 = vmatpush.xpose.msra.mxu0 0.0
    %348 = vmatpush.xpose.msra.mxu0 0.0
    %349 = vmatpush.xpose.msra.mxu0 0.0
    %350 = vmatpush.xpose.msra.mxu0 0.0
    %351 = vmatpush.xpose.msra.mxu0 %v334
    %352 = vmatmul.f32.gmra.mxu0 %v331
    %v353 = vpop.f32.mrf.mxu0
    %v354 = vadd.f32 0.0, %v353
    %355 = vdwg.mxu0
    %356 = vrot.lane.b32.xlu0 %v328, 127
    %v357 = vpop.permute.xlu0 %356
    %v358 = vsel %vm329, %v357, 0
    %360 = vmatpush.xpose.msra.mxu0 0.0
    %361 = vmatpush.xpose.msra.mxu0 0.0
    %362 = vmatpush.xpose.msra.mxu0 0.0
    %363 = vmatpush.xpose.msra.mxu0 0.0
    %364 = vmatpush.xpose.msra.mxu0 0.0
    %365 = vmatpush.xpose.msra.mxu0 0.0
    %366 = vmatpush.xpose.msra.mxu0 0.0
    %367 = vmatpush.xpose.msra.mxu0 0.0
    %368 = vmatpush.xpose.msra.mxu0 0.0
    %369 = vmatpush.xpose.msra.mxu0 0.0
    %370 = vmatpush.xpose.msra.mxu0 0.0
    %371 = vmatpush.xpose.msra.mxu0 0.0
    %372 = vmatpush.xpose.msra.mxu0 0.0
    %373 = vmatpush.xpose.msra.mxu0 0.0
    %374 = vmatpush.xpose.msra.mxu0 0.0
    %375 = vmatpush.xpose.msra.mxu0 %v358
    %376 = vmatmul.f32.gmra.mxu0 %v331
    %v377 = vpop.f32.mrf.mxu0
    %v378 = vadd.f32 0.0, %v377
    %379 = vdwg.mxu0
    %380 = vset.pattern.permute.xlu0 0
    %381 = vperm.xlu0 %380, %v328
    %v382 = vpop.permute.xlu0 %381
    %v384 = vsub.f32 %v354, %v382
    %385 = vset.pattern.permute.xlu0 1
    %386 = vperm.xlu0 %385, %v328
    %v387 = vpop.permute.xlu0 %386
    %v389 = vsub.f32 %v378, %v387
    %vm390 = vcmp.ge.f32.partialorder %v384, 1.0
    %vm391 = vcmp.le.f32.partialorder %v384, -1.0
    %vm392 = vmor %vm390, %vm391
    %vm393 = vcmp.ge.f32.partialorder %v389, 1.0
    %vm394 = vcmp.le.f32.partialorder %v389, -1.0
    %vm395 = vmor %vm393, %vm394
    %vm396 = vmor %vm392, %vm395
    %v397 = vadd.f32 %v384, 1.0
    %v398 = vrcp.pop 2.0
    %v399 = vmul.f32 2.0, %v398
    %v400 = vsub.f32 1.0, %v399
    %v401 = vmul.f32 %v398, %v400
    %v402 = vadd.f32 %v398, %v401
    %vm403 = vweird.f32 %v398
    %v404 = vsel %vm403, %v398, %v402
    %v405 = vmul.f32 %v397, %v404
    %v406 = vmul.f32 %v405, 4.0
    %v407 = vfloor.f32 %v406
    %vm408 = vcmp.eq.f32.partialorder %v407, 4.0
    %v409 = vsub.f32 %v407, 1.0
    %v410 = vsel %vm408, %v409, %v407
    %v411 = vsub.f32 1.0, %v389
    %v412 = vmul.f32 %v411, %v404
    %v413 = vmul.f32 %v412, 4.0
    %v414 = vfloor.f32 %v413
    %vm415 = vcmp.eq.f32.partialorder %v414, 4.0
    %v416 = vsub.f32 %v414, 1.0
    %v417 = vsel %vm415, %v416, %v414
    %v418 = vmul.f32 %v417, 4.0
    %v419 = vadd.f32 %v410, %v418
    %vm420 = vmxor %vm396, 1
    %vm421 = vmand %vm178, %vm420
    %vm422 = vcmp.eq.f32.partialorder %v419, 0.0
    %vm423 = vmand %vm422, %vm421
    %v424 = vsel %vm423, 1.0, 0.0
    %vm426 = vcmask 64512
    %v428 = vsel %vm426, %v424, 0
    %430 = vmatpush.msra.mxu0 0.0
    %431 = vmatpush.msra.mxu0 0.0
    %432 = vmatpush.msra.mxu0 0.0
    %433 = vmatpush.msra.mxu0 0.0
    %434 = vmatpush.msra.mxu0 0.0
    %435 = vmatpush.msra.mxu0 0.0
    %436 = vmatpush.msra.mxu0 0.0
    %437 = vmatpush.msra.mxu0 0.0
    %438 = vmatpush.msra.mxu0 0.0
    %439 = vmatpush.msra.mxu0 0.0
    %440 = vmatpush.msra.mxu0 0.0
    %441 = vmatpush.msra.mxu0 0.0
    %442 = vmatpush.msra.mxu0 0.0
    %443 = vmatpush.msra.mxu0 0.0
    %444 = vmatpush.msra.mxu0 0.0
    %445 = vmatpush.msra.mxu0 %v305
    %446 = vmatmul.f32.gmra.mxu0 %v428
    %v447 = vpop.f32.mrf.mxu0
    %v448 = vadd.f32 0.0, %v447
    %449 = vdwg.mxu0
    %vm450 = vcmp.eq.f32.partialorder %v419, 1.0
    %vm451 = vmand %vm450, %vm421
    %v452 = vsel %vm451, 1.0, 0.0
    %v454 = vsel %vm426, %v452, 0
    %456 = vmatpush.msra.mxu0 0.0
    %457 = vmatpush.msra.mxu0 0.0
    %458 = vmatpush.msra.mxu0 0.0
    %459 = vmatpush.msra.mxu0 0.0
    %460 = vmatpush.msra.mxu0 0.0
    %461 = vmatpush.msra.mxu0 0.0
    %462 = vmatpush.msra.mxu0 0.0
    %463 = vmatpush.msra.mxu0 0.0
    %464 = vmatpush.msra.mxu0 0.0
    %465 = vmatpush.msra.mxu0 0.0
    %466 = vmatpush.msra.mxu0 0.0
    %467 = vmatpush.msra.mxu0 0.0
    %468 = vmatpush.msra.mxu0 0.0
    %469 = vmatpush.msra.mxu0 0.0
    %470 = vmatpush.msra.mxu0 0.0
    %471 = vmatpush.msra.mxu0 %v305
    %472 = vmatmul.f32.gmra.mxu0 %v454
    %v473 = vpop.f32.mrf.mxu0
    %v474 = vadd.f32 0.0, %v473
    %475 = vdwg.mxu0
    %vm476 = vcmp.eq.f32.partialorder %v419, 2.0
    %vm477 = vmand %vm476, %vm421
    %v478 = vsel %vm477, 1.0, 0.0
    %v480 = vsel %vm426, %v478, 0
    %482 = vmatpush.msra.mxu0 0.0
    %483 = vmatpush.msra.mxu0 0.0
    %484 = vmatpush.msra.mxu0 0.0
    %485 = vmatpush.msra.mxu0 0.0
    %486 = vmatpush.msra.mxu0 0.0
    %487 = vmatpush.msra.mxu0 0.0
    %488 = vmatpush.msra.mxu0 0.0
    %489 = vmatpush.msra.mxu0 0.0
    %490 = vmatpush.msra.mxu0 0.0
    %491 = vmatpush.msra.mxu0 0.0
    %492 = vmatpush.msra.mxu0 0.0
    %493 = vmatpush.msra.mxu0 0.0
    %494 = vmatpush.msra.mxu0 0.0
    %495 = vmatpush.msra.mxu0 0.0
    %496 = vmatpush.msra.mxu0 0.0
    %497 = vmatpush.msra.mxu0 %v305
    %498 = vmatmul.f32.gmra.mxu0 %v480
    %v499 = vpop.f32.mrf.mxu0
    %v500 = vadd.f32 0.0, %v499
    %501 = vdwg.mxu0
    %vm502 = vcmp.eq.f32.partialorder %v419, 3.0
    %vm503 = vmand %vm502, %vm421
    %v504 = vsel %vm503, 1.0, 0.0
    %v506 = vsel %vm426, %v504, 0
    %508 = vmatpush.msra.mxu0 0.0
    %509 = vmatpush.msra.mxu0 0.0
    %510 = vmatpush.msra.mxu0 0.0
    %511 = vmatpush.msra.mxu0 0.0
    %512 = vmatpush.msra.mxu0 0.0
    %513 = vmatpush.msra.mxu0 0.0
    %514 = vmatpush.msra.mxu0 0.0
    %515 = vmatpush.msra.mxu0 0.0
    %516 = vmatpush.msra.mxu0 0.0
    %517 = vmatpush.msra.mxu0 0.0
    %518 = vmatpush.msra.mxu0 0.0
    %519 = vmatpush.msra.mxu0 0.0
    %520 = vmatpush.msra.mxu0 0.0
    %521 = vmatpush.msra.mxu0 0.0
    %522 = vmatpush.msra.mxu0 0.0
    %523 = vmatpush.msra.mxu0 %v305
    %524 = vmatmul.f32.gmra.mxu0 %v506
    %v525 = vpop.f32.mrf.mxu0
    %v526 = vadd.f32 0.0, %v525
    %527 = vdwg.mxu0
    %vm528 = vcmp.eq.f32.partialorder %v419, 4.0
    %vm529 = vmand %vm528, %vm421
    %v530 = vsel %vm529, 1.0, 0.0
    %v532 = vsel %vm426, %v530, 0
    %534 = vmatpush.msra.mxu0 0.0
    %535 = vmatpush.msra.mxu0 0.0
    %536 = vmatpush.msra.mxu0 0.0
    %537 = vmatpush.msra.mxu0 0.0
    %538 = vmatpush.msra.mxu0 0.0
    %539 = vmatpush.msra.mxu0 0.0
    %540 = vmatpush.msra.mxu0 0.0
    %541 = vmatpush.msra.mxu0 0.0
    %542 = vmatpush.msra.mxu0 0.0
    %543 = vmatpush.msra.mxu0 0.0
    %544 = vmatpush.msra.mxu0 0.0
    %545 = vmatpush.msra.mxu0 0.0
    %546 = vmatpush.msra.mxu0 0.0
    %547 = vmatpush.msra.mxu0 0.0
    %548 = vmatpush.msra.mxu0 0.0
    %549 = vmatpush.msra.mxu0 %v305
    %550 = vmatmul.f32.gmra.mxu0 %v532
    %v551 = vpop.f32.mrf.mxu0
    %v552 = vadd.f32 0.0, %v551
    %553 = vdwg.mxu0
    %vm554 = vcmp.eq.f32.partialorder %v419, 5.0
    %vm555 = vmand %vm554, %vm421
    %v556 = vsel %vm555, 1.0, 0.0
    %v558 = vsel %vm426, %v556, 0
    %560 = vmatpush.msra.mxu0 0.0
    %561 = vmatpush.msra.mxu0 0.0
    %562 = vmatpush.msra.mxu0 0.0
    %563 = vmatpush.msra.mxu0 0.0
    %564 = vmatpush.msra.mxu0 0.0
    %565 = vmatpush.msra.mxu0 0.0
    %566 = vmatpush.msra.mxu0 0.0
    %567 = vmatpush.msra.mxu0 0.0
    %568 = vmatpush.msra.mxu0 0.0
    %569 = vmatpush.msra.mxu0 0.0
    %570 = vmatpush.msra.mxu0 0.0
    %571 = vmatpush.msra.mxu0 0.0
    %572 = vmatpush.msra.mxu0 0.0
    %573 = vmatpush.msra.mxu0 0.0
    %574 = vmatpush.msra.mxu0 0.0
    %575 = vmatpush.msra.mxu0 %v305
    %576 = vmatmul.f32.gmra.mxu0 %v558
    %v577 = vpop.f32.mrf.mxu0
    %v578 = vadd.f32 0.0, %v577
    %579 = vdwg.mxu0
    %vm580 = vcmp.eq.f32.partialorder %v419, 6.0
    %vm581 = vmand %vm580, %vm421
    %v582 = vsel %vm581, 1.0, 0.0
    %v584 = vsel %vm426, %v582, 0
    %586 = vmatpush.msra.mxu0 0.0
    %587 = vmatpush.msra.mxu0 0.0
    %588 = vmatpush.msra.mxu0 0.0
    %589 = vmatpush.msra.mxu0 0.0
    %590 = vmatpush.msra.mxu0 0.0
    %591 = vmatpush.msra.mxu0 0.0
    %592 = vmatpush.msra.mxu0 0.0
    %593 = vmatpush.msra.mxu0 0.0
    %594 = vmatpush.msra.mxu0 0.0
    %595 = vmatpush.msra.mxu0 0.0
    %596 = vmatpush.msra.mxu0 0.0
    %597 = vmatpush.msra.mxu0 0.0
    %598 = vmatpush.msra.mxu0 0.0
    %599 = vmatpush.msra.mxu0 0.0
    %600 = vmatpush.msra.mxu0 0.0
    %601 = vmatpush.msra.mxu0 %v305
    %602 = vmatmul.f32.gmra.mxu0 %v584
    %v603 = vpop.f32.mrf.mxu0
    %v604 = vadd.f32 0.0, %v603
    %605 = vdwg.mxu0
    %vm606 = vcmp.eq.f32.partialorder %v419, 7.0
    %vm607 = vmand %vm606, %vm421
    %v608 = vsel %vm607, 1.0, 0.0
    %v610 = vsel %vm426, %v608, 0
    %612 = vmatpush.msra.mxu0 0.0
    %613 = vmatpush.msra.mxu0 0.0
    %614 = vmatpush.msra.mxu0 0.0
    %615 = vmatpush.msra.mxu0 0.0
    %616 = vmatpush.msra.mxu0 0.0
    %617 = vmatpush.msra.mxu0 0.0
    %618 = vmatpush.msra.mxu0 0.0
    %619 = vmatpush.msra.mxu0 0.0
    %620 = vmatpush.msra.mxu0 0.0
    %621 = vmatpush.msra.mxu0 0.0
    %622 = vmatpush.msra.mxu0 0.0
    %623 = vmatpush.msra.mxu0 0.0
    %624 = vmatpush.msra.mxu0 0.0
    %625 = vmatpush.msra.mxu0 0.0
    %626 = vmatpush.msra.mxu0 0.0
    %627 = vmatpush.msra.mxu0 %v305
    %628 = vmatmul.f32.gmra.mxu0 %v610
    %v629 = vpop.f32.mrf.mxu0
    %v630 = vadd.f32 0.0, %v629
    %631 = vdwg.mxu0
    %vm632 = vcmp.eq.f32.partialorder %v419, 8.0
    %vm633 = vmand %vm632, %vm421
    %v634 = vsel %vm633, 1.0, 0.0
    %v636 = vsel %vm426, %v634, 0
    %638 = vmatpush.msra.mxu0 0.0
    %639 = vmatpush.msra.mxu0 0.0
    %640 = vmatpush.msra.mxu0 0.0
    %641 = vmatpush.msra.mxu0 0.0
    %642 = vmatpush.msra.mxu0 0.0
    %643 = vmatpush.msra.mxu0 0.0
    %644 = vmatpush.msra.mxu0 0.0
    %645 = vmatpush.msra.mxu0 0.0
    %646 = vmatpush.msra.mxu0 0.0
    %647 = vmatpush.msra.mxu0 0.0
    %648 = vmatpush.msra.mxu0 0.0
    %649 = vmatpush.msra.mxu0 0.0
    %650 = vmatpush.msra.mxu0 0.0
    %651 = vmatpush.msra.mxu0 0.0
    %652 = vmatpush.msra.mxu0 0.0
    %653 = vmatpush.msra.mxu0 %v305
    %654 = vmatmul.f32.gmra.mxu0 %v636
    %v655 = vpop.f32.mrf.mxu0
    %v656 = vadd.f32 0.0, %v655
    %657 = vdwg.mxu0
    %vm658 = vcmp.eq.f32.partialorder %v419, 9.0
    %vm659 = vmand %vm658, %vm421
    %v660 = vsel %vm659, 1.0, 0.0
    %v662 = vsel %vm426, %v660, 0
    %664 = vmatpush.msra.mxu0 0.0
    %665 = vmatpush.msra.mxu0 0.0
    %666 = vmatpush.msra.mxu0 0.0
    %667 = vmatpush.msra.mxu0 0.0
    %668 = vmatpush.msra.mxu0 0.0
    %669 = vmatpush.msra.mxu0 0.0
    %670 = vmatpush.msra.mxu0 0.0
    %671 = vmatpush.msra.mxu0 0.0
    %672 = vmatpush.msra.mxu0 0.0
    %673 = vmatpush.msra.mxu0 0.0
    %674 = vmatpush.msra.mxu0 0.0
    %675 = vmatpush.msra.mxu0 0.0
    %676 = vmatpush.msra.mxu0 0.0
    %677 = vmatpush.msra.mxu0 0.0
    %678 = vmatpush.msra.mxu0 0.0
    %679 = vmatpush.msra.mxu0 %v305
    %680 = vmatmul.f32.gmra.mxu0 %v662
    %v681 = vpop.f32.mrf.mxu0
    %v682 = vadd.f32 0.0, %v681
    %683 = vdwg.mxu0
    %vm684 = vcmp.eq.f32.partialorder %v419, 10.0
    %vm685 = vmand %vm684, %vm421
    %v686 = vsel %vm685, 1.0, 0.0
    %v688 = vsel %vm426, %v686, 0
    %690 = vmatpush.msra.mxu0 0.0
    %691 = vmatpush.msra.mxu0 0.0
    %692 = vmatpush.msra.mxu0 0.0
    %693 = vmatpush.msra.mxu0 0.0
    %694 = vmatpush.msra.mxu0 0.0
    %695 = vmatpush.msra.mxu0 0.0
    %696 = vmatpush.msra.mxu0 0.0
    %697 = vmatpush.msra.mxu0 0.0
    %698 = vmatpush.msra.mxu0 0.0
    %699 = vmatpush.msra.mxu0 0.0
    %700 = vmatpush.msra.mxu0 0.0
    %701 = vmatpush.msra.mxu0 0.0
    %702 = vmatpush.msra.mxu0 0.0
    %703 = vmatpush.msra.mxu0 0.0
    %704 = vmatpush.msra.mxu0 0.0
    %705 = vmatpush.msra.mxu0 %v305
    %706 = vmatmul.f32.gmra.mxu0 %v688
    %v707 = vpop.f32.mrf.mxu0
    %v708 = vadd.f32 0.0, %v707
    %709 = vdwg.mxu0
    %vm710 = vcmp.eq.f32.partialorder %v419, 11.0
    %vm711 = vmand %vm710, %vm421
    %v712 = vsel %vm711, 1.0, 0.0
    %v714 = vsel %vm426, %v712, 0
    %716 = vmatpush.msra.mxu0 0.0
    %717 = vmatpush.msra.mxu0 0.0
    %718 = vmatpush.msra.mxu0 0.0
    %719 = vmatpush.msra.mxu0 0.0
    %720 = vmatpush.msra.mxu0 0.0
    %721 = vmatpush.msra.mxu0 0.0
    %722 = vmatpush.msra.mxu0 0.0
    %723 = vmatpush.msra.mxu0 0.0
    %724 = vmatpush.msra.mxu0 0.0
    %725 = vmatpush.msra.mxu0 0.0
    %726 = vmatpush.msra.mxu0 0.0
    %727 = vmatpush.msra.mxu0 0.0
    %728 = vmatpush.msra.mxu0 0.0
    %729 = vmatpush.msra.mxu0 0.0
    %730 = vmatpush.msra.mxu0 0.0
    %731 = vmatpush.msra.mxu0 %v305
    %732 = vmatmul.f32.gmra.mxu0 %v714
    %v733 = vpop.f32.mrf.mxu0
    %v734 = vadd.f32 0.0, %v733
    %735 = vdwg.mxu0
    %vm736 = vcmp.eq.f32.partialorder %v419, 12.0
    %vm737 = vmand %vm736, %vm421
    %v738 = vsel %vm737, 1.0, 0.0
    %v740 = vsel %vm426, %v738, 0
    %742 = vmatpush.msra.mxu0 0.0
    %743 = vmatpush.msra.mxu0 0.0
    %744 = vmatpush.msra.mxu0 0.0
    %745 = vmatpush.msra.mxu0 0.0
    %746 = vmatpush.msra.mxu0 0.0
    %747 = vmatpush.msra.mxu0 0.0
    %748 = vmatpush.msra.mxu0 0.0
    %749 = vmatpush.msra.mxu0 0.0
    %750 = vmatpush.msra.mxu0 0.0
    %751 = vmatpush.msra.mxu0 0.0
    %752 = vmatpush.msra.mxu0 0.0
    %753 = vmatpush.msra.mxu0 0.0
    %754 = vmatpush.msra.mxu0 0.0
    %755 = vmatpush.msra.mxu0 0.0
    %756 = vmatpush.msra.mxu0 0.0
    %757 = vmatpush.msra.mxu0 %v305
    %758 = vmatmul.f32.gmra.mxu0 %v740
    %v759 = vpop.f32.mrf.mxu0
    %v760 = vadd.f32 0.0, %v759
    %761 = vdwg.mxu0
    %vm762 = vcmp.eq.f32.partialorder %v419, 13.0
    %vm763 = vmand %vm762, %vm421
    %v764 = vsel %vm763, 1.0, 0.0
    %v766 = vsel %vm426, %v764, 0
    %768 = vmatpush.msra.mxu0 0.0
    %769 = vmatpush.msra.mxu0 0.0
    %770 = vmatpush.msra.mxu0 0.0
    %771 = vmatpush.msra.mxu0 0.0
    %772 = vmatpush.msra.mxu0 0.0
    %773 = vmatpush.msra.mxu0 0.0
    %774 = vmatpush.msra.mxu0 0.0
    %775 = vmatpush.msra.mxu0 0.0
    %776 = vmatpush.msra.mxu0 0.0
    %777 = vmatpush.msra.mxu0 0.0
    %778 = vmatpush.msra.mxu0 0.0
    %779 = vmatpush.msra.mxu0 0.0
    %780 = vmatpush.msra.mxu0 0.0
    %781 = vmatpush.msra.mxu0 0.0
    %782 = vmatpush.msra.mxu0 0.0
    %783 = vmatpush.msra.mxu0 %v305
    %784 = vmatmul.f32.gmra.mxu0 %v766
    %v785 = vpop.f32.mrf.mxu0
    %v786 = vadd.f32 0.0, %v785
    %787 = vdwg.mxu0
    %vm788 = vcmp.eq.f32.partialorder %v419, 14.0
    %vm789 = vmand %vm788, %vm421
    %v790 = vsel %vm789, 1.0, 0.0
    %v792 = vsel %vm426, %v790, 0
    %794 = vmatpush.msra.mxu0 0.0
    %795 = vmatpush.msra.mxu0 0.0
    %796 = vmatpush.msra.mxu0 0.0
    %797 = vmatpush.msra.mxu0 0.0
    %798 = vmatpush.msra.mxu0 0.0
    %799 = vmatpush.msra.mxu0 0.0
    %800 = vmatpush.msra.mxu0 0.0
    %801 = vmatpush.msra.mxu0 0.0
    %802 = vmatpush.msra.mxu0 0.0
    %803 = vmatpush.msra.mxu0 0.0
    %804 = vmatpush.msra.mxu0 0.0
    %805 = vmatpush.msra.mxu0 0.0
    %806 = vmatpush.msra.mxu0 0.0
    %807 = vmatpush.msra.mxu0 0.0
    %808 = vmatpush.msra.mxu0 0.0
    %809 = vmatpush.msra.mxu0 %v305
    %810 = vmatmul.f32.gmra.mxu0 %v792
    %v811 = vpop.f32.mrf.mxu0
    %v812 = vadd.f32 0.0, %v811
    %813 = vdwg.mxu0
    %vm814 = vcmp.eq.f32.partialorder %v419, 15.0
    %vm815 = vmand %vm814, %vm421
    %v816 = vsel %vm815, 1.0, 0.0
    %v818 = vsel %vm426, %v816, 0
    %820 = vmatpush.msra.mxu0 0.0
    %821 = vmatpush.msra.mxu0 0.0
    %822 = vmatpush.msra.mxu0 0.0
    %823 = vmatpush.msra.mxu0 0.0
    %824 = vmatpush.msra.mxu0 0.0
    %825 = vmatpush.msra.mxu0 0.0
    %826 = vmatpush.msra.mxu0 0.0
    %827 = vmatpush.msra.mxu0 0.0
    %828 = vmatpush.msra.mxu0 0.0
    %829 = vmatpush.msra.mxu0 0.0
    %830 = vmatpush.msra.mxu0 0.0
    %831 = vmatpush.msra.mxu0 0.0
    %832 = vmatpush.msra.mxu0 0.0
    %833 = vmatpush.msra.mxu0 0.0
    %834 = vmatpush.msra.mxu0 0.0
    %835 = vmatpush.msra.mxu0 %v305
    %836 = vmatmul.f32.gmra.mxu0 %v818
    %v837 = vpop.f32.mrf.mxu0
    %v838 = vadd.f32 0.0, %v837
    %839 = vdwg.mxu0
    %841 = vrot.lane.b32.xlu0 %v474, 32
    %v842 = vpop.permute.xlu0 %841
    %845 = vrot.lane.b32.xlu0 %v500, 64
    %v846 = vpop.permute.xlu0 %845
    %849 = vrot.lane.b32.xlu0 %v526, 96
    %v850 = vpop.permute.xlu0 %849
    %853 = vrot.lane.b32.xlu0 %v578, 32
    %v854 = vpop.permute.xlu0 %853
    %857 = vrot.lane.b32.xlu0 %v604, 64
    %v858 = vpop.permute.xlu0 %857
    %861 = vrot.lane.b32.xlu0 %v630, 96
    %v862 = vpop.permute.xlu0 %861
    %865 = vrot.lane.b32.xlu0 %v682, 32
    %v866 = vpop.permute.xlu0 %865
    %869 = vrot.lane.b32.xlu0 %v708, 64
    %v870 = vpop.permute.xlu0 %869
    %873 = vrot.lane.b32.xlu0 %v734, 96
    %v874 = vpop.permute.xlu0 %873
    %877 = vrot.lane.b32.xlu0 %v786, 32
    %v878 = vpop.permute.xlu0 %877
    %881 = vrot.lane.b32.xlu0 %v812, 64
    %v882 = vpop.permute.xlu0 %881
    %885 = vrot.lane.b32.xlu0 %v838, 96
    %v886 = vpop.permute.xlu0 %885
    %v888 = vsel %vm213, %v448, %v842
    %vm889 = vcmask 523264
    %v890 = vsel %vm889, %v888, %v846
    %vm891 = vcmask 785408
    %v892 = vsel %vm891, %v890, %v850
    %v893 = vsel %vm213, %v552, %v854
    %v894 = vsel %vm889, %v893, %v858
    %v895 = vsel %vm891, %v894, %v862
    %v896 = vsel %vm213, %v656, %v866
    %v897 = vsel %vm889, %v896, %v870
    %v898 = vsel %vm891, %v897, %v874
    %v899 = vsel %vm213, %v760, %v878
    %v900 = vsel %vm889, %v899, %v882
    %v901 = vsel %vm891, %v900, %v886
    %902 = vmatpush.msra.mxu0 %v92
    %903 = vmatpush.msra.mxu0 %v91
    %904 = vmatpush.msra.mxu0 %v90
    %905 = vmatpush.msra.mxu0 %v89
    %906 = vmatpush.msra.mxu0 %v88
    %907 = vmatpush.msra.mxu0 %v87
    %908 = vmatpush.msra.mxu0 %v86
    %909 = vmatpush.msra.mxu0 %v85
    %910 = vmatpush.msra.mxu0 %v84
    %911 = vmatpush.msra.mxu0 %v83
    %912 = vmatpush.msra.mxu0 %v82
    %913 = vmatpush.msra.mxu0 %v81
    %914 = vmatpush.msra.mxu0 %v80
    %915 = vmatpush.msra.mxu0 %v79
    %916 = vmatpush.msra.mxu0 %v78
    %917 = vmatpush.msra.mxu0 %v77
    %918 = vmatmul.f32.gmra.mxu0 %v892
    %v919 = vpop.f32.mrf.mxu0
    %v920 = vadd.f32 %v167, %v919
    %921 = vdwg.mxu0
    %922 = vmatpush.msra.mxu0 %v108
    %923 = vmatpush.msra.mxu0 %v107
    %924 = vmatpush.msra.mxu0 %v106
    %925 = vmatpush.msra.mxu0 %v105
    %926 = vmatpush.msra.mxu0 %v104
    %927 = vmatpush.msra.mxu0 %v103
    %928 = vmatpush.msra.mxu0 %v102
    %929 = vmatpush.msra.mxu0 %v101
    %930 = vmatpush.msra.mxu0 %v100
    %931 = vmatpush.msra.mxu0 %v99
    %932 = vmatpush.msra.mxu0 %v98
    %933 = vmatpush.msra.mxu0 %v97
    %934 = vmatpush.msra.mxu0 %v96
    %935 = vmatpush.msra.mxu0 %v95
    %936 = vmatpush.msra.mxu0 %v94
    %937 = vmatpush.msra.mxu0 %v93
    %938 = vmatmul.f32.gmra.mxu0 %v895
    %v939 = vpop.f32.mrf.mxu0
    %v940 = vadd.f32 %v920, %v939
    %941 = vdwg.mxu0
    %942 = vmatpush.msra.mxu0 %v124
    %943 = vmatpush.msra.mxu0 %v123
    %944 = vmatpush.msra.mxu0 %v122
    %945 = vmatpush.msra.mxu0 %v121
    %946 = vmatpush.msra.mxu0 %v120
    %947 = vmatpush.msra.mxu0 %v119
    %948 = vmatpush.msra.mxu0 %v118
    %949 = vmatpush.msra.mxu0 %v117
    %950 = vmatpush.msra.mxu0 %v116
    %951 = vmatpush.msra.mxu0 %v115
    %952 = vmatpush.msra.mxu0 %v114
    %953 = vmatpush.msra.mxu0 %v113
    %954 = vmatpush.msra.mxu0 %v112
    %955 = vmatpush.msra.mxu0 %v111
    %956 = vmatpush.msra.mxu0 %v110
    %957 = vmatpush.msra.mxu0 %v109
    %958 = vmatmul.f32.gmra.mxu0 %v898
    %v959 = vpop.f32.mrf.mxu0
    %v960 = vadd.f32 %v940, %v959
    %961 = vdwg.mxu0
    %962 = vmatpush.msra.mxu0 %v140
    %963 = vmatpush.msra.mxu0 %v139
    %964 = vmatpush.msra.mxu0 %v138
    %965 = vmatpush.msra.mxu0 %v137
    %966 = vmatpush.msra.mxu0 %v136
    %967 = vmatpush.msra.mxu0 %v135
    %968 = vmatpush.msra.mxu0 %v134
    %969 = vmatpush.msra.mxu0 %v133
    %970 = vmatpush.msra.mxu0 %v132
    %971 = vmatpush.msra.mxu0 %v131
    %972 = vmatpush.msra.mxu0 %v130
    %973 = vmatpush.msra.mxu0 %v129
    %974 = vmatpush.msra.mxu0 %v128
    %975 = vmatpush.msra.mxu0 %v127
    %976 = vmatpush.msra.mxu0 %v126
    %977 = vmatpush.msra.mxu0 %v125
    %978 = vmatmul.f32.gmra.mxu0 %v901
    %v979 = vpop.f32.mrf.mxu0
    %v980 = vadd.f32 %v960, %v979
    %981 = vdwg.mxu0
    %v982 = vmax.f32 %v980, 0.0
    %v984 = vsel %vm213, %v982, 0
    %986 = vmatpush.msra.mxu0 0.0
    %987 = vmatpush.msra.mxu0 0.0
    %988 = vmatpush.msra.mxu0 0.0
    %989 = vmatpush.msra.mxu0 0.0
    %990 = vmatpush.msra.mxu0 0.0
    %991 = vmatpush.msra.mxu0 0.0
    %992 = vmatpush.msra.mxu0 0.0
    %993 = vmatpush.msra.mxu0 0.0
    %994 = vmatpush.msra.mxu0 0.0
    %995 = vmatpush.msra.mxu0 0.0
    %996 = vmatpush.msra.mxu0 0.0
    %997 = vmatpush.msra.mxu0 0.0
    %998 = vmatpush.msra.mxu0 %v148
    %999 = vmatpush.msra.mxu0 %v147
    %1000 = vmatpush.msra.mxu0 %v146
    %1001 = vmatpush.msra.mxu0 %v145
    %1002 = vmatmul.f32.gmra.mxu0 %v984
    %v1003 = vpop.f32.mrf.mxu0
    %v1004 = vadd.f32 0.0, %v1003
    %1005 = vdwg.mxu0
    %1006 = vmatpush.msra.mxu0 0.0
    %1007 = vmatpush.msra.mxu0 0.0
    %1008 = vmatpush.msra.mxu0 0.0
    %1009 = vmatpush.msra.mxu0 0.0
    %1010 = vmatpush.msra.mxu0 0.0
    %1011 = vmatpush.msra.mxu0 0.0
    %1012 = vmatpush.msra.mxu0 0.0
    %1013 = vmatpush.msra.mxu0 0.0
    %1014 = vmatpush.msra.mxu0 0.0
    %1015 = vmatpush.msra.mxu0 0.0
    %1016 = vmatpush.msra.mxu0 0.0
    %1017 = vmatpush.msra.mxu0 0.0
    %1018 = vmatpush.msra.mxu0 %v144
    %1019 = vmatpush.msra.mxu0 %v143
    %1020 = vmatpush.msra.mxu0 %v142
    %1021 = vmatpush.msra.mxu0 %v141
    %1022 = vmatmul.f32.gmra.mxu0 %v306
    %v1023 = vpop.f32.mrf.mxu0
    %v1024 = vadd.f32 %v1004, %v1023
    %1025 = vdwg.mxu0
    %v1026 = vadd.f32 %v1024, %v171
    %v1027 = vmax.f32 %v1026, 0.0
    %v1029 = vsel %vm213, %v1027, 0
    %1031 = vmatpush.msra.mxu0 0.0
    %1032 = vmatpush.msra.mxu0 0.0
    %1033 = vmatpush.msra.mxu0 0.0
    %1034 = vmatpush.msra.mxu0 0.0
    %1035 = vmatpush.msra.mxu0 0.0
    %1036 = vmatpush.msra.mxu0 0.0
    %1037 = vmatpush.msra.mxu0 0.0
    %1038 = vmatpush.msra.mxu0 0.0
    %1039 = vmatpush.msra.mxu0 0.0
    %1040 = vmatpush.msra.mxu0 0.0
    %1041 = vmatpush.msra.mxu0 0.0
    %1042 = vmatpush.msra.mxu0 0.0
    %1043 = vmatpush.msra.mxu0 %v152
    %1044 = vmatpush.msra.mxu0 %v151
    %1045 = vmatpush.msra.mxu0 %v150
    %1046 = vmatpush.msra.mxu0 %v149
    %1047 = vmatmul.f32.gmra.mxu0 %v1029
    %v1048 = vpop.f32.mrf.mxu0
    %v1049 = vadd.f32 %v175, %v1048
    %1050 = vdwg.mxu0
    %v1051 = vmax.f32 %v1049, 0.0
    %1052 = vst.msk [vmem:[%s19] sm:$0xff] %vm183, %v326
    %1053 = vst.msk [vmem:[%s20] sm:$0xff] %vm183, %v328
    %v1055 = vsel %vm183, %v326, 0
    %1057 = vmatpush.msra.mxu0 0.0
    %1058 = vmatpush.msra.mxu0 0.0
    %1059 = vmatpush.msra.mxu0 0.0
    %1060 = vmatpush.msra.mxu0 0.0
    %1061 = vmatpush.msra.mxu0 0.0
    %1062 = vmatpush.msra.mxu0 0.0
    %1063 = vmatpush.msra.mxu0 0.0
    %1064 = vmatpush.msra.mxu0 0.0
    %1065 = vmatpush.msra.mxu0 0.0
    %1066 = vmatpush.msra.mxu0 0.0
    %1067 = vmatpush.msra.mxu0 0.0
    %1068 = vmatpush.msra.mxu0 0.0
    %1069 = vmatpush.msra.mxu0 0.0
    %1070 = vmatpush.msra.mxu0 0.0
    %1071 = vmatpush.msra.mxu0 0.0
    %1072 = vmatpush.msra.mxu0 %v189
    %1073 = vmatmul.f32.gmra.mxu0 %v1055
    %v1074 = vpop.f32.mrf.mxu0
    %v1075 = vadd.f32 %v155, %v1074
    %1076 = vdwg.mxu0
    %v1077 = vmax.f32 %v1075, 0.0
    %v1078 = vmin.f32 %v1077, 6.0
    %v1080 = vsel %vm213, %v1051, 0
    %1082 = vmatpush.msra.mxu0 0.0
    %1083 = vmatpush.msra.mxu0 0.0
    %1084 = vmatpush.msra.mxu0 0.0
    %1085 = vmatpush.msra.mxu0 0.0
    %1086 = vmatpush.msra.mxu0 0.0
    %1087 = vmatpush.msra.mxu0 0.0
    %1088 = vmatpush.msra.mxu0 0.0
    %1089 = vmatpush.msra.mxu0 0.0
    %1090 = vmatpush.msra.mxu0 0.0
    %1091 = vmatpush.msra.mxu0 0.0
    %1092 = vmatpush.msra.mxu0 0.0
    %1093 = vmatpush.msra.mxu0 0.0
    %1094 = vmatpush.msra.mxu0 %v72
    %1095 = vmatpush.msra.mxu0 %v71
    %1096 = vmatpush.msra.mxu0 %v70
    %1097 = vmatpush.msra.mxu0 %v69
    %1098 = vmatmul.f32.gmra.mxu0 %v1080
    %v1099 = vpop.f32.mrf.mxu0
    %v1100 = vadd.f32 0.0, %v1099
    %1101 = vdwg.mxu0
    %v1103 = vsel %vm237, %v1078, 0
    %1105 = vmatpush.msra.mxu0 0.0
    %1106 = vmatpush.msra.mxu0 0.0
    %1107 = vmatpush.msra.mxu0 0.0
    %1108 = vmatpush.msra.mxu0 0.0
    %1109 = vmatpush.msra.mxu0 0.0
    %1110 = vmatpush.msra.mxu0 0.0
    %1111 = vmatpush.msra.mxu0 0.0
    %1112 = vmatpush.msra.mxu0 0.0
    %1113 = vmatpush.msra.mxu0 0.0
    %1114 = vmatpush.msra.mxu0 0.0
    %1115 = vmatpush.msra.mxu0 0.0
    %1116 = vmatpush.msra.mxu0 0.0
    %1117 = vmatpush.msra.mxu0 0.0
    %1118 = vmatpush.msra.mxu0 0.0
    %1119 = vmatpush.msra.mxu0 %v68
    %1120 = vmatpush.msra.mxu0 %v67
    %1121 = vmatmul.f32.gmra.mxu0 %v1103
    %v1122 = vpop.f32.mrf.mxu0
    %v1123 = vadd.f32 %v1100, %v1122
    %1124 = vdwg.mxu0
    %v1125 = vadd.f32 %v1123, %v159
    %v1126 = vxor.u32 %v1125, 2147483648
    %v1127 = vmul.f32 %v1126, 1.442695
    %v1128 = vpow.pop %v1127
    %v1129 = vadd.f32 %v1128, 1.0
    %v1130 = vrcp.pop %v1129
    %v1131 = vmul.f32 %v1129, %v1130
    %v1132 = vsub.f32 1.0, %v1131
    %v1133 = vmul.f32 %v1130, %v1132
    %v1134 = vadd.f32 %v1130, %v1133
    %vm1135 = vweird.f32 %v1129
    %vm1136 = vweird.f32 %v1130
    %vm1137 = vmor %vm1135, %vm1136
    %v1138 = vsel %vm1137, %v1130, %v1134
    %v1139 = vand.u32 2147483647, %v1129
    %vm1140 = vcmp.eq.f32.partialorder %v1139, 8.507059e+37
    %v1141 = vand.u32 %v1129, 2147483648
    %v1142 = vor.u32 1.1754944e-38, %v1141
    %v1143 = vsel %vm1140, %v1142, %v1138
    %v1144 = vmul.f32 1.0, %v1143
    %v1145 = vtanh.pop %v1125
    %v1146 = vmul.f32 %v1144, %v296
    %1148 = vrot.lane.b32.xlu0 %v1145, 64
    %v1149 = vpop.permute.xlu0 %1148
    %v1151 = vmul.f32 %v1144, %v1149
    %1153 = vrot.lane.b32.xlu0 %v1151, 32
    %v1154 = vpop.permute.xlu0 %1153
    %v1156 = vadd.f32 %v1146, %v1154
    %v1157 = vtanh.pop %v1156
    %1159 = vrot.lane.b32.xlu0 %v1157, 64
    %v1160 = vpop.permute.xlu0 %1159
    %v1162 = vmul.f32 %v1144, %v1160
    %1164 = vrot.lane.b32.xlu0 %v1162, 32
    %v1165 = vpop.permute.xlu0 %1164
    %v1166 = vsel %vm213, %v1165, 0
    %1168 = vmatpush.msra.mxu0 0.0
    %1169 = vmatpush.msra.mxu0 0.0
    %1170 = vmatpush.msra.mxu0 0.0
    %1171 = vmatpush.msra.mxu0 0.0
    %1172 = vmatpush.msra.mxu0 0.0
    %1173 = vmatpush.msra.mxu0 0.0
    %1174 = vmatpush.msra.mxu0 0.0
    %1175 = vmatpush.msra.mxu0 0.0
    %1176 = vmatpush.msra.mxu0 0.0
    %1177 = vmatpush.msra.mxu0 0.0
    %1178 = vmatpush.msra.mxu0 0.0
    %1179 = vmatpush.msra.mxu0 0.0
    %1180 = vmatpush.msra.mxu0 %v76
    %1181 = vmatpush.msra.mxu0 %v75
    %1182 = vmatpush.msra.mxu0 %v74
    %1183 = vmatpush.msra.mxu0 %v73
    %1184 = vmatmul.f32.gmra.mxu0 %v1166
    %v1185 = vpop.f32.mrf.mxu0
    %v1186 = vadd.f32 %v163, %v1185
    %1187 = vdwg.mxu0
    %v1188 = vadd.f32 %v1186, %v328
    %v1190 = vsel %vm329, %v1188, 0
    %1192 = vmatpush.xpose.msra.mxu0 0.0
    %1193 = vmatpush.xpose.msra.mxu0 0.0
    %1194 = vmatpush.xpose.msra.mxu0 0.0
    %1195 = vmatpush.xpose.msra.mxu0 0.0
    %1196 = vmatpush.xpose.msra.mxu0 0.0
    %1197 = vmatpush.xpose.msra.mxu0 0.0
    %1198 = vmatpush.xpose.msra.mxu0 0.0
    %1199 = vmatpush.xpose.msra.mxu0 0.0
    %1200 = vmatpush.xpose.msra.mxu0 0.0
    %1201 = vmatpush.xpose.msra.mxu0 0.0
    %1202 = vmatpush.xpose.msra.mxu0 0.0
    %1203 = vmatpush.xpose.msra.mxu0 0.0
    %1204 = vmatpush.xpose.msra.mxu0 0.0
    %1205 = vmatpush.xpose.msra.mxu0 0.0
    %1206 = vmatpush.xpose.msra.mxu0 0.0
    %1207 = vmatpush.xpose.msra.mxu0 %v1190
    %1208 = vmatmul.f32.gmra.mxu0 %v331
    %v1209 = vpop.f32.mrf.mxu0
    %v1210 = vadd.f32 0.0, %v1209
    %1211 = vdwg.mxu0
    %1212 = vrot.lane.b32.xlu0 %v1188, 127
    %v1213 = vpop.permute.xlu0 %1212
    %v1214 = vsel %vm329, %v1213, 0
    %1216 = vmatpush.xpose.msra.mxu0 0.0
    %1217 = vmatpush.xpose.msra.mxu0 0.0
    %1218 = vmatpush.xpose.msra.mxu0 0.0
    %1219 = vmatpush.xpose.msra.mxu0 0.0
    %1220 = vmatpush.xpose.msra.mxu0 0.0
    %1221 = vmatpush.xpose.msra.mxu0 0.0
    %1222 = vmatpush.xpose.msra.mxu0 0.0
    %1223 = vmatpush.xpose.msra.mxu0 0.0
    %1224 = vmatpush.xpose.msra.mxu0 0.0
    %1225 = vmatpush.xpose.msra.mxu0 0.0
    %1226 = vmatpush.xpose.msra.mxu0 0.0
    %1227 = vmatpush.xpose.msra.mxu0 0.0
    %1228 = vmatpush.xpose.msra.mxu0 0.0
    %1229 = vmatpush.xpose.msra.mxu0 0.0
    %1230 = vmatpush.xpose.msra.mxu0 0.0
    %1231 = vmatpush.xpose.msra.mxu0 %v1214
    %1232 = vmatmul.f32.gmra.mxu0 %v331
    %v1233 = vpop.f32.mrf.mxu0
    %v1234 = vadd.f32 0.0, %v1233
    %1235 = vdwg.mxu0
    %1236 = vset.pattern.permute.xlu0 0
    %1237 = vperm.xlu0 %1236, %v1188
    %v1238 = vpop.permute.xlu0 %1237
    %v1240 = vsub.f32 %v1210, %v1238
    %1241 = vset.pattern.permute.xlu0 1
    %1242 = vperm.xlu0 %1241, %v1188
    %v1243 = vpop.permute.xlu0 %1242
    %v1245 = vsub.f32 %v1234, %v1243
    %vm1246 = vcmp.ge.f32.partialorder %v1240, 1.0
    %vm1247 = vcmp.le.f32.partialorder %v1240, -1.0
    %vm1248 = vmor %vm1246, %vm1247
    %vm1249 = vcmp.ge.f32.partialorder %v1245, 1.0
    %vm1250 = vcmp.le.f32.partialorder %v1245, -1.0
    %vm1251 = vmor %vm1249, %vm1250
    %vm1252 = vmor %vm1248, %vm1251
    %v1253 = vadd.f32 %v1240, 1.0
    %v1254 = vmul.f32 %v1253, %v404
    %v1255 = vmul.f32 %v1254, 4.0
    %v1256 = vfloor.f32 %v1255
    %vm1257 = vcmp.eq.f32.partialorder %v1256, 4.0
    %v1258 = vsub.f32 %v1256, 1.0
    %v1259 = vsel %vm1257, %v1258, %v1256
    %v1260 = vsub.f32 1.0, %v1245
    %v1261 = vmul.f32 %v1260, %v404
    %v1262 = vmul.f32 %v1261, 4.0
    %v1263 = vfloor.f32 %v1262
    %vm1264 = vcmp.eq.f32.partialorder %v1263, 4.0
    %v1265 = vsub.f32 %v1263, 1.0
    %v1266 = vsel %vm1264, %v1265, %v1263
    %v1267 = vmul.f32 %v1266, 4.0
    %v1268 = vadd.f32 %v1259, %v1267
    %vm1269 = vmxor %vm1252, 1
    %vm1270 = vmand %vm178, %vm1269
    %vm1271 = vcmp.eq.f32.partialorder %v1268, 0.0
    %vm1272 = vmand %vm1271, %vm1270
    %v1273 = vsel %vm1272, 1.0, 0.0
    %v1276 = vsel %vm426, %v1273, 0
    %1278 = vmatpush.msra.mxu0 0.0
    %1279 = vmatpush.msra.mxu0 0.0
    %1280 = vmatpush.msra.mxu0 0.0
    %1281 = vmatpush.msra.mxu0 0.0
    %1282 = vmatpush.msra.mxu0 0.0
    %1283 = vmatpush.msra.mxu0 0.0
    %1284 = vmatpush.msra.mxu0 0.0
    %1285 = vmatpush.msra.mxu0 0.0
    %1286 = vmatpush.msra.mxu0 0.0
    %1287 = vmatpush.msra.mxu0 0.0
    %1288 = vmatpush.msra.mxu0 0.0
    %1289 = vmatpush.msra.mxu0 0.0
    %1290 = vmatpush.msra.mxu0 0.0
    %1291 = vmatpush.msra.mxu0 0.0
    %1292 = vmatpush.msra.mxu0 0.0
    %1293 = vmatpush.msra.mxu0 %v1165
    %1294 = vmatmul.f32.gmra.mxu0 %v1276
    %v1295 = vpop.f32.mrf.mxu0
    %v1296 = vadd.f32 0.0, %v1295
    %1297 = vdwg.mxu0
    %vm1298 = vcmp.eq.f32.partialorder %v1268, 1.0
    %vm1299 = vmand %vm1298, %vm1270
    %v1300 = vsel %vm1299, 1.0, 0.0
    %v1302 = vsel %vm426, %v1300, 0
    %1304 = vmatpush.msra.mxu0 0.0
    %1305 = vmatpush.msra.mxu0 0.0
    %1306 = vmatpush.msra.mxu0 0.0
    %1307 = vmatpush.msra.mxu0 0.0
    %1308 = vmatpush.msra.mxu0 0.0
    %1309 = vmatpush.msra.mxu0 0.0
    %1310 = vmatpush.msra.mxu0 0.0
    %1311 = vmatpush.msra.mxu0 0.0
    %1312 = vmatpush.msra.mxu0 0.0
    %1313 = vmatpush.msra.mxu0 0.0
    %1314 = vmatpush.msra.mxu0 0.0
    %1315 = vmatpush.msra.mxu0 0.0
    %1316 = vmatpush.msra.mxu0 0.0
    %1317 = vmatpush.msra.mxu0 0.0
    %1318 = vmatpush.msra.mxu0 0.0
    %1319 = vmatpush.msra.mxu0 %v1165
    %1320 = vmatmul.f32.gmra.mxu0 %v1302
    %v1321 = vpop.f32.mrf.mxu0
    %v1322 = vadd.f32 0.0, %v1321
    %1323 = vdwg.mxu0
    %vm1324 = vcmp.eq.f32.partialorder %v1268, 2.0
    %vm1325 = vmand %vm1324, %vm1270
    %v1326 = vsel %vm1325, 1.0, 0.0
    %v1328 = vsel %vm426, %v1326, 0
    %1330 = vmatpush.msra.mxu0 0.0
    %1331 = vmatpush.msra.mxu0 0.0
    %1332 = vmatpush.msra.mxu0 0.0
    %1333 = vmatpush.msra.mxu0 0.0
    %1334 = vmatpush.msra.mxu0 0.0
    %1335 = vmatpush.msra.mxu0 0.0
    %1336 = vmatpush.msra.mxu0 0.0
    %1337 = vmatpush.msra.mxu0 0.0
    %1338 = vmatpush.msra.mxu0 0.0
    %1339 = vmatpush.msra.mxu0 0.0
    %1340 = vmatpush.msra.mxu0 0.0
    %1341 = vmatpush.msra.mxu0 0.0
    %1342 = vmatpush.msra.mxu0 0.0
    %1343 = vmatpush.msra.mxu0 0.0
    %1344 = vmatpush.msra.mxu0 0.0
    %1345 = vmatpush.msra.mxu0 %v1165
    %1346 = vmatmul.f32.gmra.mxu0 %v1328
    %v1347 = vpop.f32.mrf.mxu0
    %v1348 = vadd.f32 0.0, %v1347
    %1349 = vdwg.mxu0
    %vm1350 = vcmp.eq.f32.partialorder %v1268, 3.0
    %vm1351 = vmand %vm1350, %vm1270
    %v1352 = vsel %vm1351, 1.0, 0.0
    %v1354 = vsel %vm426, %v1352, 0
    %1356 = vmatpush.msra.mxu0 0.0
    %1357 = vmatpush.msra.mxu0 0.0
    %1358 = vmatpush.msra.mxu0 0.0
    %1359 = vmatpush.msra.mxu0 0.0
    %1360 = vmatpush.msra.mxu0 0.0
    %1361 = vmatpush.msra.mxu0 0.0
    %1362 = vmatpush.msra.mxu0 0.0
    %1363 = vmatpush.msra.mxu0 0.0
    %1364 = vmatpush.msra.mxu0 0.0
    %1365 = vmatpush.msra.mxu0 0.0
    %1366 = vmatpush.msra.mxu0 0.0
    %1367 = vmatpush.msra.mxu0 0.0
    %1368 = vmatpush.msra.mxu0 0.0
    %1369 = vmatpush.msra.mxu0 0.0
    %1370 = vmatpush.msra.mxu0 0.0
    %1371 = vmatpush.msra.mxu0 %v1165
    %1372 = vmatmul.f32.gmra.mxu0 %v1354
    %v1373 = vpop.f32.mrf.mxu0
    %v1374 = vadd.f32 0.0, %v1373
    %1375 = vdwg.mxu0
    %vm1376 = vcmp.eq.f32.partialorder %v1268, 4.0
    %vm1377 = vmand %vm1376, %vm1270
    %v1378 = vsel %vm1377, 1.0, 0.0
    %v1380 = vsel %vm426, %v1378, 0
    %1382 = vmatpush.msra.mxu0 0.0
    %1383 = vmatpush.msra.mxu0 0.0
    %1384 = vmatpush.msra.mxu0 0.0
    %1385 = vmatpush.msra.mxu0 0.0
    %1386 = vmatpush.msra.mxu0 0.0
    %1387 = vmatpush.msra.mxu0 0.0
    %1388 = vmatpush.msra.mxu0 0.0
    %1389 = vmatpush.msra.mxu0 0.0
    %1390 = vmatpush.msra.mxu0 0.0
    %1391 = vmatpush.msra.mxu0 0.0
    %1392 = vmatpush.msra.mxu0 0.0
    %1393 = vmatpush.msra.mxu0 0.0
    %1394 = vmatpush.msra.mxu0 0.0
    %1395 = vmatpush.msra.mxu0 0.0
    %1396 = vmatpush.msra.mxu0 0.0
    %1397 = vmatpush.msra.mxu0 %v1165
    %1398 = vmatmul.f32.gmra.mxu0 %v1380
    %v1399 = vpop.f32.mrf.mxu0
    %v1400 = vadd.f32 0.0, %v1399
    %1401 = vdwg.mxu0
    %vm1402 = vcmp.eq.f32.partialorder %v1268, 5.0
    %vm1403 = vmand %vm1402, %vm1270
    %v1404 = vsel %vm1403, 1.0, 0.0
    %v1406 = vsel %vm426, %v1404, 0
    %1408 = vmatpush.msra.mxu0 0.0
    %1409 = vmatpush.msra.mxu0 0.0
    %1410 = vmatpush.msra.mxu0 0.0
    %1411 = vmatpush.msra.mxu0 0.0
    %1412 = vmatpush.msra.mxu0 0.0
    %1413 = vmatpush.msra.mxu0 0.0
    %1414 = vmatpush.msra.mxu0 0.0
    %1415 = vmatpush.msra.mxu0 0.0
    %1416 = vmatpush.msra.mxu0 0.0
    %1417 = vmatpush.msra.mxu0 0.0
    %1418 = vmatpush.msra.mxu0 0.0
    %1419 = vmatpush.msra.mxu0 0.0
    %1420 = vmatpush.msra.mxu0 0.0
    %1421 = vmatpush.msra.mxu0 0.0
    %1422 = vmatpush.msra.mxu0 0.0
    %1423 = vmatpush.msra.mxu0 %v1165
    %1424 = vmatmul.f32.gmra.mxu0 %v1406
    %v1425 = vpop.f32.mrf.mxu0
    %v1426 = vadd.f32 0.0, %v1425
    %1427 = vdwg.mxu0
    %vm1428 = vcmp.eq.f32.partialorder %v1268, 6.0
    %vm1429 = vmand %vm1428, %vm1270
    %v1430 = vsel %vm1429, 1.0, 0.0
    %v1432 = vsel %vm426, %v1430, 0
    %1434 = vmatpush.msra.mxu0 0.0
    %1435 = vmatpush.msra.mxu0 0.0
    %1436 = vmatpush.msra.mxu0 0.0
    %1437 = vmatpush.msra.mxu0 0.0
    %1438 = vmatpush.msra.mxu0 0.0
    %1439 = vmatpush.msra.mxu0 0.0
    %1440 = vmatpush.msra.mxu0 0.0
    %1441 = vmatpush.msra.mxu0 0.0
    %1442 = vmatpush.msra.mxu0 0.0
    %1443 = vmatpush.msra.mxu0 0.0
    %1444 = vmatpush.msra.mxu0 0.0
    %1445 = vmatpush.msra.mxu0 0.0
    %1446 = vmatpush.msra.mxu0 0.0
    %1447 = vmatpush.msra.mxu0 0.0
    %1448 = vmatpush.msra.mxu0 0.0
    %1449 = vmatpush.msra.mxu0 %v1165
    %1450 = vmatmul.f32.gmra.mxu0 %v1432
    %v1451 = vpop.f32.mrf.mxu0
    %v1452 = vadd.f32 0.0, %v1451
    %1453 = vdwg.mxu0
    %vm1454 = vcmp.eq.f32.partialorder %v1268, 7.0
    %vm1455 = vmand %vm1454, %vm1270
    %v1456 = vsel %vm1455, 1.0, 0.0
    %v1458 = vsel %vm426, %v1456, 0
    %1460 = vmatpush.msra.mxu0 0.0
    %1461 = vmatpush.msra.mxu0 0.0
    %1462 = vmatpush.msra.mxu0 0.0
    %1463 = vmatpush.msra.mxu0 0.0
    %1464 = vmatpush.msra.mxu0 0.0
    %1465 = vmatpush.msra.mxu0 0.0
    %1466 = vmatpush.msra.mxu0 0.0
    %1467 = vmatpush.msra.mxu0 0.0
    %1468 = vmatpush.msra.mxu0 0.0
    %1469 = vmatpush.msra.mxu0 0.0
    %1470 = vmatpush.msra.mxu0 0.0
    %1471 = vmatpush.msra.mxu0 0.0
    %1472 = vmatpush.msra.mxu0 0.0
    %1473 = vmatpush.msra.mxu0 0.0
    %1474 = vmatpush.msra.mxu0 0.0
    %1475 = vmatpush.msra.mxu0 %v1165
    %1476 = vmatmul.f32.gmra.mxu0 %v1458
    %v1477 = vpop.f32.mrf.mxu0
    %v1478 = vadd.f32 0.0, %v1477
    %1479 = vdwg.mxu0
    %vm1480 = vcmp.eq.f32.partialorder %v1268, 8.0
    %vm1481 = vmand %vm1480, %vm1270
    %v1482 = vsel %vm1481, 1.0, 0.0
    %v1484 = vsel %vm426, %v1482, 0
    %1486 = vmatpush.msra.mxu0 0.0
    %1487 = vmatpush.msra.mxu0 0.0
    %1488 = vmatpush.msra.mxu0 0.0
    %1489 = vmatpush.msra.mxu0 0.0
    %1490 = vmatpush.msra.mxu0 0.0
    %1491 = vmatpush.msra.mxu0 0.0
    %1492 = vmatpush.msra.mxu0 0.0
    %1493 = vmatpush.msra.mxu0 0.0
    %1494 = vmatpush.msra.mxu0 0.0
    %1495 = vmatpush.msra.mxu0 0.0
    %1496 = vmatpush.msra.mxu0 0.0
    %1497 = vmatpush.msra.mxu0 0.0
    %1498 = vmatpush.msra.mxu0 0.0
    %1499 = vmatpush.msra.mxu0 0.0
    %1500 = vmatpush.msra.mxu0 0.0
    %1501 = vmatpush.msra.mxu0 %v1165
    %1502 = vmatmul.f32.gmra.mxu0 %v1484
    %v1503 = vpop.f32.mrf.mxu0
    %v1504 = vadd.f32 0.0, %v1503
    %1505 = vdwg.mxu0
    %vm1506 = vcmp.eq.f32.partialorder %v1268, 9.0
    %vm1507 = vmand %vm1506, %vm1270
    %v1508 = vsel %vm1507, 1.0, 0.0
    %v1510 = vsel %vm426, %v1508, 0
    %1512 = vmatpush.msra.mxu0 0.0
    %1513 = vmatpush.msra.mxu0 0.0
    %1514 = vmatpush.msra.mxu0 0.0
    %1515 = vmatpush.msra.mxu0 0.0
    %1516 = vmatpush.msra.mxu0 0.0
    %1517 = vmatpush.msra.mxu0 0.0
    %1518 = vmatpush.msra.mxu0 0.0
    %1519 = vmatpush.msra.mxu0 0.0
    %1520 = vmatpush.msra.mxu0 0.0
    %1521 = vmatpush.msra.mxu0 0.0
    %1522 = vmatpush.msra.mxu0 0.0
    %1523 = vmatpush.msra.mxu0 0.0
    %1524 = vmatpush.msra.mxu0 0.0
    %1525 = vmatpush.msra.mxu0 0.0
    %1526 = vmatpush.msra.mxu0 0.0
    %1527 = vmatpush.msra.mxu0 %v1165
    %1528 = vmatmul.f32.gmra.mxu0 %v1510
    %v1529 = vpop.f32.mrf.mxu0
    %v1530 = vadd.f32 0.0, %v1529
    %1531 = vdwg.mxu0
    %vm1532 = vcmp.eq.f32.partialorder %v1268, 10.0
    %vm1533 = vmand %vm1532, %vm1270
    %v1534 = vsel %vm1533, 1.0, 0.0
    %v1536 = vsel %vm426, %v1534, 0
    %1538 = vmatpush.msra.mxu0 0.0
    %1539 = vmatpush.msra.mxu0 0.0
    %1540 = vmatpush.msra.mxu0 0.0
    %1541 = vmatpush.msra.mxu0 0.0
    %1542 = vmatpush.msra.mxu0 0.0
    %1543 = vmatpush.msra.mxu0 0.0
    %1544 = vmatpush.msra.mxu0 0.0
    %1545 = vmatpush.msra.mxu0 0.0
    %1546 = vmatpush.msra.mxu0 0.0
    %1547 = vmatpush.msra.mxu0 0.0
    %1548 = vmatpush.msra.mxu0 0.0
    %1549 = vmatpush.msra.mxu0 0.0
    %1550 = vmatpush.msra.mxu0 0.0
    %1551 = vmatpush.msra.mxu0 0.0
    %1552 = vmatpush.msra.mxu0 0.0
    %1553 = vmatpush.msra.mxu0 %v1165
    %1554 = vmatmul.f32.gmra.mxu0 %v1536
    %v1555 = vpop.f32.mrf.mxu0
    %v1556 = vadd.f32 0.0, %v1555
    %1557 = vdwg.mxu0
    %vm1558 = vcmp.eq.f32.partialorder %v1268, 11.0
    %vm1559 = vmand %vm1558, %vm1270
    %v1560 = vsel %vm1559, 1.0, 0.0
    %v1562 = vsel %vm426, %v1560, 0
    %1564 = vmatpush.msra.mxu0 0.0
    %1565 = vmatpush.msra.mxu0 0.0
    %1566 = vmatpush.msra.mxu0 0.0
    %1567 = vmatpush.msra.mxu0 0.0
    %1568 = vmatpush.msra.mxu0 0.0
    %1569 = vmatpush.msra.mxu0 0.0
    %1570 = vmatpush.msra.mxu0 0.0
    %1571 = vmatpush.msra.mxu0 0.0
    %1572 = vmatpush.msra.mxu0 0.0
    %1573 = vmatpush.msra.mxu0 0.0
    %1574 = vmatpush.msra.mxu0 0.0
    %1575 = vmatpush.msra.mxu0 0.0
    %1576 = vmatpush.msra.mxu0 0.0
    %1577 = vmatpush.msra.mxu0 0.0
    %1578 = vmatpush.msra.mxu0 0.0
    %1579 = vmatpush.msra.mxu0 %v1165
    %1580 = vmatmul.f32.gmra.mxu0 %v1562
    %v1581 = vpop.f32.mrf.mxu0
    %v1582 = vadd.f32 0.0, %v1581
    %1583 = vdwg.mxu0
    %vm1584 = vcmp.eq.f32.partialorder %v1268, 12.0
    %vm1585 = vmand %vm1584, %vm1270
    %v1586 = vsel %vm1585, 1.0, 0.0
    %v1588 = vsel %vm426, %v1586, 0
    %1590 = vmatpush.msra.mxu0 0.0
    %1591 = vmatpush.msra.mxu0 0.0
    %1592 = vmatpush.msra.mxu0 0.0
    %1593 = vmatpush.msra.mxu0 0.0
    %1594 = vmatpush.msra.mxu0 0.0
    %1595 = vmatpush.msra.mxu0 0.0
    %1596 = vmatpush.msra.mxu0 0.0
    %1597 = vmatpush.msra.mxu0 0.0
    %1598 = vmatpush.msra.mxu0 0.0
    %1599 = vmatpush.msra.mxu0 0.0
    %1600 = vmatpush.msra.mxu0 0.0
    %1601 = vmatpush.msra.mxu0 0.0
    %1602 = vmatpush.msra.mxu0 0.0
    %1603 = vmatpush.msra.mxu0 0.0
    %1604 = vmatpush.msra.mxu0 0.0
    %1605 = vmatpush.msra.mxu0 %v1165
    %1606 = vmatmul.f32.gmra.mxu0 %v1588
    %v1607 = vpop.f32.mrf.mxu0
    %v1608 = vadd.f32 0.0, %v1607
    %1609 = vdwg.mxu0
    %vm1610 = vcmp.eq.f32.partialorder %v1268, 13.0
    %vm1611 = vmand %vm1610, %vm1270
    %v1612 = vsel %vm1611, 1.0, 0.0
    %v1614 = vsel %vm426, %v1612, 0
    %1616 = vmatpush.msra.mxu0 0.0
    %1617 = vmatpush.msra.mxu0 0.0
    %1618 = vmatpush.msra.mxu0 0.0
    %1619 = vmatpush.msra.mxu0 0.0
    %1620 = vmatpush.msra.mxu0 0.0
    %1621 = vmatpush.msra.mxu0 0.0
    %1622 = vmatpush.msra.mxu0 0.0
    %1623 = vmatpush.msra.mxu0 0.0
    %1624 = vmatpush.msra.mxu0 0.0
    %1625 = vmatpush.msra.mxu0 0.0
    %1626 = vmatpush.msra.mxu0 0.0
    %1627 = vmatpush.msra.mxu0 0.0
    %1628 = vmatpush.msra.mxu0 0.0
    %1629 = vmatpush.msra.mxu0 0.0
    %1630 = vmatpush.msra.mxu0 0.0
    %1631 = vmatpush.msra.mxu0 %v1165
    %1632 = vmatmul.f32.gmra.mxu0 %v1614
    %v1633 = vpop.f32.mrf.mxu0
    %v1634 = vadd.f32 0.0, %v1633
    %1635 = vdwg.mxu0
    %vm1636 = vcmp.eq.f32.partialorder %v1268, 14.0
    %vm1637 = vmand %vm1636, %vm1270
    %v1638 = vsel %vm1637, 1.0, 0.0
    %v1640 = vsel %vm426, %v1638, 0
    %1642 = vmatpush.msra.mxu0 0.0
    %1643 = vmatpush.msra.mxu0 0.0
    %1644 = vmatpush.msra.mxu0 0.0
    %1645 = vmatpush.msra.mxu0 0.0
    %1646 = vmatpush.msra.mxu0 0.0
    %1647 = vmatpush.msra.mxu0 0.0
    %1648 = vmatpush.msra.mxu0 0.0
    %1649 = vmatpush.msra.mxu0 0.0
    %1650 = vmatpush.msra.mxu0 0.0
    %1651 = vmatpush.msra.mxu0 0.0
    %1652 = vmatpush.msra.mxu0 0.0
    %1653 = vmatpush.msra.mxu0 0.0
    %1654 = vmatpush.msra.mxu0 0.0
    %1655 = vmatpush.msra.mxu0 0.0
    %1656 = vmatpush.msra.mxu0 0.0
    %1657 = vmatpush.msra.mxu0 %v1165
    %1658 = vmatmul.f32.gmra.mxu0 %v1640
    %v1659 = vpop.f32.mrf.mxu0
    %v1660 = vadd.f32 0.0, %v1659
    %1661 = vdwg.mxu0
    %vm1662 = vcmp.eq.f32.partialorder %v1268, 15.0
    %vm1663 = vmand %vm1662, %vm1270
    %v1664 = vsel %vm1663, 1.0, 0.0
    %v1666 = vsel %vm426, %v1664, 0
    %1668 = vmatpush.msra.mxu0 0.0
    %1669 = vmatpush.msra.mxu0 0.0
    %1670 = vmatpush.msra.mxu0 0.0
    %1671 = vmatpush.msra.mxu0 0.0
    %1672 = vmatpush.msra.mxu0 0.0
    %1673 = vmatpush.msra.mxu0 0.0
    %1674 = vmatpush.msra.mxu0 0.0
    %1675 = vmatpush.msra.mxu0 0.0
    %1676 = vmatpush.msra.mxu0 0.0
    %1677 = vmatpush.msra.mxu0 0.0
    %1678 = vmatpush.msra.mxu0 0.0
    %1679 = vmatpush.msra.mxu0 0.0
    %1680 = vmatpush.msra.mxu0 0.0
    %1681 = vmatpush.msra.mxu0 0.0
    %1682 = vmatpush.msra.mxu0 0.0
    %1683 = vmatpush.msra.mxu0 %v1165
    %1684 = vmatmul.f32.gmra.mxu0 %v1666
    %v1685 = vpop.f32.mrf.mxu0
    %v1686 = vadd.f32 0.0, %v1685
    %1687 = vdwg.mxu0
    %1689 = vrot.lane.b32.xlu0 %v1322, 32
    %v1690 = vpop.permute.xlu0 %1689
    %1693 = vrot.lane.b32.xlu0 %v1348, 64
    %v1694 = vpop.permute.xlu0 %1693
    %1697 = vrot.lane.b32.xlu0 %v1374, 96
    %v1698 = vpop.permute.xlu0 %1697
    %1701 = vrot.lane.b32.xlu0 %v1426, 32
    %v1702 = vpop.permute.xlu0 %1701
    %1705 = vrot.lane.b32.xlu0 %v1452, 64
    %v1706 = vpop.permute.xlu0 %1705
    %1709 = vrot.lane.b32.xlu0 %v1478, 96
    %v1710 = vpop.permute.xlu0 %1709
    %1713 = vrot.lane.b32.xlu0 %v1530, 32
    %v1714 = vpop.permute.xlu0 %1713
    %1717 = vrot.lane.b32.xlu0 %v1556, 64
    %v1718 = vpop.permute.xlu0 %1717
    %1721 = vrot.lane.b32.xlu0 %v1582, 96
    %v1722 = vpop.permute.xlu0 %1721
    %1725 = vrot.lane.b32.xlu0 %v1634, 32
    %v1726 = vpop.permute.xlu0 %1725
    %1729 = vrot.lane.b32.xlu0 %v1660, 64
    %v1730 = vpop.permute.xlu0 %1729
    %1733 = vrot.lane.b32.xlu0 %v1686, 96
    %v1734 = vpop.permute.xlu0 %1733
    %v1736 = vsel %vm213, %v1296, %v1690
    %v1737 = vsel %vm889, %v1736, %v1694
    %v1738 = vsel %vm891, %v1737, %v1698
    %v1739 = vsel %vm213, %v1400, %v1702
    %v1740 = vsel %vm889, %v1739, %v1706
    %v1741 = vsel %vm891, %v1740, %v1710
    %v1742 = vsel %vm213, %v1504, %v1714
    %v1743 = vsel %vm889, %v1742, %v1718
    %v1744 = vsel %vm891, %v1743, %v1722
    %v1745 = vsel %vm213, %v1608, %v1726
    %v1746 = vsel %vm889, %v1745, %v1730
    %v1747 = vsel %vm891, %v1746, %v1734
    %1748 = vmatpush.msra.mxu0 %v92
    %1749 = vmatpush.msra.mxu0 %v91
    %1750 = vmatpush.msra.mxu0 %v90
    %1751 = vmatpush.msra.mxu0 %v89
    %1752 = vmatpush.msra.mxu0 %v88
    %1753 = vmatpush.msra.mxu0 %v87
    %1754 = vmatpush.msra.mxu0 %v86
    %1755 = vmatpush.msra.mxu0 %v85
    %1756 = vmatpush.msra.mxu0 %v84
    %1757 = vmatpush.msra.mxu0 %v83
    %1758 = vmatpush.msra.mxu0 %v82
    %1759 = vmatpush.msra.mxu0 %v81
    %1760 = vmatpush.msra.mxu0 %v80
    %1761 = vmatpush.msra.mxu0 %v79
    %1762 = vmatpush.msra.mxu0 %v78
    %1763 = vmatpush.msra.mxu0 %v77
    %1764 = vmatmul.f32.gmra.mxu0 %v1738
    %v1765 = vpop.f32.mrf.mxu0
    %v1766 = vadd.f32 %v167, %v1765
    %1767 = vdwg.mxu0
    %1768 = vmatpush.msra.mxu0 %v108
    %1769 = vmatpush.msra.mxu0 %v107
    %1770 = vmatpush.msra.mxu0 %v106
    %1771 = vmatpush.msra.mxu0 %v105
    %1772 = vmatpush.msra.mxu0 %v104
    %1773 = vmatpush.msra.mxu0 %v103
    %1774 = vmatpush.msra.mxu0 %v102
    %1775 = vmatpush.msra.mxu0 %v101
    %1776 = vmatpush.msra.mxu0 %v100
    %1777 = vmatpush.msra.mxu0 %v99
    %1778 = vmatpush.msra.mxu0 %v98
    %1779 = vmatpush.msra.mxu0 %v97
    %1780 = vmatpush.msra.mxu0 %v96
    %1781 = vmatpush.msra.mxu0 %v95
    %1782 = vmatpush.msra.mxu0 %v94
    %1783 = vmatpush.msra.mxu0 %v93
    %1784 = vmatmul.f32.gmra.mxu0 %v1741
    %v1785 = vpop.f32.mrf.mxu0
    %v1786 = vadd.f32 %v1766, %v1785
    %1787 = vdwg.mxu0
    %1788 = vmatpush.msra.mxu0 %v124
    %1789 = vmatpush.msra.mxu0 %v123
    %1790 = vmatpush.msra.mxu0 %v122
    %1791 = vmatpush.msra.mxu0 %v121
    %1792 = vmatpush.msra.mxu0 %v120
    %1793 = vmatpush.msra.mxu0 %v119
    %1794 = vmatpush.msra.mxu0 %v118
    %1795 = vmatpush.msra.mxu0 %v117
    %1796 = vmatpush.msra.mxu0 %v116
    %1797 = vmatpush.msra.mxu0 %v115
    %1798 = vmatpush.msra.mxu0 %v114
    %1799 = vmatpush.msra.mxu0 %v113
    %1800 = vmatpush.msra.mxu0 %v112
    %1801 = vmatpush.msra.mxu0 %v111
    %1802 = vmatpush.msra.mxu0 %v110
    %1803 = vmatpush.msra.mxu0 %v109
    %1804 = vmatmul.f32.gmra.mxu0 %v1744
    %v1805 = vpop.f32.mrf.mxu0
    %v1806 = vadd.f32 %v1786, %v1805
    %1807 = vdwg.mxu0
    %1808 = vmatpush.msra.mxu0 %v140
    %1809 = vmatpush.msra.mxu0 %v139
    %1810 = vmatpush.msra.mxu0 %v138
    %1811 = vmatpush.msra.mxu0 %v137
    %1812 = vmatpush.msra.mxu0 %v136
    %1813 = vmatpush.msra.mxu0 %v135
    %1814 = vmatpush.msra.mxu0 %v134
    %1815 = vmatpush.msra.mxu0 %v133
    %1816 = vmatpush.msra.mxu0 %v132
    %1817 = vmatpush.msra.mxu0 %v131
    %1818 = vmatpush.msra.mxu0 %v130
    %1819 = vmatpush.msra.mxu0 %v129
    %1820 = vmatpush.msra.mxu0 %v128
    %1821 = vmatpush.msra.mxu0 %v127
    %1822 = vmatpush.msra.mxu0 %v126
    %1823 = vmatpush.msra.mxu0 %v125
    %1824 = vmatmul.f32.gmra.mxu0 %v1747
    %v1825 = vpop.f32.mrf.mxu0
    %v1826 = vadd.f32 %v1806, %v1825
    %1827 = vdwg.mxu0
    %v1828 = vmax.f32 %v1826, 0.0
    %v1830 = vsel %vm213, %v1828, 0
    %1832 = vmatpush.msra.mxu0 0.0
    %1833 = vmatpush.msra.mxu0 0.0
    %1834 = vmatpush.msra.mxu0 0.0
    %1835 = vmatpush.msra.mxu0 0.0
    %1836 = vmatpush.msra.mxu0 0.0
    %1837 = vmatpush.msra.mxu0 0.0
    %1838 = vmatpush.msra.mxu0 0.0
    %1839 = vmatpush.msra.mxu0 0.0
    %1840 = vmatpush.msra.mxu0 0.0
    %1841 = vmatpush.msra.mxu0 0.0
    %1842 = vmatpush.msra.mxu0 0.0
    %1843 = vmatpush.msra.mxu0 0.0
    %1844 = vmatpush.msra.mxu0 %v148
    %1845 = vmatpush.msra.mxu0 %v147
    %1846 = vmatpush.msra.mxu0 %v146
    %1847 = vmatpush.msra.mxu0 %v145
    %1848 = vmatmul.f32.gmra.mxu0 %v1830
    %v1849 = vpop.f32.mrf.mxu0
    %v1850 = vadd.f32 0.0, %v1849
    %1851 = vdwg.mxu0
    %1852 = vmatpush.msra.mxu0 0.0
    %1853 = vmatpush.msra.mxu0 0.0
    %1854 = vmatpush.msra.mxu0 0.0
    %1855 = vmatpush.msra.mxu0 0.0
    %1856 = vmatpush.msra.mxu0 0.0
    %1857 = vmatpush.msra.mxu0 0.0
    %1858 = vmatpush.msra.mxu0 0.0
    %1859 = vmatpush.msra.mxu0 0.0
    %1860 = vmatpush.msra.mxu0 0.0
    %1861 = vmatpush.msra.mxu0 0.0
    %1862 = vmatpush.msra.mxu0 0.0
    %1863 = vmatpush.msra.mxu0 0.0
    %1864 = vmatpush.msra.mxu0 %v144
    %1865 = vmatpush.msra.mxu0 %v143
    %1866 = vmatpush.msra.mxu0 %v142
    %1867 = vmatpush.msra.mxu0 %v141
    %1868 = vmatmul.f32.gmra.mxu0 %v1166
    %v1869 = vpop.f32.mrf.mxu0
    %v1870 = vadd.f32 %v1850, %v1869
    %1871 = vdwg.mxu0
    %v1872 = vadd.f32 %v1870, %v171
    %v1873 = vmax.f32 %v1872, 0.0
    %v1875 = vsel %vm213, %v1873, 0
    %1877 = vmatpush.msra.mxu0 0.0
    %1878 = vmatpush.msra.mxu0 0.0
    %1879 = vmatpush.msra.mxu0 0.0
    %1880 = vmatpush.msra.mxu0 0.0
    %1881 = vmatpush.msra.mxu0 0.0
    %1882 = vmatpush.msra.mxu0 0.0
    %1883 = vmatpush.msra.mxu0 0.0
    %1884 = vmatpush.msra.mxu0 0.0
    %1885 = vmatpush.msra.mxu0 0.0
    %1886 = vmatpush.msra.mxu0 0.0
    %1887 = vmatpush.msra.mxu0 0.0
    %1888 = vmatpush.msra.mxu0 0.0
    %1889 = vmatpush.msra.mxu0 %v152
    %1890 = vmatpush.msra.mxu0 %v151
    %1891 = vmatpush.msra.mxu0 %v150
    %1892 = vmatpush.msra.mxu0 %v149
    %1893 = vmatmul.f32.gmra.mxu0 %v1875
    %v1894 = vpop.f32.mrf.mxu0
    %v1895 = vadd.f32 %v175, %v1894
    %1896 = vdwg.mxu0
    %v1897 = vmax.f32 %v1895, 0.0
    %s1898 = scalar_lea.vmem %s19, 8
    %1899 = vst.msk [vmem:[%s1898] sm:$0xff] %vm183, %v1186
    %s1900 = scalar_lea.vmem %s20, 8
    %1901 = vst.msk [vmem:[%s1900] sm:$0xff] %vm183, %v1188
    %v1903 = vsel %vm183, %v1186, 0
    %1905 = vmatpush.msra.mxu0 0.0
    %1906 = vmatpush.msra.mxu0 0.0
    %1907 = vmatpush.msra.mxu0 0.0
    %1908 = vmatpush.msra.mxu0 0.0
    %1909 = vmatpush.msra.mxu0 0.0
    %1910 = vmatpush.msra.mxu0 0.0
    %1911 = vmatpush.msra.mxu0 0.0
    %1912 = vmatpush.msra.mxu0 0.0
    %1913 = vmatpush.msra.mxu0 0.0
    %1914 = vmatpush.msra.mxu0 0.0
    %1915 = vmatpush.msra.mxu0 0.0
    %1916 = vmatpush.msra.mxu0 0.0
    %1917 = vmatpush.msra.mxu0 0.0
    %1918 = vmatpush.msra.mxu0 0.0
    %1919 = vmatpush.msra.mxu0 0.0
    %1920 = vmatpush.msra.mxu0 %v189
    %1921 = vmatmul.f32.gmra.mxu0 %v1903
    %v1922 = vpop.f32.mrf.mxu0
    %v1923 = vadd.f32 %v155, %v1922
    %1924 = vdwg.mxu0
    %v1925 = vmax.f32 %v1923, 0.0
    %v1926 = vmin.f32 %v1925, 6.0
    %v1928 = vsel %vm213, %v1897, 0
    %1930 = vmatpush.msra.mxu0 0.0
    %1931 = vmatpush.msra.mxu0 0.0
    %1932 = vmatpush.msra.mxu0 0.0
    %1933 = vmatpush.msra.mxu0 0.0
    %1934 = vmatpush.msra.mxu0 0.0
    %1935 = vmatpush.msra.mxu0 0.0
    %1936 = vmatpush.msra.mxu0 0.0
    %1937 = vmatpush.msra.mxu0 0.0
    %1938 = vmatpush.msra.mxu0 0.0
    %1939 = vmatpush.msra.mxu0 0.0
    %1940 = vmatpush.msra.mxu0 0.0
    %1941 = vmatpush.msra.mxu0 0.0
    %1942 = vmatpush.msra.mxu0 %v72
    %1943 = vmatpush.msra.mxu0 %v71
    %1944 = vmatpush.msra.mxu0 %v70
    %1945 = vmatpush.msra.mxu0 %v69
    %1946 = vmatmul.f32.gmra.mxu0 %v1928
    %v1947 = vpop.f32.mrf.mxu0
    %v1948 = vadd.f32 0.0, %v1947
    %1949 = vdwg.mxu0
    %v1951 = vsel %vm237, %v1926, 0
    %1953 = vmatpush.msra.mxu0 0.0
    %1954 = vmatpush.msra.mxu0 0.0
    %1955 = vmatpush.msra.mxu0 0.0
    %1956 = vmatpush.msra.mxu0 0.0
    %1957 = vmatpush.msra.mxu0 0.0
    %1958 = vmatpush.msra.mxu0 0.0
    %1959 = vmatpush.msra.mxu0 0.0
    %1960 = vmatpush.msra.mxu0 0.0
    %1961 = vmatpush.msra.mxu0 0.0
    %1962 = vmatpush.msra.mxu0 0.0
    %1963 = vmatpush.msra.mxu0 0.0
    %1964 = vmatpush.msra.mxu0 0.0
    %1965 = vmatpush.msra.mxu0 0.0
    %1966 = vmatpush.msra.mxu0 0.0
    %1967 = vmatpush.msra.mxu0 %v68
    %1968 = vmatpush.msra.mxu0 %v67
    %1969 = vmatmul.f32.gmra.mxu0 %v1951
    %v1970 = vpop.f32.mrf.mxu0
    %v1971 = vadd.f32 %v1948, %v1970
    %1972 = vdwg.mxu0
    %v1973 = vadd.f32 %v1971, %v159
    %v1974 = vxor.u32 %v1973, 2147483648
    %v1975 = vmul.f32 %v1974, 1.442695
    %v1976 = vpow.pop %v1975
    %v1977 = vadd.f32 %v1976, 1.0
    %v1978 = vrcp.pop %v1977
    %v1979 = vmul.f32 %v1977, %v1978
    %v1980 = vsub.f32 1.0, %v1979
    %v1981 = vmul.f32 %v1978, %v1980
    %v1982 = vadd.f32 %v1978, %v1981
    %vm1983 = vweird.f32 %v1977
    %vm1984 = vweird.f32 %v1978
    %vm1985 = vmor %vm1983, %vm1984
    %v1986 = vsel %vm1985, %v1978, %v1982
    %v1987 = vand.u32 2147483647, %v1977
    %vm1988 = vcmp.eq.f32.partialorder %v1987, 8.507059e+37
    %v1989 = vand.u32 %v1977, 2147483648
    %v1990 = vor.u32 1.1754944e-38, %v1989
    %v1991 = vsel %vm1988, %v1990, %v1986
    %v1992 = vmul.f32 1.0, %v1991
    %v1993 = vtanh.pop %v1973
    %v1994 = vmul.f32 %v1992, %v1156
    %1996 = vrot.lane.b32.xlu0 %v1993, 64
    %v1997 = vpop.permute.xlu0 %1996
    %v1999 = vmul.f32 %v1992, %v1997
    %2001 = vrot.lane.b32.xlu0 %v1999, 32
    %v2002 = vpop.permute.xlu0 %2001
    %v2004 = vadd.f32 %v1994, %v2002
    %v2005 = vtanh.pop %v2004
    %2007 = vrot.lane.b32.xlu0 %v2005, 64
    %v2008 = vpop.permute.xlu0 %2007
    %v2010 = vmul.f32 %v1992, %v2008
    %2012 = vrot.lane.b32.xlu0 %v2010, 32
    %v2013 = vpop.permute.xlu0 %2012
    %v2014 = vsel %vm213, %v2013, 0
    %2016 = vmatpush.msra.mxu0 0.0
    %2017 = vmatpush.msra.mxu0 0.0
    %2018 = vmatpush.msra.mxu0 0.0
    %2019 = vmatpush.msra.mxu0 0.0
    %2020 = vmatpush.msra.mxu0 0.0
    %2021 = vmatpush.msra.mxu0 0.0
    %2022 = vmatpush.msra.mxu0 0.0
    %2023 = vmatpush.msra.mxu0 0.0
    %2024 = vmatpush.msra.mxu0 0.0
    %2025 = vmatpush.msra.mxu0 0.0
    %2026 = vmatpush.msra.mxu0 0.0
    %2027 = vmatpush.msra.mxu0 0.0
    %2028 = vmatpush.msra.mxu0 %v76
    %2029 = vmatpush.msra.mxu0 %v75
    %2030 = vmatpush.msra.mxu0 %v74
    %2031 = vmatpush.msra.mxu0 %v73
    %2032 = vmatmul.f32.gmra.mxu0 %v2014
    %v2033 = vpop.f32.mrf.mxu0
    %v2034 = vadd.f32 %v163, %v2033
    %2035 = vdwg.mxu0
    %v2036 = vadd.f32 %v2034, %v1188
    %v2038 = vsel %vm329, %v2036, 0
    %2040 = vmatpush.xpose.msra.mxu0 0.0
    %2041 = vmatpush.xpose.msra.mxu0 0.0
    %2042 = vmatpush.xpose.msra.mxu0 0.0
    %2043 = vmatpush.xpose.msra.mxu0 0.0
    %2044 = vmatpush.xpose.msra.mxu0 0.0
    %2045 = vmatpush.xpose.msra.mxu0 0.0
    %2046 = vmatpush.xpose.msra.mxu0 0.0
    %2047 = vmatpush.xpose.msra.mxu0 0.0
    %2048 = vmatpush.xpose.msra.mxu0 0.0
    %2049 = vmatpush.xpose.msra.mxu0 0.0
    %2050 = vmatpush.xpose.msra.mxu0 0.0
    %2051 = vmatpush.xpose.msra.mxu0 0.0
    %2052 = vmatpush.xpose.msra.mxu0 0.0
    %2053 = vmatpush.xpose.msra.mxu0 0.0
    %2054 = vmatpush.xpose.msra.mxu0 0.0
    %2055 = vmatpush.xpose.msra.mxu0 %v2038
    %2056 = vmatmul.f32.gmra.mxu0 %v331
    %v2057 = vpop.f32.mrf.mxu0
    %v2058 = vadd.f32 0.0, %v2057
    %2059 = vdwg.mxu0
    %2060 = vrot.lane.b32.xlu0 %v2036, 127
    %v2061 = vpop.permute.xlu0 %2060
    %v2062 = vsel %vm329, %v2061, 0
    %2064 = vmatpush.xpose.msra.mxu0 0.0
    %2065 = vmatpush.xpose.msra.mxu0 0.0
    %2066 = vmatpush.xpose.msra.mxu0 0.0
    %2067 = vmatpush.xpose.msra.mxu0 0.0
    %2068 = vmatpush.xpose.msra.mxu0 0.0
    %2069 = vmatpush.xpose.msra.mxu0 0.0
    %2070 = vmatpush.xpose.msra.mxu0 0.0
    %2071 = vmatpush.xpose.msra.mxu0 0.0
    %2072 = vmatpush.xpose.msra.mxu0 0.0
    %2073 = vmatpush.xpose.msra.mxu0 0.0
    %2074 = vmatpush.xpose.msra.mxu0 0.0
    %2075 = vmatpush.xpose.msra.mxu0 0.0
    %2076 = vmatpush.xpose.msra.mxu0 0.0
    %2077 = vmatpush.xpose.msra.mxu0 0.0
    %2078 = vmatpush.xpose.msra.mxu0 0.0
    %2079 = vmatpush.xpose.msra.mxu0 %v2062
    %2080 = vmatmul.f32.gmra.mxu0 %v331
    %v2081 = vpop.f32.mrf.mxu0
    %v2082 = vadd.f32 0.0, %v2081
    %2083 = vdwg.mxu0
    %2084 = vset.pattern.permute.xlu0 0
    %2085 = vperm.xlu0 %2084, %v2036
    %v2086 = vpop.permute.xlu0 %2085
    %v2088 = vsub.f32 %v2058, %v2086
    %2089 = vset.pattern.permute.xlu0 1
    %2090 = vperm.xlu0 %2089, %v2036
    %v2091 = vpop.permute.xlu0 %2090
    %v2093 = vsub.f32 %v2082, %v2091
    %vm2094 = vcmp.ge.f32.partialorder %v2088, 1.0
    %vm2095 = vcmp.le.f32.partialorder %v2088, -1.0
    %vm2096 = vmor %vm2094, %vm2095
    %vm2097 = vcmp.ge.f32.partialorder %v2093, 1.0
    %vm2098 = vcmp.le.f32.partialorder %v2093, -1.0
    %vm2099 = vmor %vm2097, %vm2098
    %vm2100 = vmor %vm2096, %vm2099
    %v2101 = vadd.f32 %v2088, 1.0
    %v2102 = vmul.f32 %v2101, %v404
    %v2103 = vmul.f32 %v2102, 4.0
    %v2104 = vfloor.f32 %v2103
    %vm2105 = vcmp.eq.f32.partialorder %v2104, 4.0
    %v2106 = vsub.f32 %v2104, 1.0
    %v2107 = vsel %vm2105, %v2106, %v2104
    %v2108 = vsub.f32 1.0, %v2093
    %v2109 = vmul.f32 %v2108, %v404
    %v2110 = vmul.f32 %v2109, 4.0
    %v2111 = vfloor.f32 %v2110
    %vm2112 = vcmp.eq.f32.partialorder %v2111, 4.0
    %v2113 = vsub.f32 %v2111, 1.0
    %v2114 = vsel %vm2112, %v2113, %v2111
    %v2115 = vmul.f32 %v2114, 4.0
    %v2116 = vadd.f32 %v2107, %v2115
    %vm2117 = vmxor %vm2100, 1
    %vm2118 = vmand %vm178, %vm2117
    %vm2119 = vcmp.eq.f32.partialorder %v2116, 0.0
    %vm2120 = vmand %vm2119, %vm2118
    %v2121 = vsel %vm2120, 1.0, 0.0
    %v2124 = vsel %vm426, %v2121, 0
    %2126 = vmatpush.msra.mxu0 0.0
    %2127 = vmatpush.msra.mxu0 0.0
    %2128 = vmatpush.msra.mxu0 0.0
    %2129 = vmatpush.msra.mxu0 0.0
    %2130 = vmatpush.msra.mxu0 0.0
    %2131 = vmatpush.msra.mxu0 0.0
    %2132 = vmatpush.msra.mxu0 0.0
    %2133 = vmatpush.msra.mxu0 0.0
    %2134 = vmatpush.msra.mxu0 0.0
    %2135 = vmatpush.msra.mxu0 0.0
    %2136 = vmatpush.msra.mxu0 0.0
    %2137 = vmatpush.msra.mxu0 0.0
    %2138 = vmatpush.msra.mxu0 0.0
    %2139 = vmatpush.msra.mxu0 0.0
    %2140 = vmatpush.msra.mxu0 0.0
    %2141 = vmatpush.msra.mxu0 %v2013
    %2142 = vmatmul.f32.gmra.mxu0 %v2124
    %v2143 = vpop.f32.mrf.mxu0
    %v2144 = vadd.f32 0.0, %v2143
    %2145 = vdwg.mxu0
    %vm2146 = vcmp.eq.f32.partialorder %v2116, 1.0
    %vm2147 = vmand %vm2146, %vm2118
    %v2148 = vsel %vm2147, 1.0, 0.0
    %v2150 = vsel %vm426, %v2148, 0
    %2152 = vmatpush.msra.mxu0 0.0
    %2153 = vmatpush.msra.mxu0 0.0
    %2154 = vmatpush.msra.mxu0 0.0
    %2155 = vmatpush.msra.mxu0 0.0
    %2156 = vmatpush.msra.mxu0 0.0
    %2157 = vmatpush.msra.mxu0 0.0
    %2158 = vmatpush.msra.mxu0 0.0
    %2159 = vmatpush.msra.mxu0 0.0
    %2160 = vmatpush.msra.mxu0 0.0
    %2161 = vmatpush.msra.mxu0 0.0
    %2162 = vmatpush.msra.mxu0 0.0
    %2163 = vmatpush.msra.mxu0 0.0
    %2164 = vmatpush.msra.mxu0 0.0
    %2165 = vmatpush.msra.mxu0 0.0
    %2166 = vmatpush.msra.mxu0 0.0
    %2167 = vmatpush.msra.mxu0 %v2013
    %2168 = vmatmul.f32.gmra.mxu0 %v2150
    %v2169 = vpop.f32.mrf.mxu0
    %v2170 = vadd.f32 0.0, %v2169
    %2171 = vdwg.mxu0
    %vm2172 = vcmp.eq.f32.partialorder %v2116, 2.0
    %vm2173 = vmand %vm2172, %vm2118
    %v2174 = vsel %vm2173, 1.0, 0.0
    %v2176 = vsel %vm426, %v2174, 0
    %2178 = vmatpush.msra.mxu0 0.0
    %2179 = vmatpush.msra.mxu0 0.0
    %2180 = vmatpush.msra.mxu0 0.0
    %2181 = vmatpush.msra.mxu0 0.0
    %2182 = vmatpush.msra.mxu0 0.0
    %2183 = vmatpush.msra.mxu0 0.0
    %2184 = vmatpush.msra.mxu0 0.0
    %2185 = vmatpush.msra.mxu0 0.0
    %2186 = vmatpush.msra.mxu0 0.0
    %2187 = vmatpush.msra.mxu0 0.0
    %2188 = vmatpush.msra.mxu0 0.0
    %2189 = vmatpush.msra.mxu0 0.0
    %2190 = vmatpush.msra.mxu0 0.0
    %2191 = vmatpush.msra.mxu0 0.0
    %2192 = vmatpush.msra.mxu0 0.0
    %2193 = vmatpush.msra.mxu0 %v2013
    %2194 = vmatmul.f32.gmra.mxu0 %v2176
    %v2195 = vpop.f32.mrf.mxu0
    %v2196 = vadd.f32 0.0, %v2195
    %2197 = vdwg.mxu0
    %vm2198 = vcmp.eq.f32.partialorder %v2116, 3.0
    %vm2199 = vmand %vm2198, %vm2118
    %v2200 = vsel %vm2199, 1.0, 0.0
    %v2202 = vsel %vm426, %v2200, 0
    %2204 = vmatpush.msra.mxu0 0.0
    %2205 = vmatpush.msra.mxu0 0.0
    %2206 = vmatpush.msra.mxu0 0.0
    %2207 = vmatpush.msra.mxu0 0.0
    %2208 = vmatpush.msra.mxu0 0.0
    %2209 = vmatpush.msra.mxu0 0.0
    %2210 = vmatpush.msra.mxu0 0.0
    %2211 = vmatpush.msra.mxu0 0.0
    %2212 = vmatpush.msra.mxu0 0.0
    %2213 = vmatpush.msra.mxu0 0.0
    %2214 = vmatpush.msra.mxu0 0.0
    %2215 = vmatpush.msra.mxu0 0.0
    %2216 = vmatpush.msra.mxu0 0.0
    %2217 = vmatpush.msra.mxu0 0.0
    %2218 = vmatpush.msra.mxu0 0.0
    %2219 = vmatpush.msra.mxu0 %v2013
    %2220 = vmatmul.f32.gmra.mxu0 %v2202
    %v2221 = vpop.f32.mrf.mxu0
    %v2222 = vadd.f32 0.0, %v2221
    %2223 = vdwg.mxu0
    %vm2224 = vcmp.eq.f32.partialorder %v2116, 4.0
    %vm2225 = vmand %vm2224, %vm2118
    %v2226 = vsel %vm2225, 1.0, 0.0
    %v2228 = vsel %vm426, %v2226, 0
    %2230 = vmatpush.msra.mxu0 0.0
    %2231 = vmatpush.msra.mxu0 0.0
    %2232 = vmatpush.msra.mxu0 0.0
    %2233 = vmatpush.msra.mxu0 0.0
    %2234 = vmatpush.msra.mxu0 0.0
    %2235 = vmatpush.msra.mxu0 0.0
    %2236 = vmatpush.msra.mxu0 0.0
    %2237 = vmatpush.msra.mxu0 0.0
    %2238 = vmatpush.msra.mxu0 0.0
    %2239 = vmatpush.msra.mxu0 0.0
    %2240 = vmatpush.msra.mxu0 0.0
    %2241 = vmatpush.msra.mxu0 0.0
    %2242 = vmatpush.msra.mxu0 0.0
    %2243 = vmatpush.msra.mxu0 0.0
    %2244 = vmatpush.msra.mxu0 0.0
    %2245 = vmatpush.msra.mxu0 %v2013
    %2246 = vmatmul.f32.gmra.mxu0 %v2228
    %v2247 = vpop.f32.mrf.mxu0
    %v2248 = vadd.f32 0.0, %v2247
    %2249 = vdwg.mxu0
    %vm2250 = vcmp.eq.f32.partialorder %v2116, 5.0
    %vm2251 = vmand %vm2250, %vm2118
    %v2252 = vsel %vm2251, 1.0, 0.0
    %v2254 = vsel %vm426, %v2252, 0
    %2256 = vmatpush.msra.mxu0 0.0
    %2257 = vmatpush.msra.mxu0 0.0
    %2258 = vmatpush.msra.mxu0 0.0
    %2259 = vmatpush.msra.mxu0 0.0
    %2260 = vmatpush.msra.mxu0 0.0
    %2261 = vmatpush.msra.mxu0 0.0
    %2262 = vmatpush.msra.mxu0 0.0
    %2263 = vmatpush.msra.mxu0 0.0
    %2264 = vmatpush.msra.mxu0 0.0
    %2265 = vmatpush.msra.mxu0 0.0
    %2266 = vmatpush.msra.mxu0 0.0
    %2267 = vmatpush.msra.mxu0 0.0
    %2268 = vmatpush.msra.mxu0 0.0
    %2269 = vmatpush.msra.mxu0 0.0
    %2270 = vmatpush.msra.mxu0 0.0
    %2271 = vmatpush.msra.mxu0 %v2013
    %2272 = vmatmul.f32.gmra.mxu0 %v2254
    %v2273 = vpop.f32.mrf.mxu0
    %v2274 = vadd.f32 0.0, %v2273
    %2275 = vdwg.mxu0
    %vm2276 = vcmp.eq.f32.partialorder %v2116, 6.0
    %vm2277 = vmand %vm2276, %vm2118
    %v2278 = vsel %vm2277, 1.0, 0.0
    %v2280 = vsel %vm426, %v2278, 0
    %2282 = vmatpush.msra.mxu0 0.0
    %2283 = vmatpush.msra.mxu0 0.0
    %2284 = vmatpush.msra.mxu0 0.0
    %2285 = vmatpush.msra.mxu0 0.0
    %2286 = vmatpush.msra.mxu0 0.0
    %2287 = vmatpush.msra.mxu0 0.0
    %2288 = vmatpush.msra.mxu0 0.0
    %2289 = vmatpush.msra.mxu0 0.0
    %2290 = vmatpush.msra.mxu0 0.0
    %2291 = vmatpush.msra.mxu0 0.0
    %2292 = vmatpush.msra.mxu0 0.0
    %2293 = vmatpush.msra.mxu0 0.0
    %2294 = vmatpush.msra.mxu0 0.0
    %2295 = vmatpush.msra.mxu0 0.0
    %2296 = vmatpush.msra.mxu0 0.0
    %2297 = vmatpush.msra.mxu0 %v2013
    %2298 = vmatmul.f32.gmra.mxu0 %v2280
    %v2299 = vpop.f32.mrf.mxu0
    %v2300 = vadd.f32 0.0, %v2299
    %2301 = vdwg.mxu0
    %vm2302 = vcmp.eq.f32.partialorder %v2116, 7.0
    %vm2303 = vmand %vm2302, %vm2118
    %v2304 = vsel %vm2303, 1.0, 0.0
    %v2306 = vsel %vm426, %v2304, 0
    %2308 = vmatpush.msra.mxu0 0.0
    %2309 = vmatpush.msra.mxu0 0.0
    %2310 = vmatpush.msra.mxu0 0.0
    %2311 = vmatpush.msra.mxu0 0.0
    %2312 = vmatpush.msra.mxu0 0.0
    %2313 = vmatpush.msra.mxu0 0.0
    %2314 = vmatpush.msra.mxu0 0.0
    %2315 = vmatpush.msra.mxu0 0.0
    %2316 = vmatpush.msra.mxu0 0.0
    %2317 = vmatpush.msra.mxu0 0.0
    %2318 = vmatpush.msra.mxu0 0.0
    %2319 = vmatpush.msra.mxu0 0.0
    %2320 = vmatpush.msra.mxu0 0.0
    %2321 = vmatpush.msra.mxu0 0.0
    %2322 = vmatpush.msra.mxu0 0.0
    %2323 = vmatpush.msra.mxu0 %v2013
    %2324 = vmatmul.f32.gmra.mxu0 %v2306
    %v2325 = vpop.f32.mrf.mxu0
    %v2326 = vadd.f32 0.0, %v2325
    %2327 = vdwg.mxu0
    %vm2328 = vcmp.eq.f32.partialorder %v2116, 8.0
    %vm2329 = vmand %vm2328, %vm2118
    %v2330 = vsel %vm2329, 1.0, 0.0
    %v2332 = vsel %vm426, %v2330, 0
    %2334 = vmatpush.msra.mxu0 0.0
    %2335 = vmatpush.msra.mxu0 0.0
    %2336 = vmatpush.msra.mxu0 0.0
    %2337 = vmatpush.msra.mxu0 0.0
    %2338 = vmatpush.msra.mxu0 0.0
    %2339 = vmatpush.msra.mxu0 0.0
    %2340 = vmatpush.msra.mxu0 0.0
    %2341 = vmatpush.msra.mxu0 0.0
    %2342 = vmatpush.msra.mxu0 0.0
    %2343 = vmatpush.msra.mxu0 0.0
    %2344 = vmatpush.msra.mxu0 0.0
    %2345 = vmatpush.msra.mxu0 0.0
    %2346 = vmatpush.msra.mxu0 0.0
    %2347 = vmatpush.msra.mxu0 0.0
    %2348 = vmatpush.msra.mxu0 0.0
    %2349 = vmatpush.msra.mxu0 %v2013
    %2350 = vmatmul.f32.gmra.mxu0 %v2332
    %v2351 = vpop.f32.mrf.mxu0
    %v2352 = vadd.f32 0.0, %v2351
    %2353 = vdwg.mxu0
    %vm2354 = vcmp.eq.f32.partialorder %v2116, 9.0
    %vm2355 = vmand %vm2354, %vm2118
    %v2356 = vsel %vm2355, 1.0, 0.0
    %v2358 = vsel %vm426, %v2356, 0
    %2360 = vmatpush.msra.mxu0 0.0
    %2361 = vmatpush.msra.mxu0 0.0
    %2362 = vmatpush.msra.mxu0 0.0
    %2363 = vmatpush.msra.mxu0 0.0
    %2364 = vmatpush.msra.mxu0 0.0
    %2365 = vmatpush.msra.mxu0 0.0
    %2366 = vmatpush.msra.mxu0 0.0
    %2367 = vmatpush.msra.mxu0 0.0
    %2368 = vmatpush.msra.mxu0 0.0
    %2369 = vmatpush.msra.mxu0 0.0
    %2370 = vmatpush.msra.mxu0 0.0
    %2371 = vmatpush.msra.mxu0 0.0
    %2372 = vmatpush.msra.mxu0 0.0
    %2373 = vmatpush.msra.mxu0 0.0
    %2374 = vmatpush.msra.mxu0 0.0
    %2375 = vmatpush.msra.mxu0 %v2013
    %2376 = vmatmul.f32.gmra.mxu0 %v2358
    %v2377 = vpop.f32.mrf.mxu0
    %v2378 = vadd.f32 0.0, %v2377
    %2379 = vdwg.mxu0
    %vm2380 = vcmp.eq.f32.partialorder %v2116, 10.0
    %vm2381 = vmand %vm2380, %vm2118
    %v2382 = vsel %vm2381, 1.0, 0.0
    %v2384 = vsel %vm426, %v2382, 0
    %2386 = vmatpush.msra.mxu0 0.0
    %2387 = vmatpush.msra.mxu0 0.0
    %2388 = vmatpush.msra.mxu0 0.0
    %2389 = vmatpush.msra.mxu0 0.0
    %2390 = vmatpush.msra.mxu0 0.0
    %2391 = vmatpush.msra.mxu0 0.0
    %2392 = vmatpush.msra.mxu0 0.0
    %2393 = vmatpush.msra.mxu0 0.0
    %2394 = vmatpush.msra.mxu0 0.0
    %2395 = vmatpush.msra.mxu0 0.0
    %2396 = vmatpush.msra.mxu0 0.0
    %2397 = vmatpush.msra.mxu0 0.0
    %2398 = vmatpush.msra.mxu0 0.0
    %2399 = vmatpush.msra.mxu0 0.0
    %2400 = vmatpush.msra.mxu0 0.0
    %2401 = vmatpush.msra.mxu0 %v2013
    %2402 = vmatmul.f32.gmra.mxu0 %v2384
    %v2403 = vpop.f32.mrf.mxu0
    %v2404 = vadd.f32 0.0, %v2403
    %2405 = vdwg.mxu0
    %vm2406 = vcmp.eq.f32.partialorder %v2116, 11.0
    %vm2407 = vmand %vm2406, %vm2118
    %v2408 = vsel %vm2407, 1.0, 0.0
    %v2410 = vsel %vm426, %v2408, 0
    %2412 = vmatpush.msra.mxu0 0.0
    %2413 = vmatpush.msra.mxu0 0.0
    %2414 = vmatpush.msra.mxu0 0.0
    %2415 = vmatpush.msra.mxu0 0.0
    %2416 = vmatpush.msra.mxu0 0.0
    %2417 = vmatpush.msra.mxu0 0.0
    %2418 = vmatpush.msra.mxu0 0.0
    %2419 = vmatpush.msra.mxu0 0.0
    %2420 = vmatpush.msra.mxu0 0.0
    %2421 = vmatpush.msra.mxu0 0.0
    %2422 = vmatpush.msra.mxu0 0.0
    %2423 = vmatpush.msra.mxu0 0.0
    %2424 = vmatpush.msra.mxu0 0.0
    %2425 = vmatpush.msra.mxu0 0.0
    %2426 = vmatpush.msra.mxu0 0.0
    %2427 = vmatpush.msra.mxu0 %v2013
    %2428 = vmatmul.f32.gmra.mxu0 %v2410
    %v2429 = vpop.f32.mrf.mxu0
    %v2430 = vadd.f32 0.0, %v2429
    %2431 = vdwg.mxu0
    %vm2432 = vcmp.eq.f32.partialorder %v2116, 12.0
    %vm2433 = vmand %vm2432, %vm2118
    %v2434 = vsel %vm2433, 1.0, 0.0
    %v2436 = vsel %vm426, %v2434, 0
    %2438 = vmatpush.msra.mxu0 0.0
    %2439 = vmatpush.msra.mxu0 0.0
    %2440 = vmatpush.msra.mxu0 0.0
    %2441 = vmatpush.msra.mxu0 0.0
    %2442 = vmatpush.msra.mxu0 0.0
    %2443 = vmatpush.msra.mxu0 0.0
    %2444 = vmatpush.msra.mxu0 0.0
    %2445 = vmatpush.msra.mxu0 0.0
    %2446 = vmatpush.msra.mxu0 0.0
    %2447 = vmatpush.msra.mxu0 0.0
    %2448 = vmatpush.msra.mxu0 0.0
    %2449 = vmatpush.msra.mxu0 0.0
    %2450 = vmatpush.msra.mxu0 0.0
    %2451 = vmatpush.msra.mxu0 0.0
    %2452 = vmatpush.msra.mxu0 0.0
    %2453 = vmatpush.msra.mxu0 %v2013
    %2454 = vmatmul.f32.gmra.mxu0 %v2436
    %v2455 = vpop.f32.mrf.mxu0
    %v2456 = vadd.f32 0.0, %v2455
    %2457 = vdwg.mxu0
    %vm2458 = vcmp.eq.f32.partialorder %v2116, 13.0
    %vm2459 = vmand %vm2458, %vm2118
    %v2460 = vsel %vm2459, 1.0, 0.0
    %v2462 = vsel %vm426, %v2460, 0
    %2464 = vmatpush.msra.mxu0 0.0
    %2465 = vmatpush.msra.mxu0 0.0
    %2466 = vmatpush.msra.mxu0 0.0
    %2467 = vmatpush.msra.mxu0 0.0
    %2468 = vmatpush.msra.mxu0 0.0
    %2469 = vmatpush.msra.mxu0 0.0
    %2470 = vmatpush.msra.mxu0 0.0
    %2471 = vmatpush.msra.mxu0 0.0
    %2472 = vmatpush.msra.mxu0 0.0
    %2473 = vmatpush.msra.mxu0 0.0
    %2474 = vmatpush.msra.mxu0 0.0
    %2475 = vmatpush.msra.mxu0 0.0
    %2476 = vmatpush.msra.mxu0 0.0
    %2477 = vmatpush.msra.mxu0 0.0
    %2478 = vmatpush.msra.mxu0 0.0
    %2479 = vmatpush.msra.mxu0 %v2013
    %2480 = vmatmul.f32.gmra.mxu0 %v2462
    %v2481 = vpop.f32.mrf.mxu0
    %v2482 = vadd.f32 0.0, %v2481
    %2483 = vdwg.mxu0
    %vm2484 = vcmp.eq.f32.partialorder %v2116, 14.0
    %vm2485 = vmand %vm2484, %vm2118
    %v2486 = vsel %vm2485, 1.0, 0.0
    %v2488 = vsel %vm426, %v2486, 0
    %2490 = vmatpush.msra.mxu0 0.0
    %2491 = vmatpush.msra.mxu0 0.0
    %2492 = vmatpush.msra.mxu0 0.0
    %2493 = vmatpush.msra.mxu0 0.0
    %2494 = vmatpush.msra.mxu0 0.0
    %2495 = vmatpush.msra.mxu0 0.0
    %2496 = vmatpush.msra.mxu0 0.0
    %2497 = vmatpush.msra.mxu0 0.0
    %2498 = vmatpush.msra.mxu0 0.0
    %2499 = vmatpush.msra.mxu0 0.0
    %2500 = vmatpush.msra.mxu0 0.0
    %2501 = vmatpush.msra.mxu0 0.0
    %2502 = vmatpush.msra.mxu0 0.0
    %2503 = vmatpush.msra.mxu0 0.0
    %2504 = vmatpush.msra.mxu0 0.0
    %2505 = vmatpush.msra.mxu0 %v2013
    %2506 = vmatmul.f32.gmra.mxu0 %v2488
    %v2507 = vpop.f32.mrf.mxu0
    %v2508 = vadd.f32 0.0, %v2507
    %2509 = vdwg.mxu0
    %vm2510 = vcmp.eq.f32.partialorder %v2116, 15.0
    %vm2511 = vmand %vm2510, %vm2118
    %v2512 = vsel %vm2511, 1.0, 0.0
    %v2514 = vsel %vm426, %v2512, 0
    %2516 = vmatpush.msra.mxu0 0.0
    %2517 = vmatpush.msra.mxu0 0.0
    %2518 = vmatpush.msra.mxu0 0.0
    %2519 = vmatpush.msra.mxu0 0.0
    %2520 = vmatpush.msra.mxu0 0.0
    %2521 = vmatpush.msra.mxu0 0.0
    %2522 = vmatpush.msra.mxu0 0.0
    %2523 = vmatpush.msra.mxu0 0.0
    %2524 = vmatpush.msra.mxu0 0.0
    %2525 = vmatpush.msra.mxu0 0.0
    %2526 = vmatpush.msra.mxu0 0.0
    %2527 = vmatpush.msra.mxu0 0.0
    %2528 = vmatpush.msra.mxu0 0.0
    %2529 = vmatpush.msra.mxu0 0.0
    %2530 = vmatpush.msra.mxu0 0.0
    %2531 = vmatpush.msra.mxu0 %v2013
    %2532 = vmatmul.f32.gmra.mxu0 %v2514
    %v2533 = vpop.f32.mrf.mxu0
    %v2534 = vadd.f32 0.0, %v2533
    %2535 = vdwg.mxu0
    %2537 = vrot.lane.b32.xlu0 %v2170, 32
    %v2538 = vpop.permute.xlu0 %2537
    %2541 = vrot.lane.b32.xlu0 %v2196, 64
    %v2542 = vpop.permute.xlu0 %2541
    %2545 = vrot.lane.b32.xlu0 %v2222, 96
    %v2546 = vpop.permute.xlu0 %2545
    %2549 = vrot.lane.b32.xlu0 %v2274, 32
    %v2550 = vpop.permute.xlu0 %2549
    %2553 = vrot.lane.b32.xlu0 %v2300, 64
    %v2554 = vpop.permute.xlu0 %2553
    %2557 = vrot.lane.b32.xlu0 %v2326, 96
    %v2558 = vpop.permute.xlu0 %2557
    %2561 = vrot.lane.b32.xlu0 %v2378, 32
    %v2562 = vpop.permute.xlu0 %2561
    %2565 = vrot.lane.b32.xlu0 %v2404, 64
    %v2566 = vpop.permute.xlu0 %2565
    %2569 = vrot.lane.b32.xlu0 %v2430, 96
    %v2570 = vpop.permute.xlu0 %2569
    %2573 = vrot.lane.b32.xlu0 %v2482, 32
    %v2574 = vpop.permute.xlu0 %2573
    %2577 = vrot.lane.b32.xlu0 %v2508, 64
    %v2578 = vpop.permute.xlu0 %2577
    %2581 = vrot.lane.b32.xlu0 %v2534, 96
    %v2582 = vpop.permute.xlu0 %2581
    %v2584 = vsel %vm213, %v2144, %v2538
    %v2585 = vsel %vm889, %v2584, %v2542
    %v2586 = vsel %vm891, %v2585, %v2546
    %v2587 = vsel %vm213, %v2248, %v2550
    %v2588 = vsel %vm889, %v2587, %v2554
    %v2589 = vsel %vm891, %v2588, %v2558
    %v2590 = vsel %vm213, %v2352, %v2562
    %v2591 = vsel %vm889, %v2590, %v2566
    %v2592 = vsel %vm891, %v2591, %v2570
    %v2593 = vsel %vm213, %v2456, %v2574
    %v2594 = vsel %vm889, %v2593, %v2578
    %v2595 = vsel %vm891, %v2594, %v2582
    %2596 = vmatpush.msra.mxu0 %v92
    %2597 = vmatpush.msra.mxu0 %v91
    %2598 = vmatpush.msra.mxu0 %v90
    %2599 = vmatpush.msra.mxu0 %v89
    %2600 = vmatpush.msra.mxu0 %v88
    %2601 = vmatpush.msra.mxu0 %v87
    %2602 = vmatpush.msra.mxu0 %v86
    %2603 = vmatpush.msra.mxu0 %v85
    %2604 = vmatpush.msra.mxu0 %v84
    %2605 = vmatpush.msra.mxu0 %v83
    %2606 = vmatpush.msra.mxu0 %v82
    %2607 = vmatpush.msra.mxu0 %v81
    %2608 = vmatpush.msra.mxu0 %v80
    %2609 = vmatpush.msra.mxu0 %v79
    %2610 = vmatpush.msra.mxu0 %v78
    %2611 = vmatpush.msra.mxu0 %v77
    %2612 = vmatmul.f32.gmra.mxu0 %v2586
    %v2613 = vpop.f32.mrf.mxu0
    %v2614 = vadd.f32 %v167, %v2613
    %2615 = vdwg.mxu0
    %2616 = vmatpush.msra.mxu0 %v108
    %2617 = vmatpush.msra.mxu0 %v107
    %2618 = vmatpush.msra.mxu0 %v106
    %2619 = vmatpush.msra.mxu0 %v105
    %2620 = vmatpush.msra.mxu0 %v104
    %2621 = vmatpush.msra.mxu0 %v103
    %2622 = vmatpush.msra.mxu0 %v102
    %2623 = vmatpush.msra.mxu0 %v101
    %2624 = vmatpush.msra.mxu0 %v100
    %2625 = vmatpush.msra.mxu0 %v99
    %2626 = vmatpush.msra.mxu0 %v98
    %2627 = vmatpush.msra.mxu0 %v97
    %2628 = vmatpush.msra.mxu0 %v96
    %2629 = vmatpush.msra.mxu0 %v95
    %2630 = vmatpush.msra.mxu0 %v94
    %2631 = vmatpush.msra.mxu0 %v93
    %2632 = vmatmul.f32.gmra.mxu0 %v2589
    %v2633 = vpop.f32.mrf.mxu0
    %v2634 = vadd.f32 %v2614, %v2633
    %2635 = vdwg.mxu0
    %2636 = vmatpush.msra.mxu0 %v124
    %2637 = vmatpush.msra.mxu0 %v123
    %2638 = vmatpush.msra.mxu0 %v122
    %2639 = vmatpush.msra.mxu0 %v121
    %2640 = vmatpush.msra.mxu0 %v120
    %2641 = vmatpush.msra.mxu0 %v119
    %2642 = vmatpush.msra.mxu0 %v118
    %2643 = vmatpush.msra.mxu0 %v117
    %2644 = vmatpush.msra.mxu0 %v116
    %2645 = vmatpush.msra.mxu0 %v115
    %2646 = vmatpush.msra.mxu0 %v114
    %2647 = vmatpush.msra.mxu0 %v113
    %2648 = vmatpush.msra.mxu0 %v112
    %2649 = vmatpush.msra.mxu0 %v111
    %2650 = vmatpush.msra.mxu0 %v110
    %2651 = vmatpush.msra.mxu0 %v109
    %2652 = vmatmul.f32.gmra.mxu0 %v2592
    %v2653 = vpop.f32.mrf.mxu0
    %v2654 = vadd.f32 %v2634, %v2653
    %2655 = vdwg.mxu0
    %2656 = vmatpush.msra.mxu0 %v140
    %2657 = vmatpush.msra.mxu0 %v139
    %2658 = vmatpush.msra.mxu0 %v138
    %2659 = vmatpush.msra.mxu0 %v137
    %2660 = vmatpush.msra.mxu0 %v136
    %2661 = vmatpush.msra.mxu0 %v135
    %2662 = vmatpush.msra.mxu0 %v134
    %2663 = vmatpush.msra.mxu0 %v133
    %2664 = vmatpush.msra.mxu0 %v132
    %2665 = vmatpush.msra.mxu0 %v131
    %2666 = vmatpush.msra.mxu0 %v130
    %2667 = vmatpush.msra.mxu0 %v129
    %2668 = vmatpush.msra.mxu0 %v128
    %2669 = vmatpush.msra.mxu0 %v127
    %2670 = vmatpush.msra.mxu0 %v126
    %2671 = vmatpush.msra.mxu0 %v125
    %2672 = vmatmul.f32.gmra.mxu0 %v2595
    %v2673 = vpop.f32.mrf.mxu0
    %v2674 = vadd.f32 %v2654, %v2673
    %2675 = vdwg.mxu0
    %v2676 = vmax.f32 %v2674, 0.0
    %v2678 = vsel %vm213, %v2676, 0
    %2680 = vmatpush.msra.mxu0 0.0
    %2681 = vmatpush.msra.mxu0 0.0
    %2682 = vmatpush.msra.mxu0 0.0
    %2683 = vmatpush.msra.mxu0 0.0
    %2684 = vmatpush.msra.mxu0 0.0
    %2685 = vmatpush.msra.mxu0 0.0
    %2686 = vmatpush.msra.mxu0 0.0
    %2687 = vmatpush.msra.mxu0 0.0
    %2688 = vmatpush.msra.mxu0 0.0
    %2689 = vmatpush.msra.mxu0 0.0
    %2690 = vmatpush.msra.mxu0 0.0
    %2691 = vmatpush.msra.mxu0 0.0
    %2692 = vmatpush.msra.mxu0 %v148
    %2693 = vmatpush.msra.mxu0 %v147
    %2694 = vmatpush.msra.mxu0 %v146
    %2695 = vmatpush.msra.mxu0 %v145
    %2696 = vmatmul.f32.gmra.mxu0 %v2678
    %v2697 = vpop.f32.mrf.mxu0
    %v2698 = vadd.f32 0.0, %v2697
    %2699 = vdwg.mxu0
    %2700 = vmatpush.msra.mxu0 0.0
    %2701 = vmatpush.msra.mxu0 0.0
    %2702 = vmatpush.msra.mxu0 0.0
    %2703 = vmatpush.msra.mxu0 0.0
    %2704 = vmatpush.msra.mxu0 0.0
    %2705 = vmatpush.msra.mxu0 0.0
    %2706 = vmatpush.msra.mxu0 0.0
    %2707 = vmatpush.msra.mxu0 0.0
    %2708 = vmatpush.msra.mxu0 0.0
    %2709 = vmatpush.msra.mxu0 0.0
    %2710 = vmatpush.msra.mxu0 0.0
    %2711 = vmatpush.msra.mxu0 0.0
    %2712 = vmatpush.msra.mxu0 %v144
    %2713 = vmatpush.msra.mxu0 %v143
    %2714 = vmatpush.msra.mxu0 %v142
    %2715 = vmatpush.msra.mxu0 %v141
    %2716 = vmatmul.f32.gmra.mxu0 %v2014
    %v2717 = vpop.f32.mrf.mxu0
    %v2718 = vadd.f32 %v2698, %v2717
    %2719 = vdwg.mxu0
    %v2720 = vadd.f32 %v2718, %v171
    %v2721 = vmax.f32 %v2720, 0.0
    %v2723 = vsel %vm213, %v2721, 0
    %2725 = vmatpush.msra.mxu0 0.0
    %2726 = vmatpush.msra.mxu0 0.0
    %2727 = vmatpush.msra.mxu0 0.0
    %2728 = vmatpush.msra.mxu0 0.0
    %2729 = vmatpush.msra.mxu0 0.0
    %2730 = vmatpush.msra.mxu0 0.0
    %2731 = vmatpush.msra.mxu0 0.0
    %2732 = vmatpush.msra.mxu0 0.0
    %2733 = vmatpush.msra.mxu0 0.0
    %2734 = vmatpush.msra.mxu0 0.0
    %2735 = vmatpush.msra.mxu0 0.0
    %2736 = vmatpush.msra.mxu0 0.0
    %2737 = vmatpush.msra.mxu0 %v152
    %2738 = vmatpush.msra.mxu0 %v151
    %2739 = vmatpush.msra.mxu0 %v150
    %2740 = vmatpush.msra.mxu0 %v149
    %2741 = vmatmul.f32.gmra.mxu0 %v2723
    %v2742 = vpop.f32.mrf.mxu0
    %v2743 = vadd.f32 %v175, %v2742
    %2744 = vdwg.mxu0
    %v2745 = vmax.f32 %v2743, 0.0
    %s2746 = scalar_lea.vmem %s19, 16
    %2747 = vst.msk [vmem:[%s2746] sm:$0xff] %vm183, %v2034
    %s2748 = scalar_lea.vmem %s20, 16
    %2749 = vst.msk [vmem:[%s2748] sm:$0xff] %vm183, %v2036
    %v2751 = vsel %vm183, %v2034, 0
    %2753 = vmatpush.msra.mxu0 0.0
    %2754 = vmatpush.msra.mxu0 0.0
    %2755 = vmatpush.msra.mxu0 0.0
    %2756 = vmatpush.msra.mxu0 0.0
    %2757 = vmatpush.msra.mxu0 0.0
    %2758 = vmatpush.msra.mxu0 0.0
    %2759 = vmatpush.msra.mxu0 0.0
    %2760 = vmatpush.msra.mxu0 0.0
    %2761 = vmatpush.msra.mxu0 0.0
    %2762 = vmatpush.msra.mxu0 0.0
    %2763 = vmatpush.msra.mxu0 0.0
    %2764 = vmatpush.msra.mxu0 0.0
    %2765 = vmatpush.msra.mxu0 0.0
    %2766 = vmatpush.msra.mxu0 0.0
    %2767 = vmatpush.msra.mxu0 0.0
    %2768 = vmatpush.msra.mxu0 %v189
    %2769 = vmatmul.f32.gmra.mxu0 %v2751
    %v2770 = vpop.f32.mrf.mxu0
    %v2771 = vadd.f32 %v155, %v2770
    %2772 = vdwg.mxu0
    %v2773 = vmax.f32 %v2771, 0.0
    %v2774 = vmin.f32 %v2773, 6.0
    %v2776 = vsel %vm213, %v2745, 0
    %2778 = vmatpush.msra.mxu0 0.0
    %2779 = vmatpush.msra.mxu0 0.0
    %2780 = vmatpush.msra.mxu0 0.0
    %2781 = vmatpush.msra.mxu0 0.0
    %2782 = vmatpush.msra.mxu0 0.0
    %2783 = vmatpush.msra.mxu0 0.0
    %2784 = vmatpush.msra.mxu0 0.0
    %2785 = vmatpush.msra.mxu0 0.0
    %2786 = vmatpush.msra.mxu0 0.0
    %2787 = vmatpush.msra.mxu0 0.0
    %2788 = vmatpush.msra.mxu0 0.0
    %2789 = vmatpush.msra.mxu0 0.0
    %2790 = vmatpush.msra.mxu0 %v72
    %2791 = vmatpush.msra.mxu0 %v71
    %2792 = vmatpush.msra.mxu0 %v70
    %2793 = vmatpush.msra.mxu0 %v69
    %2794 = vmatmul.f32.gmra.mxu0 %v2776
    %v2795 = vpop.f32.mrf.mxu0
    %v2796 = vadd.f32 0.0, %v2795
    %2797 = vdwg.mxu0
    %v2799 = vsel %vm237, %v2774, 0
    %2801 = vmatpush.msra.mxu0 0.0
    %2802 = vmatpush.msra.mxu0 0.0
    %2803 = vmatpush.msra.mxu0 0.0
    %2804 = vmatpush.msra.mxu0 0.0
    %2805 = vmatpush.msra.mxu0 0.0
    %2806 = vmatpush.msra.mxu0 0.0
    %2807 = vmatpush.msra.mxu0 0.0
    %2808 = vmatpush.msra.mxu0 0.0
    %2809 = vmatpush.msra.mxu0 0.0
    %2810 = vmatpush.msra.mxu0 0.0
    %2811 = vmatpush.msra.mxu0 0.0
    %2812 = vmatpush.msra.mxu0 0.0
    %2813 = vmatpush.msra.mxu0 0.0
    %2814 = vmatpush.msra.mxu0 0.0
    %2815 = vmatpush.msra.mxu0 %v68
    %2816 = vmatpush.msra.mxu0 %v67
    %2817 = vmatmul.f32.gmra.mxu0 %v2799
    %v2818 = vpop.f32.mrf.mxu0
    %v2819 = vadd.f32 %v2796, %v2818
    %2820 = vdwg.mxu0
    %v2821 = vadd.f32 %v2819, %v159
    %v2822 = vxor.u32 %v2821, 2147483648
    %v2823 = vmul.f32 %v2822, 1.442695
    %v2824 = vpow.pop %v2823
    %v2825 = vadd.f32 %v2824, 1.0
    %v2826 = vrcp.pop %v2825
    %v2827 = vmul.f32 %v2825, %v2826
    %v2828 = vsub.f32 1.0, %v2827
    %v2829 = vmul.f32 %v2826, %v2828
    %v2830 = vadd.f32 %v2826, %v2829
    %vm2831 = vweird.f32 %v2825
    %vm2832 = vweird.f32 %v2826
    %vm2833 = vmor %vm2831, %vm2832
    %v2834 = vsel %vm2833, %v2826, %v2830
    %v2835 = vand.u32 2147483647, %v2825
    %vm2836 = vcmp.eq.f32.partialorder %v2835, 8.507059e+37
    %v2837 = vand.u32 %v2825, 2147483648
    %v2838 = vor.u32 1.1754944e-38, %v2837
    %v2839 = vsel %vm2836, %v2838, %v2834
    %v2840 = vmul.f32 1.0, %v2839
    %v2841 = vtanh.pop %v2821
    %v2842 = vmul.f32 %v2840, %v2004
    %2844 = vrot.lane.b32.xlu0 %v2841, 64
    %v2845 = vpop.permute.xlu0 %2844
    %v2847 = vmul.f32 %v2840, %v2845
    %2849 = vrot.lane.b32.xlu0 %v2847, 32
    %v2850 = vpop.permute.xlu0 %2849
    %v2852 = vadd.f32 %v2842, %v2850
    %v2853 = vtanh.pop %v2852
    %2855 = vrot.lane.b32.xlu0 %v2853, 64
    %v2856 = vpop.permute.xlu0 %2855
    %v2858 = vmul.f32 %v2840, %v2856
    %2860 = vrot.lane.b32.xlu0 %v2858, 32
    %v2861 = vpop.permute.xlu0 %2860
    %v2862 = vsel %vm213, %v2861, 0
    %2864 = vmatpush.msra.mxu0 0.0
    %2865 = vmatpush.msra.mxu0 0.0
    %2866 = vmatpush.msra.mxu0 0.0
    %2867 = vmatpush.msra.mxu0 0.0
    %2868 = vmatpush.msra.mxu0 0.0
    %2869 = vmatpush.msra.mxu0 0.0
    %2870 = vmatpush.msra.mxu0 0.0
    %2871 = vmatpush.msra.mxu0 0.0
    %2872 = vmatpush.msra.mxu0 0.0
    %2873 = vmatpush.msra.mxu0 0.0
    %2874 = vmatpush.msra.mxu0 0.0
    %2875 = vmatpush.msra.mxu0 0.0
    %2876 = vmatpush.msra.mxu0 %v76
    %2877 = vmatpush.msra.mxu0 %v75
    %2878 = vmatpush.msra.mxu0 %v74
    %2879 = vmatpush.msra.mxu0 %v73
    %2880 = vmatmul.f32.gmra.mxu0 %v2862
    %v2881 = vpop.f32.mrf.mxu0
    %v2882 = vadd.f32 %v163, %v2881
    %2883 = vdwg.mxu0
    %v2884 = vadd.f32 %v2882, %v2036
    %v2886 = vsel %vm329, %v2884, 0
    %2888 = vmatpush.xpose.msra.mxu0 0.0
    %2889 = vmatpush.xpose.msra.mxu0 0.0
    %2890 = vmatpush.xpose.msra.mxu0 0.0
    %2891 = vmatpush.xpose.msra.mxu0 0.0
    %2892 = vmatpush.xpose.msra.mxu0 0.0
    %2893 = vmatpush.xpose.msra.mxu0 0.0
    %2894 = vmatpush.xpose.msra.mxu0 0.0
    %2895 = vmatpush.xpose.msra.mxu0 0.0
    %2896 = vmatpush.xpose.msra.mxu0 0.0
    %2897 = vmatpush.xpose.msra.mxu0 0.0
    %2898 = vmatpush.xpose.msra.mxu0 0.0
    %2899 = vmatpush.xpose.msra.mxu0 0.0
    %2900 = vmatpush.xpose.msra.mxu0 0.0
    %2901 = vmatpush.xpose.msra.mxu0 0.0
    %2902 = vmatpush.xpose.msra.mxu0 0.0
    %2903 = vmatpush.xpose.msra.mxu0 %v2886
    %2904 = vmatmul.f32.gmra.mxu0 %v331
    %v2905 = vpop.f32.mrf.mxu0
    %v2906 = vadd.f32 0.0, %v2905
    %2907 = vdwg.mxu0
    %2908 = vrot.lane.b32.xlu0 %v2884, 127
    %v2909 = vpop.permute.xlu0 %2908
    %v2910 = vsel %vm329, %v2909, 0
    %2912 = vmatpush.xpose.msra.mxu0 0.0
    %2913 = vmatpush.xpose.msra.mxu0 0.0
    %2914 = vmatpush.xpose.msra.mxu0 0.0
    %2915 = vmatpush.xpose.msra.mxu0 0.0
    %2916 = vmatpush.xpose.msra.mxu0 0.0
    %2917 = vmatpush.xpose.msra.mxu0 0.0
    %2918 = vmatpush.xpose.msra.mxu0 0.0
    %2919 = vmatpush.xpose.msra.mxu0 0.0
    %2920 = vmatpush.xpose.msra.mxu0 0.0
    %2921 = vmatpush.xpose.msra.mxu0 0.0
    %2922 = vmatpush.xpose.msra.mxu0 0.0
    %2923 = vmatpush.xpose.msra.mxu0 0.0
    %2924 = vmatpush.xpose.msra.mxu0 0.0
    %2925 = vmatpush.xpose.msra.mxu0 0.0
    %2926 = vmatpush.xpose.msra.mxu0 0.0
    %2927 = vmatpush.xpose.msra.mxu0 %v2910
    %2928 = vmatmul.f32.gmra.mxu0 %v331
    %v2929 = vpop.f32.mrf.mxu0
    %v2930 = vadd.f32 0.0, %v2929
    %2931 = vdwg.mxu0
    %2932 = vset.pattern.permute.xlu0 0
    %2933 = vperm.xlu0 %2932, %v2884
    %v2934 = vpop.permute.xlu0 %2933
    %v2936 = vsub.f32 %v2906, %v2934
    %2937 = vset.pattern.permute.xlu0 1
    %2938 = vperm.xlu0 %2937, %v2884
    %v2939 = vpop.permute.xlu0 %2938
    %v2941 = vsub.f32 %v2930, %v2939
    %vm2942 = vcmp.ge.f32.partialorder %v2936, 1.0
    %vm2943 = vcmp.le.f32.partialorder %v2936, -1.0
    %vm2944 = vmor %vm2942, %vm2943
    %vm2945 = vcmp.ge.f32.partialorder %v2941, 1.0
    %vm2946 = vcmp.le.f32.partialorder %v2941, -1.0
    %vm2947 = vmor %vm2945, %vm2946
    %vm2948 = vmor %vm2944, %vm2947
    %v2949 = vadd.f32 %v2936, 1.0
    %v2950 = vmul.f32 %v2949, %v404
    %v2951 = vmul.f32 %v2950, 4.0
    %v2952 = vfloor.f32 %v2951
    %vm2953 = vcmp.eq.f32.partialorder %v2952, 4.0
    %v2954 = vsub.f32 %v2952, 1.0
    %v2955 = vsel %vm2953, %v2954, %v2952
    %v2956 = vsub.f32 1.0, %v2941
    %v2957 = vmul.f32 %v2956, %v404
    %v2958 = vmul.f32 %v2957, 4.0
    %v2959 = vfloor.f32 %v2958
    %vm2960 = vcmp.eq.f32.partialorder %v2959, 4.0
    %v2961 = vsub.f32 %v2959, 1.0
    %v2962 = vsel %vm2960, %v2961, %v2959
    %v2963 = vmul.f32 %v2962, 4.0
    %v2964 = vadd.f32 %v2955, %v2963
    %vm2965 = vmxor %vm2948, 1
    %vm2966 = vmand %vm178, %vm2965
    %vm2967 = vcmp.eq.f32.partialorder %v2964, 0.0
    %vm2968 = vmand %vm2967, %vm2966
    %v2969 = vsel %vm2968, 1.0, 0.0
    %v2972 = vsel %vm426, %v2969, 0
    %2974 = vmatpush.msra.mxu0 0.0
    %2975 = vmatpush.msra.mxu0 0.0
    %2976 = vmatpush.msra.mxu0 0.0
    %2977 = vmatpush.msra.mxu0 0.0
    %2978 = vmatpush.msra.mxu0 0.0
    %2979 = vmatpush.msra.mxu0 0.0
    %2980 = vmatpush.msra.mxu0 0.0
    %2981 = vmatpush.msra.mxu0 0.0
    %2982 = vmatpush.msra.mxu0 0.0
    %2983 = vmatpush.msra.mxu0 0.0
    %2984 = vmatpush.msra.mxu0 0.0
    %2985 = vmatpush.msra.mxu0 0.0
    %2986 = vmatpush.msra.mxu0 0.0
    %2987 = vmatpush.msra.mxu0 0.0
    %2988 = vmatpush.msra.mxu0 0.0
    %2989 = vmatpush.msra.mxu0 %v2861
    %2990 = vmatmul.f32.gmra.mxu0 %v2972
    %v2991 = vpop.f32.mrf.mxu0
    %v2992 = vadd.f32 0.0, %v2991
    %2993 = vdwg.mxu0
    %vm2994 = vcmp.eq.f32.partialorder %v2964, 1.0
    %vm2995 = vmand %vm2994, %vm2966
    %v2996 = vsel %vm2995, 1.0, 0.0
    %v2998 = vsel %vm426, %v2996, 0
    %3000 = vmatpush.msra.mxu0 0.0
    %3001 = vmatpush.msra.mxu0 0.0
    %3002 = vmatpush.msra.mxu0 0.0
    %3003 = vmatpush.msra.mxu0 0.0
    %3004 = vmatpush.msra.mxu0 0.0
    %3005 = vmatpush.msra.mxu0 0.0
    %3006 = vmatpush.msra.mxu0 0.0
    %3007 = vmatpush.msra.mxu0 0.0
    %3008 = vmatpush.msra.mxu0 0.0
    %3009 = vmatpush.msra.mxu0 0.0
    %3010 = vmatpush.msra.mxu0 0.0
    %3011 = vmatpush.msra.mxu0 0.0
    %3012 = vmatpush.msra.mxu0 0.0
    %3013 = vmatpush.msra.mxu0 0.0
    %3014 = vmatpush.msra.mxu0 0.0
    %3015 = vmatpush.msra.mxu0 %v2861
    %3016 = vmatmul.f32.gmra.mxu0 %v2998
    %v3017 = vpop.f32.mrf.mxu0
    %v3018 = vadd.f32 0.0, %v3017
    %3019 = vdwg.mxu0
    %vm3020 = vcmp.eq.f32.partialorder %v2964, 2.0
    %vm3021 = vmand %vm3020, %vm2966
    %v3022 = vsel %vm3021, 1.0, 0.0
    %v3024 = vsel %vm426, %v3022, 0
    %3026 = vmatpush.msra.mxu0 0.0
    %3027 = vmatpush.msra.mxu0 0.0
    %3028 = vmatpush.msra.mxu0 0.0
    %3029 = vmatpush.msra.mxu0 0.0
    %3030 = vmatpush.msra.mxu0 0.0
    %3031 = vmatpush.msra.mxu0 0.0
    %3032 = vmatpush.msra.mxu0 0.0
    %3033 = vmatpush.msra.mxu0 0.0
    %3034 = vmatpush.msra.mxu0 0.0
    %3035 = vmatpush.msra.mxu0 0.0
    %3036 = vmatpush.msra.mxu0 0.0
    %3037 = vmatpush.msra.mxu0 0.0
    %3038 = vmatpush.msra.mxu0 0.0
    %3039 = vmatpush.msra.mxu0 0.0
    %3040 = vmatpush.msra.mxu0 0.0
    %3041 = vmatpush.msra.mxu0 %v2861
    %3042 = vmatmul.f32.gmra.mxu0 %v3024
    %v3043 = vpop.f32.mrf.mxu0
    %v3044 = vadd.f32 0.0, %v3043
    %3045 = vdwg.mxu0
    %vm3046 = vcmp.eq.f32.partialorder %v2964, 3.0
    %vm3047 = vmand %vm3046, %vm2966
    %v3048 = vsel %vm3047, 1.0, 0.0
    %v3050 = vsel %vm426, %v3048, 0
    %3052 = vmatpush.msra.mxu0 0.0
    %3053 = vmatpush.msra.mxu0 0.0
    %3054 = vmatpush.msra.mxu0 0.0
    %3055 = vmatpush.msra.mxu0 0.0
    %3056 = vmatpush.msra.mxu0 0.0
    %3057 = vmatpush.msra.mxu0 0.0
    %3058 = vmatpush.msra.mxu0 0.0
    %3059 = vmatpush.msra.mxu0 0.0
    %3060 = vmatpush.msra.mxu0 0.0
    %3061 = vmatpush.msra.mxu0 0.0
    %3062 = vmatpush.msra.mxu0 0.0
    %3063 = vmatpush.msra.mxu0 0.0
    %3064 = vmatpush.msra.mxu0 0.0
    %3065 = vmatpush.msra.mxu0 0.0
    %3066 = vmatpush.msra.mxu0 0.0
    %3067 = vmatpush.msra.mxu0 %v2861
    %3068 = vmatmul.f32.gmra.mxu0 %v3050
    %v3069 = vpop.f32.mrf.mxu0
    %v3070 = vadd.f32 0.0, %v3069
    %3071 = vdwg.mxu0
    %vm3072 = vcmp.eq.f32.partialorder %v2964, 4.0
    %vm3073 = vmand %vm3072, %vm2966
    %v3074 = vsel %vm3073, 1.0, 0.0
    %v3076 = vsel %vm426, %v3074, 0
    %3078 = vmatpush.msra.mxu0 0.0
    %3079 = vmatpush.msra.mxu0 0.0
    %3080 = vmatpush.msra.mxu0 0.0
    %3081 = vmatpush.msra.mxu0 0.0
    %3082 = vmatpush.msra.mxu0 0.0
    %3083 = vmatpush.msra.mxu0 0.0
    %3084 = vmatpush.msra.mxu0 0.0
    %3085 = vmatpush.msra.mxu0 0.0
    %3086 = vmatpush.msra.mxu0 0.0
    %3087 = vmatpush.msra.mxu0 0.0
    %3088 = vmatpush.msra.mxu0 0.0
    %3089 = vmatpush.msra.mxu0 0.0
    %3090 = vmatpush.msra.mxu0 0.0
    %3091 = vmatpush.msra.mxu0 0.0
    %3092 = vmatpush.msra.mxu0 0.0
    %3093 = vmatpush.msra.mxu0 %v2861
    %3094 = vmatmul.f32.gmra.mxu0 %v3076
    %v3095 = vpop.f32.mrf.mxu0
    %v3096 = vadd.f32 0.0, %v3095
    %3097 = vdwg.mxu0
    %vm3098 = vcmp.eq.f32.partialorder %v2964, 5.0
    %vm3099 = vmand %vm3098, %vm2966
    %v3100 = vsel %vm3099, 1.0, 0.0
    %v3102 = vsel %vm426, %v3100, 0
    %3104 = vmatpush.msra.mxu0 0.0
    %3105 = vmatpush.msra.mxu0 0.0
    %3106 = vmatpush.msra.mxu0 0.0
    %3107 = vmatpush.msra.mxu0 0.0
    %3108 = vmatpush.msra.mxu0 0.0
    %3109 = vmatpush.msra.mxu0 0.0
    %3110 = vmatpush.msra.mxu0 0.0
    %3111 = vmatpush.msra.mxu0 0.0
    %3112 = vmatpush.msra.mxu0 0.0
    %3113 = vmatpush.msra.mxu0 0.0
    %3114 = vmatpush.msra.mxu0 0.0
    %3115 = vmatpush.msra.mxu0 0.0
    %3116 = vmatpush.msra.mxu0 0.0
    %3117 = vmatpush.msra.mxu0 0.0
    %3118 = vmatpush.msra.mxu0 0.0
    %3119 = vmatpush.msra.mxu0 %v2861
    %3120 = vmatmul.f32.gmra.mxu0 %v3102
    %v3121 = vpop.f32.mrf.mxu0
    %v3122 = vadd.f32 0.0, %v3121
    %3123 = vdwg.mxu0
    %vm3124 = vcmp.eq.f32.partialorder %v2964, 6.0
    %vm3125 = vmand %vm3124, %vm2966
    %v3126 = vsel %vm3125, 1.0, 0.0
    %v3128 = vsel %vm426, %v3126, 0
    %3130 = vmatpush.msra.mxu0 0.0
    %3131 = vmatpush.msra.mxu0 0.0
    %3132 = vmatpush.msra.mxu0 0.0
    %3133 = vmatpush.msra.mxu0 0.0
    %3134 = vmatpush.msra.mxu0 0.0
    %3135 = vmatpush.msra.mxu0 0.0
    %3136 = vmatpush.msra.mxu0 0.0
    %3137 = vmatpush.msra.mxu0 0.0
    %3138 = vmatpush.msra.mxu0 0.0
    %3139 = vmatpush.msra.mxu0 0.0
    %3140 = vmatpush.msra.mxu0 0.0
    %3141 = vmatpush.msra.mxu0 0.0
    %3142 = vmatpush.msra.mxu0 0.0
    %3143 = vmatpush.msra.mxu0 0.0
    %3144 = vmatpush.msra.mxu0 0.0
    %3145 = vmatpush.msra.mxu0 %v2861
    %3146 = vmatmul.f32.gmra.mxu0 %v3128
    %v3147 = vpop.f32.mrf.mxu0
    %v3148 = vadd.f32 0.0, %v3147
    %3149 = vdwg.mxu0
    %vm3150 = vcmp.eq.f32.partialorder %v2964, 7.0
    %vm3151 = vmand %vm3150, %vm2966
    %v3152 = vsel %vm3151, 1.0, 0.0
    %v3154 = vsel %vm426, %v3152, 0
    %3156 = vmatpush.msra.mxu0 0.0
    %3157 = vmatpush.msra.mxu0 0.0
    %3158 = vmatpush.msra.mxu0 0.0
    %3159 = vmatpush.msra.mxu0 0.0
    %3160 = vmatpush.msra.mxu0 0.0
    %3161 = vmatpush.msra.mxu0 0.0
    %3162 = vmatpush.msra.mxu0 0.0
    %3163 = vmatpush.msra.mxu0 0.0
    %3164 = vmatpush.msra.mxu0 0.0
    %3165 = vmatpush.msra.mxu0 0.0
    %3166 = vmatpush.msra.mxu0 0.0
    %3167 = vmatpush.msra.mxu0 0.0
    %3168 = vmatpush.msra.mxu0 0.0
    %3169 = vmatpush.msra.mxu0 0.0
    %3170 = vmatpush.msra.mxu0 0.0
    %3171 = vmatpush.msra.mxu0 %v2861
    %3172 = vmatmul.f32.gmra.mxu0 %v3154
    %v3173 = vpop.f32.mrf.mxu0
    %v3174 = vadd.f32 0.0, %v3173
    %3175 = vdwg.mxu0
    %vm3176 = vcmp.eq.f32.partialorder %v2964, 8.0
    %vm3177 = vmand %vm3176, %vm2966
    %v3178 = vsel %vm3177, 1.0, 0.0
    %v3180 = vsel %vm426, %v3178, 0
    %3182 = vmatpush.msra.mxu0 0.0
    %3183 = vmatpush.msra.mxu0 0.0
    %3184 = vmatpush.msra.mxu0 0.0
    %3185 = vmatpush.msra.mxu0 0.0
    %3186 = vmatpush.msra.mxu0 0.0
    %3187 = vmatpush.msra.mxu0 0.0
    %3188 = vmatpush.msra.mxu0 0.0
    %3189 = vmatpush.msra.mxu0 0.0
    %3190 = vmatpush.msra.mxu0 0.0
    %3191 = vmatpush.msra.mxu0 0.0
    %3192 = vmatpush.msra.mxu0 0.0
    %3193 = vmatpush.msra.mxu0 0.0
    %3194 = vmatpush.msra.mxu0 0.0
    %3195 = vmatpush.msra.mxu0 0.0
    %3196 = vmatpush.msra.mxu0 0.0
    %3197 = vmatpush.msra.mxu0 %v2861
    %3198 = vmatmul.f32.gmra.mxu0 %v3180
    %v3199 = vpop.f32.mrf.mxu0
    %v3200 = vadd.f32 0.0, %v3199
    %3201 = vdwg.mxu0
    %vm3202 = vcmp.eq.f32.partialorder %v2964, 9.0
    %vm3203 = vmand %vm3202, %vm2966
    %v3204 = vsel %vm3203, 1.0, 0.0
    %v3206 = vsel %vm426, %v3204, 0
    %3208 = vmatpush.msra.mxu0 0.0
    %3209 = vmatpush.msra.mxu0 0.0
    %3210 = vmatpush.msra.mxu0 0.0
    %3211 = vmatpush.msra.mxu0 0.0
    %3212 = vmatpush.msra.mxu0 0.0
    %3213 = vmatpush.msra.mxu0 0.0
    %3214 = vmatpush.msra.mxu0 0.0
    %3215 = vmatpush.msra.mxu0 0.0
    %3216 = vmatpush.msra.mxu0 0.0
    %3217 = vmatpush.msra.mxu0 0.0
    %3218 = vmatpush.msra.mxu0 0.0
    %3219 = vmatpush.msra.mxu0 0.0
    %3220 = vmatpush.msra.mxu0 0.0
    %3221 = vmatpush.msra.mxu0 0.0
    %3222 = vmatpush.msra.mxu0 0.0
    %3223 = vmatpush.msra.mxu0 %v2861
    %3224 = vmatmul.f32.gmra.mxu0 %v3206
    %v3225 = vpop.f32.mrf.mxu0
    %v3226 = vadd.f32 0.0, %v3225
    %3227 = vdwg.mxu0
    %vm3228 = vcmp.eq.f32.partialorder %v2964, 10.0
    %vm3229 = vmand %vm3228, %vm2966
    %v3230 = vsel %vm3229, 1.0, 0.0
    %v3232 = vsel %vm426, %v3230, 0
    %3234 = vmatpush.msra.mxu0 0.0
    %3235 = vmatpush.msra.mxu0 0.0
    %3236 = vmatpush.msra.mxu0 0.0
    %3237 = vmatpush.msra.mxu0 0.0
    %3238 = vmatpush.msra.mxu0 0.0
    %3239 = vmatpush.msra.mxu0 0.0
    %3240 = vmatpush.msra.mxu0 0.0
    %3241 = vmatpush.msra.mxu0 0.0
    %3242 = vmatpush.msra.mxu0 0.0
    %3243 = vmatpush.msra.mxu0 0.0
    %3244 = vmatpush.msra.mxu0 0.0
    %3245 = vmatpush.msra.mxu0 0.0
    %3246 = vmatpush.msra.mxu0 0.0
    %3247 = vmatpush.msra.mxu0 0.0
    %3248 = vmatpush.msra.mxu0 0.0
    %3249 = vmatpush.msra.mxu0 %v2861
    %3250 = vmatmul.f32.gmra.mxu0 %v3232
    %v3251 = vpop.f32.mrf.mxu0
    %v3252 = vadd.f32 0.0, %v3251
    %3253 = vdwg.mxu0
    %vm3254 = vcmp.eq.f32.partialorder %v2964, 11.0
    %vm3255 = vmand %vm3254, %vm2966
    %v3256 = vsel %vm3255, 1.0, 0.0
    %v3258 = vsel %vm426, %v3256, 0
    %3260 = vmatpush.msra.mxu0 0.0
    %3261 = vmatpush.msra.mxu0 0.0
    %3262 = vmatpush.msra.mxu0 0.0
    %3263 = vmatpush.msra.mxu0 0.0
    %3264 = vmatpush.msra.mxu0 0.0
    %3265 = vmatpush.msra.mxu0 0.0
    %3266 = vmatpush.msra.mxu0 0.0
    %3267 = vmatpush.msra.mxu0 0.0
    %3268 = vmatpush.msra.mxu0 0.0
    %3269 = vmatpush.msra.mxu0 0.0
    %3270 = vmatpush.msra.mxu0 0.0
    %3271 = vmatpush.msra.mxu0 0.0
    %3272 = vmatpush.msra.mxu0 0.0
    %3273 = vmatpush.msra.mxu0 0.0
    %3274 = vmatpush.msra.mxu0 0.0
    %3275 = vmatpush.msra.mxu0 %v2861
    %3276 = vmatmul.f32.gmra.mxu0 %v3258
    %v3277 = vpop.f32.mrf.mxu0
    %v3278 = vadd.f32 0.0, %v3277
    %3279 = vdwg.mxu0
    %vm3280 = vcmp.eq.f32.partialorder %v2964, 12.0
    %vm3281 = vmand %vm3280, %vm2966
    %v3282 = vsel %vm3281, 1.0, 0.0
    %v3284 = vsel %vm426, %v3282, 0
    %3286 = vmatpush.msra.mxu0 0.0
    %3287 = vmatpush.msra.mxu0 0.0
    %3288 = vmatpush.msra.mxu0 0.0
    %3289 = vmatpush.msra.mxu0 0.0
    %3290 = vmatpush.msra.mxu0 0.0
    %3291 = vmatpush.msra.mxu0 0.0
    %3292 = vmatpush.msra.mxu0 0.0
    %3293 = vmatpush.msra.mxu0 0.0
    %3294 = vmatpush.msra.mxu0 0.0
    %3295 = vmatpush.msra.mxu0 0.0
    %3296 = vmatpush.msra.mxu0 0.0
    %3297 = vmatpush.msra.mxu0 0.0
    %3298 = vmatpush.msra.mxu0 0.0
    %3299 = vmatpush.msra.mxu0 0.0
    %3300 = vmatpush.msra.mxu0 0.0
    %3301 = vmatpush.msra.mxu0 %v2861
    %3302 = vmatmul.f32.gmra.mxu0 %v3284
    %v3303 = vpop.f32.mrf.mxu0
    %v3304 = vadd.f32 0.0, %v3303
    %3305 = vdwg.mxu0
    %vm3306 = vcmp.eq.f32.partialorder %v2964, 13.0
    %vm3307 = vmand %vm3306, %vm2966
    %v3308 = vsel %vm3307, 1.0, 0.0
    %v3310 = vsel %vm426, %v3308, 0
    %3312 = vmatpush.msra.mxu0 0.0
    %3313 = vmatpush.msra.mxu0 0.0
    %3314 = vmatpush.msra.mxu0 0.0
    %3315 = vmatpush.msra.mxu0 0.0
    %3316 = vmatpush.msra.mxu0 0.0
    %3317 = vmatpush.msra.mxu0 0.0
    %3318 = vmatpush.msra.mxu0 0.0
    %3319 = vmatpush.msra.mxu0 0.0
    %3320 = vmatpush.msra.mxu0 0.0
    %3321 = vmatpush.msra.mxu0 0.0
    %3322 = vmatpush.msra.mxu0 0.0
    %3323 = vmatpush.msra.mxu0 0.0
    %3324 = vmatpush.msra.mxu0 0.0
    %3325 = vmatpush.msra.mxu0 0.0
    %3326 = vmatpush.msra.mxu0 0.0
    %3327 = vmatpush.msra.mxu0 %v2861
    %3328 = vmatmul.f32.gmra.mxu0 %v3310
    %v3329 = vpop.f32.mrf.mxu0
    %v3330 = vadd.f32 0.0, %v3329
    %3331 = vdwg.mxu0
    %vm3332 = vcmp.eq.f32.partialorder %v2964, 14.0
    %vm3333 = vmand %vm3332, %vm2966
    %v3334 = vsel %vm3333, 1.0, 0.0
    %v3336 = vsel %vm426, %v3334, 0
    %3338 = vmatpush.msra.mxu0 0.0
    %3339 = vmatpush.msra.mxu0 0.0
    %3340 = vmatpush.msra.mxu0 0.0
    %3341 = vmatpush.msra.mxu0 0.0
    %3342 = vmatpush.msra.mxu0 0.0
    %3343 = vmatpush.msra.mxu0 0.0
    %3344 = vmatpush.msra.mxu0 0.0
    %3345 = vmatpush.msra.mxu0 0.0
    %3346 = vmatpush.msra.mxu0 0.0
    %3347 = vmatpush.msra.mxu0 0.0
    %3348 = vmatpush.msra.mxu0 0.0
    %3349 = vmatpush.msra.mxu0 0.0
    %3350 = vmatpush.msra.mxu0 0.0
    %3351 = vmatpush.msra.mxu0 0.0
    %3352 = vmatpush.msra.mxu0 0.0
    %3353 = vmatpush.msra.mxu0 %v2861
    %3354 = vmatmul.f32.gmra.mxu0 %v3336
    %v3355 = vpop.f32.mrf.mxu0
    %v3356 = vadd.f32 0.0, %v3355
    %3357 = vdwg.mxu0
    %vm3358 = vcmp.eq.f32.partialorder %v2964, 15.0
    %vm3359 = vmand %vm3358, %vm2966
    %v3360 = vsel %vm3359, 1.0, 0.0
    %v3362 = vsel %vm426, %v3360, 0
    %3364 = vmatpush.msra.mxu0 0.0
    %3365 = vmatpush.msra.mxu0 0.0
    %3366 = vmatpush.msra.mxu0 0.0
    %3367 = vmatpush.msra.mxu0 0.0
    %3368 = vmatpush.msra.mxu0 0.0
    %3369 = vmatpush.msra.mxu0 0.0
    %3370 = vmatpush.msra.mxu0 0.0
    %3371 = vmatpush.msra.mxu0 0.0
    %3372 = vmatpush.msra.mxu0 0.0
    %3373 = vmatpush.msra.mxu0 0.0
    %3374 = vmatpush.msra.mxu0 0.0
    %3375 = vmatpush.msra.mxu0 0.0
    %3376 = vmatpush.msra.mxu0 0.0
    %3377 = vmatpush.msra.mxu0 0.0
    %3378 = vmatpush.msra.mxu0 0.0
    %3379 = vmatpush.msra.mxu0 %v2861
    %3380 = vmatmul.f32.gmra.mxu0 %v3362
    %v3381 = vpop.f32.mrf.mxu0
    %v3382 = vadd.f32 0.0, %v3381
    %3383 = vdwg.mxu0
    %3385 = vrot.lane.b32.xlu0 %v3018, 32
    %v3386 = vpop.permute.xlu0 %3385
    %3389 = vrot.lane.b32.xlu0 %v3044, 64
    %v3390 = vpop.permute.xlu0 %3389
    %3393 = vrot.lane.b32.xlu0 %v3070, 96
    %v3394 = vpop.permute.xlu0 %3393
    %3397 = vrot.lane.b32.xlu0 %v3122, 32
    %v3398 = vpop.permute.xlu0 %3397
    %3401 = vrot.lane.b32.xlu0 %v3148, 64
    %v3402 = vpop.permute.xlu0 %3401
    %3405 = vrot.lane.b32.xlu0 %v3174, 96
    %v3406 = vpop.permute.xlu0 %3405
    %3409 = vrot.lane.b32.xlu0 %v3226, 32
    %v3410 = vpop.permute.xlu0 %3409
    %3413 = vrot.lane.b32.xlu0 %v3252, 64
    %v3414 = vpop.permute.xlu0 %3413
    %3417 = vrot.lane.b32.xlu0 %v3278, 96
    %v3418 = vpop.permute.xlu0 %3417
    %3421 = vrot.lane.b32.xlu0 %v3330, 32
    %v3422 = vpop.permute.xlu0 %3421
    %3425 = vrot.lane.b32.xlu0 %v3356, 64
    %v3426 = vpop.permute.xlu0 %3425
    %3429 = vrot.lane.b32.xlu0 %v3382, 96
    %v3430 = vpop.permute.xlu0 %3429
    %v3432 = vsel %vm213, %v2992, %v3386
    %v3433 = vsel %vm889, %v3432, %v3390
    %v3434 = vsel %vm891, %v3433, %v3394
    %v3435 = vsel %vm213, %v3096, %v3398
    %v3436 = vsel %vm889, %v3435, %v3402
    %v3437 = vsel %vm891, %v3436, %v3406
    %v3438 = vsel %vm213, %v3200, %v3410
    %v3439 = vsel %vm889, %v3438, %v3414
    %v3440 = vsel %vm891, %v3439, %v3418
    %v3441 = vsel %vm213, %v3304, %v3422
    %v3442 = vsel %vm889, %v3441, %v3426
    %v3443 = vsel %vm891, %v3442, %v3430
    %3444 = vmatpush.msra.mxu0 %v92
    %3445 = vmatpush.msra.mxu0 %v91
    %3446 = vmatpush.msra.mxu0 %v90
    %3447 = vmatpush.msra.mxu0 %v89
    %3448 = vmatpush.msra.mxu0 %v88
    %3449 = vmatpush.msra.mxu0 %v87
    %3450 = vmatpush.msra.mxu0 %v86
    %3451 = vmatpush.msra.mxu0 %v85
    %3452 = vmatpush.msra.mxu0 %v84
    %3453 = vmatpush.msra.mxu0 %v83
    %3454 = vmatpush.msra.mxu0 %v82
    %3455 = vmatpush.msra.mxu0 %v81
    %3456 = vmatpush.msra.mxu0 %v80
    %3457 = vmatpush.msra.mxu0 %v79
    %3458 = vmatpush.msra.mxu0 %v78
    %3459 = vmatpush.msra.mxu0 %v77
    %3460 = vmatmul.f32.gmra.mxu0 %v3434
    %v3461 = vpop.f32.mrf.mxu0
    %v3462 = vadd.f32 %v167, %v3461
    %3463 = vdwg.mxu0
    %3464 = vmatpush.msra.mxu0 %v108
    %3465 = vmatpush.msra.mxu0 %v107
    %3466 = vmatpush.msra.mxu0 %v106
    %3467 = vmatpush.msra.mxu0 %v105
    %3468 = vmatpush.msra.mxu0 %v104
    %3469 = vmatpush.msra.mxu0 %v103
    %3470 = vmatpush.msra.mxu0 %v102
    %3471 = vmatpush.msra.mxu0 %v101
    %3472 = vmatpush.msra.mxu0 %v100
    %3473 = vmatpush.msra.mxu0 %v99
    %3474 = vmatpush.msra.mxu0 %v98
    %3475 = vmatpush.msra.mxu0 %v97
    %3476 = vmatpush.msra.mxu0 %v96
    %3477 = vmatpush.msra.mxu0 %v95
    %3478 = vmatpush.msra.mxu0 %v94
    %3479 = vmatpush.msra.mxu0 %v93
    %3480 = vmatmul.f32.gmra.mxu0 %v3437
    %v3481 = vpop.f32.mrf.mxu0
    %v3482 = vadd.f32 %v3462, %v3481
    %3483 = vdwg.mxu0
    %3484 = vmatpush.msra.mxu0 %v124
    %3485 = vmatpush.msra.mxu0 %v123
    %3486 = vmatpush.msra.mxu0 %v122
    %3487 = vmatpush.msra.mxu0 %v121
    %3488 = vmatpush.msra.mxu0 %v120
    %3489 = vmatpush.msra.mxu0 %v119
    %3490 = vmatpush.msra.mxu0 %v118
    %3491 = vmatpush.msra.mxu0 %v117
    %3492 = vmatpush.msra.mxu0 %v116
    %3493 = vmatpush.msra.mxu0 %v115
    %3494 = vmatpush.msra.mxu0 %v114
    %3495 = vmatpush.msra.mxu0 %v113
    %3496 = vmatpush.msra.mxu0 %v112
    %3497 = vmatpush.msra.mxu0 %v111
    %3498 = vmatpush.msra.mxu0 %v110
    %3499 = vmatpush.msra.mxu0 %v109
    %3500 = vmatmul.f32.gmra.mxu0 %v3440
    %v3501 = vpop.f32.mrf.mxu0
    %v3502 = vadd.f32 %v3482, %v3501
    %3503 = vdwg.mxu0
    %3504 = vmatpush.msra.mxu0 %v140
    %3505 = vmatpush.msra.mxu0 %v139
    %3506 = vmatpush.msra.mxu0 %v138
    %3507 = vmatpush.msra.mxu0 %v137
    %3508 = vmatpush.msra.mxu0 %v136
    %3509 = vmatpush.msra.mxu0 %v135
    %3510 = vmatpush.msra.mxu0 %v134
    %3511 = vmatpush.msra.mxu0 %v133
    %3512 = vmatpush.msra.mxu0 %v132
    %3513 = vmatpush.msra.mxu0 %v131
    %3514 = vmatpush.msra.mxu0 %v130
    %3515 = vmatpush.msra.mxu0 %v129
    %3516 = vmatpush.msra.mxu0 %v128
    %3517 = vmatpush.msra.mxu0 %v127
    %3518 = vmatpush.msra.mxu0 %v126
    %3519 = vmatpush.msra.mxu0 %v125
    %3520 = vmatmul.f32.gmra.mxu0 %v3443
    %v3521 = vpop.f32.mrf.mxu0
    %v3522 = vadd.f32 %v3502, %v3521
    %3523 = vdwg.mxu0
    %v3524 = vmax.f32 %v3522, 0.0
    %v3526 = vsel %vm213, %v3524, 0
    %3528 = vmatpush.msra.mxu0 0.0
    %3529 = vmatpush.msra.mxu0 0.0
    %3530 = vmatpush.msra.mxu0 0.0
    %3531 = vmatpush.msra.mxu0 0.0
    %3532 = vmatpush.msra.mxu0 0.0
    %3533 = vmatpush.msra.mxu0 0.0
    %3534 = vmatpush.msra.mxu0 0.0
    %3535 = vmatpush.msra.mxu0 0.0
    %3536 = vmatpush.msra.mxu0 0.0
    %3537 = vmatpush.msra.mxu0 0.0
    %3538 = vmatpush.msra.mxu0 0.0
    %3539 = vmatpush.msra.mxu0 0.0
    %3540 = vmatpush.msra.mxu0 %v148
    %3541 = vmatpush.msra.mxu0 %v147
    %3542 = vmatpush.msra.mxu0 %v146
    %3543 = vmatpush.msra.mxu0 %v145
    %3544 = vmatmul.f32.gmra.mxu0 %v3526
    %v3545 = vpop.f32.mrf.mxu0
    %v3546 = vadd.f32 0.0, %v3545
    %3547 = vdwg.mxu0
    %3548 = vmatpush.msra.mxu0 0.0
    %3549 = vmatpush.msra.mxu0 0.0
    %3550 = vmatpush.msra.mxu0 0.0
    %3551 = vmatpush.msra.mxu0 0.0
    %3552 = vmatpush.msra.mxu0 0.0
    %3553 = vmatpush.msra.mxu0 0.0
    %3554 = vmatpush.msra.mxu0 0.0
    %3555 = vmatpush.msra.mxu0 0.0
    %3556 = vmatpush.msra.mxu0 0.0
    %3557 = vmatpush.msra.mxu0 0.0
    %3558 = vmatpush.msra.mxu0 0.0
    %3559 = vmatpush.msra.mxu0 0.0
    %3560 = vmatpush.msra.mxu0 %v144
    %3561 = vmatpush.msra.mxu0 %v143
    %3562 = vmatpush.msra.mxu0 %v142
    %3563 = vmatpush.msra.mxu0 %v141
    %3564 = vmatmul.f32.gmra.mxu0 %v2862
    %v3565 = vpop.f32.mrf.mxu0
    %v3566 = vadd.f32 %v3546, %v3565
    %3567 = vdwg.mxu0
    %v3568 = vadd.f32 %v3566, %v171
    %v3569 = vmax.f32 %v3568, 0.0
    %v3571 = vsel %vm213, %v3569, 0
    %3573 = vmatpush.msra.mxu0 0.0
    %3574 = vmatpush.msra.mxu0 0.0
    %3575 = vmatpush.msra.mxu0 0.0
    %3576 = vmatpush.msra.mxu0 0.0
    %3577 = vmatpush.msra.mxu0 0.0
    %3578 = vmatpush.msra.mxu0 0.0
    %3579 = vmatpush.msra.mxu0 0.0
    %3580 = vmatpush.msra.mxu0 0.0
    %3581 = vmatpush.msra.mxu0 0.0
    %3582 = vmatpush.msra.mxu0 0.0
    %3583 = vmatpush.msra.mxu0 0.0
    %3584 = vmatpush.msra.mxu0 0.0
    %3585 = vmatpush.msra.mxu0 %v152
    %3586 = vmatpush.msra.mxu0 %v151
    %3587 = vmatpush.msra.mxu0 %v150
    %3588 = vmatpush.msra.mxu0 %v149
    %3589 = vmatmul.f32.gmra.mxu0 %v3571
    %v3590 = vpop.f32.mrf.mxu0
    %v3591 = vadd.f32 %v175, %v3590
    %3592 = vdwg.mxu0
    %v3593 = vmax.f32 %v3591, 0.0
    %s3594 = scalar_lea.vmem %s19, 24
    %3595 = vst.msk [vmem:[%s3594] sm:$0xff] %vm183, %v2882
    %s3596 = scalar_lea.vmem %s20, 24
    %3597 = vst.msk [vmem:[%s3596] sm:$0xff] %vm183, %v2884
    %3598 = vst.msk [vmem:[#allocation2] sm:$0xff] %vm213, %v3593
    // Predicated region
    $region78: #{tpu_custom_call.1} parent=1 // pred_check
      _
    $region79: #{tpu_custom_call.1} parent=1 // pred_check_branch
      %3600 = sbr.rel (0) target = $region81
    $region80: #{tpu_custom_call.1} parent=1 // pred_region
      _
    $region81: #{tpu_custom_call.1} parent=1 // pred_fallthru
      _
    // Predicated region
    $region82: #{tpu_custom_call.1} parent=1 // pred_check
      _
    $region83: #{tpu_custom_call.1} parent=1 // pred_check_branch
      %3602 = sbr.rel (0) target = $region85
    $region84: #{tpu_custom_call.1} parent=1 // pred_region
      _
    $region85: #{tpu_custom_call.1} parent=1 // pred_fallthru
      _
    // Predicated region
    $region86: #{tpu_custom_call.1} parent=1 // pred_check
      _
    $region87: #{tpu_custom_call.1} parent=1 // pred_check_branch
      %3604 = sbr.rel (0) target = $region89
    $region88: #{tpu_custom_call.1} parent=1 // pred_region
      %3606 = vsyncadd [#allocation3], 0
      %s3608 = sshll.u32 [#allocation2], 4
      %s3609 = int_to_ptr.vmem [resolvable:$true] %s3608
      %s3610 = sshll.u32 %s21, 4
      %s3611 = int_to_ptr.hbm [resolvable:$true] %s3610
      %3613 = dma.vmem_to_hbm [thread:$0]  %s3609, 128, %s3611, [#allocation3]
    $region89: #{tpu_custom_call.1} parent=1 // pred_fallthru
      _
    // Predicated region
    $region90: #{tpu_custom_call.1} parent=1 // pred_check
      _
    $region91: #{tpu_custom_call.1} parent=1 // pred_check_branch
      %3615 = sbr.rel (0) target = $region93
    $region92: #{tpu_custom_call.1} parent=1 // pred_region
      _
    $region93: #{tpu_custom_call.1} parent=1 // pred_fallthru
      _
    // Predicated region
    $region94: #{tpu_custom_call.1} parent=1 // pred_check
      _
    $region95: #{tpu_custom_call.1} parent=1 // pred_check_branch
      %3617 = sbr.rel (0) target = $region97
    $region96: #{tpu_custom_call.1} parent=1 // pred_region
      _
    $region97: #{tpu_custom_call.1} parent=1 // pred_fallthru
      _
    // Predicated region
    $region98: #{tpu_custom_call.1} parent=1 // pred_check
      _
    $region99: #{tpu_custom_call.1} parent=1 // pred_check_branch
      %3619 = sbr.rel (0) target = $region101
    $region100: #{tpu_custom_call.1} parent=1 // pred_region
      %3621 = dma.done [#allocation3], 128
    $region101: #{tpu_custom_call.1} parent=1 // pred_fallthru
      _
    %3622 = vsyncpa [#allocation3], 1

</llo_original>
